<compile_context>
chip_gen: v7x
topology: tpu7x:2x2x1
jax: 0.10.0
libtpu: 0.0.40
codegen_flags: <defaults>
</compile_context>

<pallas_src>
import functools

import jax
import jax.numpy as jnp
from jax.experimental import pallas as pl
from jax.experimental.pallas import tpu as pltpu


_PARALLEL = pltpu.CompilerParams(dimension_semantics=("parallel",))


# ----------------------------------------------------------------------------
# Pallas kernels
# ----------------------------------------------------------------------------

def _linear_nobias_kernel(x_ref, w_ref, o_ref):
    # y = x @ W   (merged, bias-free QKV projection)
    o_ref[...] = jnp.dot(x_ref[...], w_ref[...], preferred_element_type=jnp.float32)


def _ipa_attn_kernel(q_ref, k_ref, v_ref, o_ref):
    # Attention over a tile of (batch, head) pairs.
    #   q: (bh, N, dk+3P+2)   [scalar_q*scale | 2*qp' | -||qp'||^2 | 1]
    #   k: (bh, M, dk+3P+2)   [scalar_k       |   kp' |  1 | -||kp'||^2]
    #   v: (bh, M, dk+3P)     [scalar_v | point_v (global frame)]
    # so q.k^T = scalar logits + (2 qp'.kp' - ||qp'||^2 - ||kp'||^2)
    #          = scalar logits - 0.5*softplus(pw)*point_scale*||qp-kp||^2
    logits = jnp.einsum("bid,bjd->bij", q_ref[...], k_ref[...],
                        preferred_element_type=jnp.float32)
    m = jnp.max(logits, axis=-1, keepdims=True)
    e = jnp.exp(logits - m)
    attn = e / jnp.sum(e, axis=-1, keepdims=True)
    o_ref[...] = jnp.einsum("bij,bjd->bid", attn, v_ref[...],
                            preferred_element_type=jnp.float32)


def _outproj_add_ln_kernel(f_ref, w_ref, b_ref, r_ref, g_ref, bb_ref, o_ref, *, eps):
    # LayerNorm(residual + feats @ W + b)   (biased variance, PyTorch LN)
    y = jnp.dot(f_ref[...], w_ref[...], preferred_element_type=jnp.float32) + b_ref[...]
    s = y + r_ref[...]
    mu = jnp.mean(s, axis=-1, keepdims=True)
    var = jnp.mean(jnp.square(s - mu), axis=-1, keepdims=True)
    o_ref[...] = (s - mu) * jax.lax.rsqrt(var + eps) * g_ref[...] + bb_ref[...]


def _ff_add_ln_kernel(x_ref, w1_ref, b1_ref, w2_ref, b2_ref, g_ref, b_ref, o_ref, *, eps):
    # LayerNorm(x + linear2(relu(linear1(x))))    (dropout = identity)
    x = x_ref[...]
    h = jnp.dot(x, w1_ref[...], preferred_element_type=jnp.float32) + b1_ref[...]
    h = jnp.maximum(h, 0.0)
    y = jnp.dot(h, w2_ref[...], preferred_element_type=jnp.float32) + b2_ref[...]
    s = x + y
    mu = jnp.mean(s, axis=-1, keepdims=True)
    var = jnp.mean(jnp.square(s - mu), axis=-1, keepdims=True)
    o_ref[...] = (s - mu) * jax.lax.rsqrt(var + eps) * g_ref[...] + b_ref[...]


# ----------------------------------------------------------------------------
# Pallas wrappers (row-tiled grids; each grid collapses to a single step at
# the small test shapes, but pipelines at production row counts)
# ----------------------------------------------------------------------------

def linear_nobias_pallas(x2, w, row_tile=512):
    rows, din = x2.shape
    dout = w.shape[1]
    tile = min(rows, row_tile)
    return pl.pallas_call(
        _linear_nobias_kernel,
        grid=(pl.cdiv(rows, tile),),
        in_specs=[pl.BlockSpec((tile, din), lambda i: (i, 0)),
                  pl.BlockSpec((din, dout), lambda i: (0, 0))],
        out_specs=pl.BlockSpec((tile, dout), lambda i: (i, 0)),
        out_shape=jax.ShapeDtypeStruct((rows, dout), jnp.float32),
        compiler_params=_PARALLEL,
    )(x2, w)


def ipa_attention_core(q_cat, k_cat, v_cat, bh_tile=8):
    BH, N, DQ = q_cat.shape
    M = k_cat.shape[1]
    DV = v_cat.shape[2]
    tile = min(BH, bh_tile)
    return pl.pallas_call(
        _ipa_attn_kernel,
        grid=(pl.cdiv(BH, tile),),
        in_specs=[pl.BlockSpec((tile, N, DQ), lambda i: (i, 0, 0)),
                  pl.BlockSpec((tile, M, DQ), lambda i: (i, 0, 0)),
                  pl.BlockSpec((tile, M, DV), lambda i: (i, 0, 0))],
        out_specs=pl.BlockSpec((tile, N, DV), lambda i: (i, 0, 0)),
        out_shape=jax.ShapeDtypeStruct((BH, N, DV), jnp.float32),
        compiler_params=_PARALLEL,
    )(q_cat, k_cat, v_cat)


def outproj_add_ln_pallas(feats, w, b, residual, gamma, beta, eps, row_tile=512):
    B, N, F = feats.shape
    D = w.shape[1]
    rows = B * N
    tile = min(rows, row_tile)
    y = pl.pallas_call(
        functools.partial(_outproj_add_ln_kernel, eps=eps),
        grid=(pl.cdiv(rows, tile),),
        in_specs=[
            pl.BlockSpec((tile, F), lambda i: (i, 0)),
            pl.BlockSpec((F, D), lambda i: (0, 0)),
            pl.BlockSpec((1, D), lambda i: (0, 0)),
            pl.BlockSpec((tile, D), lambda i: (i, 0)),
            pl.BlockSpec((1, D), lambda i: (0, 0)),
            pl.BlockSpec((1, D), lambda i: (0, 0)),
        ],
        out_specs=pl.BlockSpec((tile, D), lambda i: (i, 0)),
        out_shape=jax.ShapeDtypeStruct((rows, D), jnp.float32),
        compiler_params=_PARALLEL,
    )(feats.reshape(rows, F), w, b.reshape(1, D), residual.reshape(rows, D),
      gamma.reshape(1, D), beta.reshape(1, D))
    return y.reshape(B, N, D)


def ff_add_ln_pallas(x, w1, b1, w2, b2, gamma, beta, eps, row_tile=256):
    # row_tile=256 keeps (tile x dim_ff) hidden + resident weights inside
    # v7x's smaller (64 MiB phys / 32 MiB scoped) VMEM at production sizes.
    B, N, D = x.shape
    FF = w1.shape[1]
    rows = B * N
    tile = min(rows, row_tile)
    y = pl.pallas_call(
        functools.partial(_ff_add_ln_kernel, eps=eps),
        grid=(pl.cdiv(rows, tile),),
        in_specs=[
            pl.BlockSpec((tile, D), lambda i: (i, 0)),
            pl.BlockSpec((D, FF), lambda i: (0, 0)),
            pl.BlockSpec((1, FF), lambda i: (0, 0)),
            pl.BlockSpec((FF, D), lambda i: (0, 0)),
            pl.BlockSpec((1, D), lambda i: (0, 0)),
            pl.BlockSpec((1, D), lambda i: (0, 0)),
            pl.BlockSpec((1, D), lambda i: (0, 0)),
        ],
        out_specs=pl.BlockSpec((tile, D), lambda i: (i, 0)),
        out_shape=jax.ShapeDtypeStruct((rows, D), jnp.float32),
        compiler_params=_PARALLEL,
    )(x.reshape(rows, D), w1, b1.reshape(1, FF), w2, b2.reshape(1, D),
      gamma.reshape(1, D), beta.reshape(1, D))
    return y.reshape(B, N, D)


# ----------------------------------------------------------------------------
# InvariantPointAttention: feature computation (hot path in Pallas, small
# per-token frame math / head reshapes as XLA glue)
# ----------------------------------------------------------------------------

def ipa_features(p, x, poses_x, z=None, poses_z=None, *, heads, point_dim, eps=1e-8):
    """Returns merged-head features (B, N, H*(dk + 4P)), ready for to_out."""
    B, N, D = x.shape
    H, P = heads, point_dim
    dk = p["to_scalar_q"].shape[1] // H
    scalar_scale = (2 * dk) ** -0.5
    point_scale = (2 * P * (9.0 / 2.0)) ** -0.5

    self_attn = z is None
    if z is None:
        z = x
    if poses_z is None:
        poses_z = poses_x
    M = z.shape[1]

    sdim = H * dk       # scalar projection width
    pdim = H * P * 3    # point projection width

    # ---- fused, bias-free projections (one matmul per input stream) --------
    # scalar_attn_logits_scale is folded into the scalar-q weights.
    wq = jnp.concatenate([p["to_scalar_q"] * scalar_scale, p["to_point_q"]], axis=1)
    wkv = jnp.concatenate([p["to_scalar_k"], p["to_scalar_v"],
                           p["to_point_k"], p["to_point_v"]], axis=1)
    if self_attn:
        proj = linear_nobias_pallas(x.reshape(B * N, D),
                                    jnp.concatenate([wq, wkv], axis=1))
        qproj, kvproj = proj[:, :sdim + pdim], proj[:, sdim + pdim:]
    else:
        qproj = linear_nobias_pallas(x.reshape(B * N, D), wq)
        kvproj = linear_nobias_pallas(z.reshape(B * M, D), wkv)

    qs = qproj[:, :sdim].reshape(B, N, H, dk)          # already * scalar_scale
    qp = qproj[:, sdim:].reshape(B, N, H * P, 3)
    ks = kvproj[:, :sdim].reshape(B, M, H, dk)
    vs = kvproj[:, sdim:2 * sdim].reshape(B, M, H, dk)
    kp = kvproj[:, 2 * sdim:2 * sdim + pdim].reshape(B, M, H * P, 3)
    vp = kvproj[:, 2 * sdim + pdim:].reshape(B, M, H * P, 3)

    # ---- local -> global frame (applied once per stream, not per head) -----
    rot_q, tr_q = poses_x["rotations"], poses_x["translations"]
    rot_kv, tr_kv = poses_z["rotations"], poses_z["translations"]
    qp = jnp.einsum("bncr,bnpr->bnpc", rot_q, qp) + tr_q[:, :, None, :]
    kp = jnp.einsum("bncr,bnpr->bnpc", rot_kv, kp) + tr_kv[:, :, None, :]
    vp = jnp.einsum("bncr,bnpr->bnpc", rot_kv, vp) + tr_kv[:, :, None, :]

    # ---- fold per-head point weight + scale into q/k points ----------------
    #   -0.5*softplus(pw)*pscale*||qp-kp||^2 == -||s*qp - s*kp||^2, s=sqrt(...)
    s = jnp.sqrt(0.5 * jax.nn.softplus(p["point_weights"]) * point_scale)  # (H,)
    qp_s = qp.reshape(B, N, H, P, 3) * s[None, None, :, None, None]
    kp_s = kp.reshape(B, M, H, P, 3) * s[None, None, :, None, None]

    # ---- head split: (B, n, H, ...) -> (B*H, n, flat) -----------------------
    def heads_first(t):
        n = t.shape[1]
        return jnp.moveaxis(t, 2, 1).reshape(B * H, n, -1)

    qs_bh = heads_first(qs)                                  # (BH, N, dk)
    ks_bh = heads_first(ks)                                  # (BH, M, dk)
    vs_bh = heads_first(vs)                                  # (BH, M, dk)
    qp_bh = heads_first(qp_s)                                # (BH, N, 3P)
    kp_bh = heads_first(kp_s)                                # (BH, M, 3P)
    vp_bh = heads_first(vp.reshape(B, M, H, P, 3))           # (BH, M, 3P)

    # ---- augment so scalar + point logits become ONE MXU matmul ------------
    qsq = jnp.sum(qp_bh * qp_bh, axis=-1, keepdims=True)     # (BH, N, 1)
    ksq = jnp.sum(kp_bh * kp_bh, axis=-1, keepdims=True)     # (BH, M, 1)
    q_cat = jnp.concatenate([qs_bh, 2.0 * qp_bh, -qsq, jnp.ones_like(qsq)], axis=-1)
    k_cat = jnp.concatenate([ks_bh, kp_bh, jnp.ones_like(ksq), -ksq], axis=-1)
    v_cat = jnp.concatenate([vs_bh, vp_bh], axis=-1)         # (BH, M, dk+3P)

    out = ipa_attention_core(q_cat, k_cat, v_cat)            # (BH, N, dk+3P)
    out_s = out[..., :dk]                                    # (BH, N, dk)
    out_p = out[..., dk:]                                    # (BH, N, 3P)

    # ---- global -> local frame, per-point norms, merged-head features ------
    op = jnp.moveaxis(out_p.reshape(B, H, N, P, 3), 1, 2).reshape(B, N, H * P, 3)
    op_local = jnp.einsum("bnrc,bnpr->bnpc", rot_q, op - tr_q[:, :, None, :])
    op_norm = jnp.sqrt(jnp.sum(jnp.square(op_local), axis=-1) + eps)  # (B, N, H*P)

    res_scalar = jnp.moveaxis(out_s.reshape(B, H, N, dk), 1, 2).reshape(B, N, H * dk)
    feats = jnp.concatenate(
        [res_scalar, op_local.reshape(B, N, H * P * 3), op_norm], axis=-1)
    return feats


# ----------------------------------------------------------------------------
# TransformerDecoderLayer forward (norm_first=False -> post-norm)
# ----------------------------------------------------------------------------

def decoder_layer_forward(params, x, z, poses_x, poses_z, *, heads, point_dim):
    ln_eps = 1e-5
    # TODO(synk): dropout1/2/3 and attention masks (x_mask/z_mask) omitted —
    #             inference-mode identity / None-mask path of the reference.
    p_sa = params["rel_self_attn"]
    feats = ipa_features(p_sa, x, poses_x, None, None,
                         heads=heads, point_dim=point_dim)
    x = outproj_add_ln_pallas(feats, p_sa["to_out_w"], p_sa["to_out_b"], x,
                              params["norm1_g"], params["norm1_b"], ln_eps)

    p_mha = params["rel_multihead_attn"]
    feats = ipa_features(p_mha, x, poses_x, z, poses_z,
                         heads=heads, point_dim=4)   # module default point_dim=4
    x = outproj_add_ln_pallas(feats, p_mha["to_out_w"], p_mha["to_out_b"], x,
                              params["norm2_g"], params["norm2_b"], ln_eps)

    x = ff_add_ln_pallas(x, params["linear1_w"], params["linear1_b"],
                         params["linear2_w"], params["linear2_b"],
                         params["norm3_g"], params["norm3_b"], ln_eps)
    return x


# ----------------------------------------------------------------------------
# Deterministic parameter init
# ----------------------------------------------------------------------------

def init_ipa_params(key, dim, heads, dim_head, point_dim, scale=0.05):
    k = jax.random.split(key, 8)
    out_in = heads * (dim_head + point_dim * 4)
    return {
        "to_scalar_q": jax.random.normal(k[0], (dim, heads * dim_head), jnp.float32) * scale,
        "to_scalar_k": jax.random.normal(k[1], (dim, heads * dim_head), jnp.float32) * scale,
        "to_scalar_v": jax.random.normal(k[2], (dim, heads * dim_head), jnp.float32) * scale,
        "to_point_q": jax.random.normal(k[3], (dim, point_dim * heads * 3), jnp.float32) * scale,
        "to_point_k": jax.random.normal(k[4], (dim, point_dim * heads * 3), jnp.float32) * scale,
        "to_point_v": jax.random.normal(k[5], (dim, point_dim * heads * 3), jnp.float32) * scale,
        "point_weights": jnp.full((heads,), float(jnp.log(jnp.exp(1.0) - 1.0)), jnp.float32),
        "to_out_w": jax.random.normal(k[6], (out_in, dim), jnp.float32) * scale,
        "to_out_b": jax.random.normal(k[7], (dim,), jnp.float32) * scale,
    }


def init_layer_params(key, d_model, nhead, dim_ff, point_dim):
    ks = jax.random.split(key, 6)
    dim_head = d_model // nhead
    return {
        "rel_self_attn": init_ipa_params(ks[0], d_model, nhead, dim_head, point_dim),
        "rel_multihead_attn": init_ipa_params(ks[1], d_model, nhead, dim_head, 4),
        "linear1_w": jax.random.normal(ks[2], (d_model, dim_ff), jnp.float32) * 0.05,
        "linear1_b": jax.random.normal(ks[3], (dim_ff,), jnp.float32) * 0.05,
        "linear2_w": jax.random.normal(ks[4], (dim_ff, d_model), jnp.float32) * 0.05,
        "linear2_b": jax.random.normal(ks[5], (d_model,), jnp.float32) * 0.05,
        "norm1_g": jnp.ones((d_model,), jnp.float32),
        "norm1_b": jnp.zeros((d_model,), jnp.float32),
        "norm2_g": jnp.ones((d_model,), jnp.float32),
        "norm2_b": jnp.zeros((d_model,), jnp.float32),
        "norm3_g": jnp.ones((d_model,), jnp.float32),
        "norm3_b": jnp.zeros((d_model,), jnp.float32),
    }


# ----------------------------------------------------------------------------
# Main
# ----------------------------------------------------------------------------

if __name__ == "__main__":
    B, N, M = 2, 8, 6           # batch, x-seq, z-seq
    D_MODEL, NHEAD, DIM_FF, POINT_DIM = 32, 4, 64, 4

    key = jax.random.PRNGKey(0)
    k_param, k_x, k_z, k_rx, k_tx, k_rz, k_tz = jax.random.split(key, 7)

    params = init_layer_params(k_param, D_MODEL, NHEAD, DIM_FF, POINT_DIM)

    x = jax.random.normal(k_x, (B, N, D_MODEL), jnp.float32)
    z = jax.random.normal(k_z, (B, M, D_MODEL), jnp.float32)
    poses_x = {
        "rotations": jax.random.normal(k_rx, (B, N, 3, 3), jnp.float32),
        "translations": jax.random.normal(k_tx, (B, N, 3), jnp.float32),
    }
    poses_z = {
        "rotations": jax.random.normal(k_rz, (B, M, 3, 3), jnp.float32),
        "translations": jax.random.normal(k_tz, (B, M, 3), jnp.float32),
    }

    fwd = jax.jit(functools.partial(decoder_layer_forward,
                                    heads=NHEAD, point_dim=POINT_DIM))
    out = fwd(params, x, z, poses_x, poses_z)
    jax.block_until_ready(out)
    assert out.shape == (B, N, D_MODEL), out.shape
    assert bool(jnp.all(jnp.isfinite(out)))
    print("KERNEL_OK")
</pallas_src>

<mosaic_0001>
module attributes {stable_mosaic.version = 11 : i64} {
  func.func @_linear_nobias_kernel(%arg0: i32, %arg1: memref<16x32xf32, #tpu.memory_space<vmem>>, %arg2: memref<32x240xf32, #tpu.memory_space<vmem>>, %arg3: memref<16x240xf32, #tpu.memory_space<vmem>>) attributes {dimension_semantics = [#tpu.dimension_semantics<parallel>], iteration_bounds = array<i64: 1>, scalar_prefetch = 0 : i64, scratch_operands = 0 : i64, tpu.core_type = #tpu.core_type<tc>, window_params = [{transform_indices = @transform_0, window_bounds = array<i64: 16, 32>}, {pipeline_mode = #tpu.pipeline_mode<synchronous>, transform_indices = @transform_1, window_bounds = array<i64: 32, 240>}, {transform_indices = @transform_2, window_bounds = array<i64: 16, 240>}]} {
    %c0 = arith.constant 0 : index
    %c0_0 = arith.constant 0 : index
    %0 = vector.load %arg1[%c0, %c0_0] : memref<16x32xf32, #tpu.memory_space<vmem>>, vector<16x32xf32>
    %c0_1 = arith.constant 0 : index
    %c0_2 = arith.constant 0 : index
    %1 = vector.load %arg2[%c0_1, %c0_2] : memref<32x240xf32, #tpu.memory_space<vmem>>, vector<32x240xf32>
    %cst = arith.constant dense<0.000000e+00> : vector<16x240xf32>
    %2 = tpu.matmul %0, %1, %cst {dimension_numbers = #tpu.dot_dimension_numbers<[1], [0], [0], [1], [0, 0, 1, 1], [], []>} : vector<16x32xf32>, vector<32x240xf32>, vector<16x240xf32> -> vector<16x240xf32>
    %c0_3 = arith.constant 0 : index
    %c0_4 = arith.constant 0 : index
    %3 = vector.load %arg3[%c0_3, %c0_4] : memref<16x240xf32, #tpu.memory_space<vmem>>, vector<16x240xf32>
    tpu.vector_store %arg3[%c0_3, %c0_4], %2 {strides = array<i32>} : memref<16x240xf32, #tpu.memory_space<vmem>>, vector<16x240xf32>,
    return
  }
  func.func @transform_0(%arg0: i32) -> (i32, i32) {
    %c0_i32 = arith.constant 0 : i32
    %c0_i32_0 = arith.constant 0 : i32
    return %arg0, %c0_i32 : i32, i32
  }
  func.func @transform_1(%arg0: i32) -> (i32, i32) {
    %c0_i32 = arith.constant 0 : i32
    %c0_i32_0 = arith.constant 0 : i32
    %c0_i32_1 = arith.constant 0 : i32
    return %c0_i32, %c0_i32_0 : i32, i32
  }
  func.func @transform_2(%arg0: i32) -> (i32, i32) {
    %c0_i32 = arith.constant 0 : i32
    %c0_i32_0 = arith.constant 0 : i32
    return %arg0, %c0_i32 : i32, i32
  }
}

module attributes {stable_mosaic.version = 11 : i64} {
  func.func @_ipa_attn_kernel(%arg0: i32, %arg1: memref<8x8x22xf32, #tpu.memory_space<vmem>>, %arg2: memref<8x8x22xf32, #tpu.memory_space<vmem>>, %arg3: memref<8x8x20xf32, #tpu.memory_space<vmem>>, %arg4: memref<8x8x20xf32, #tpu.memory_space<vmem>>) attributes {dimension_semantics = [#tpu.dimension_semantics<parallel>], iteration_bounds = array<i64: 1>, scalar_prefetch = 0 : i64, scratch_operands = 0 : i64, tpu.core_type = #tpu.core_type<tc>, window_params = [{transform_indices = @transform_0, window_bounds = array<i64: 8, 8, 22>}, {transform_indices = @transform_1, window_bounds = array<i64: 8, 8, 22>}, {transform_indices = @transform_2, window_bounds = array<i64: 8, 8, 20>}, {transform_indices = @transform_3, window_bounds = array<i64: 8, 8, 20>}]} {
    %c0 = arith.constant 0 : index
    %c0_0 = arith.constant 0 : index
    %c0_1 = arith.constant 0 : index
    %0 = vector.load %arg1[%c0, %c0_0, %c0_1] : memref<8x8x22xf32, #tpu.memory_space<vmem>>, vector<8x8x22xf32>
    %c0_2 = arith.constant 0 : index
    %c0_3 = arith.constant 0 : index
    %c0_4 = arith.constant 0 : index
    %1 = vector.load %arg2[%c0_2, %c0_3, %c0_4] : memref<8x8x22xf32, #tpu.memory_space<vmem>>, vector<8x8x22xf32>
    "tpu.trace_start"() <{level = 10 : i32, message = "bid,bjd->bij"}> : () -> ()
    %cst = arith.constant dense<0.000000e+00> : vector<8x8x8xf32>
    %2 = tpu.matmul %0, %1, %cst {dimension_numbers = #tpu.dot_dimension_numbers<[2], [2], [1], [1], [0, 0, 0, 1, 1, 1], [0], [0]>} : vector<8x8x22xf32>, vector<8x8x22xf32>, vector<8x8x8xf32> -> vector<8x8x8xf32>
    "tpu.trace_stop"() : () -> ()
    %cst_5 = arith.constant dense<0xFF800000> : vector<8x8xf32>
    %3 = vector.multi_reduction <maximumf>, %2, %cst_5 [2] : vector<8x8x8xf32> to vector<8x8xf32>
    %4 = vector.shape_cast %3 : vector<8x8xf32> to vector<8x8x1xf32>
    %5 = vector.broadcast %4 : vector<8x8x1xf32> to vector<8x8x8xf32>
    %6 = arith.subf %2, %5 : vector<8x8x8xf32>
    %7 = math.exp %6 : vector<8x8x8xf32>
    %cst_6 = arith.constant dense<0.000000e+00> : vector<8x8xf32>
    %8 = vector.multi_reduction <add>, %7, %cst_6 [2] : vector<8x8x8xf32> to vector<8x8xf32>
    %9 = vector.shape_cast %8 : vector<8x8xf32> to vector<8x8x1xf32>
    %10 = vector.broadcast %9 : vector<8x8x1xf32> to vector<8x8x8xf32>
    %11 = arith.divf %7, %10 : vector<8x8x8xf32>
    %c0_7 = arith.constant 0 : index
    %c0_8 = arith.constant 0 : index
    %c0_9 = arith.constant 0 : index
    %12 = vector.load %arg3[%c0_7, %c0_8, %c0_9] : memref<8x8x20xf32, #tpu.memory_space<vmem>>, vector<8x8x20xf32>
    "tpu.trace_start"() <{level = 10 : i32, message = "bij,bjd->bid"}> : () -> ()
    %cst_10 = arith.constant dense<0.000000e+00> : vector<8x8x20xf32>
    %13 = tpu.matmul %11, %12, %cst_10 {dimension_numbers = #tpu.dot_dimension_numbers<[2], [1], [1], [2], [0, 0, 0, 1, 1, 2], [0], [0]>} : vector<8x8x8xf32>, vector<8x8x20xf32>, vector<8x8x20xf32> -> vector<8x8x20xf32>
    "tpu.trace_stop"() : () -> ()
    %c0_11 = arith.constant 0 : index
    %c0_12 = arith.constant 0 : index
    %c0_13 = arith.constant 0 : index
    %14 = vector.load %arg4[%c0_11, %c0_12, %c0_13] : memref<8x8x20xf32, #tpu.memory_space<vmem>>, vector<8x8x20xf32>
    tpu.vector_store %arg4[%c0_11, %c0_12, %c0_13], %13 {strides = array<i32>} : memref<8x8x20xf32, #tpu.memory_space<vmem>>, vector<8x8x20xf32>,
    return
  }
  func.func @transform_0(%arg0: i32) -> (i32, i32, i32) {
    %c0_i32 = arith.constant 0 : i32
    %c0_i32_0 = arith.constant 0 : i32
    %c0_i32_1 = arith.constant 0 : i32
    return %arg0, %c0_i32, %c0_i32_0 : i32, i32, i32
  }
  func.func @transform_1(%arg0: i32) -> (i32, i32, i32) {
    %c0_i32 = arith.constant 0 : i32
    %c0_i32_0 = arith.constant 0 : i32
    %c0_i32_1 = arith.constant 0 : i32
    return %arg0, %c0_i32, %c0_i32_0 : i32, i32, i32
  }
  func.func @transform_2(%arg0: i32) -> (i32, i32, i32) {
    %c0_i32 = arith.constant 0 : i32
    %c0_i32_0 = arith.constant 0 : i32
    %c0_i32_1 = arith.constant 0 : i32
    return %arg0, %c0_i32, %c0_i32_0 : i32, i32, i32
  }
  func.func @transform_3(%arg0: i32) -> (i32, i32, i32) {
    %c0_i32 = arith.constant 0 : i32
    %c0_i32_0 = arith.constant 0 : i32
    %c0_i32_1 = arith.constant 0 : i32
    return %arg0, %c0_i32, %c0_i32_0 : i32, i32, i32
  }
}

module attributes {stable_mosaic.version = 11 : i64} {
  func.func @_outproj_add_ln_kernel(%arg0: i32, %arg1: memref<16x96xf32, #tpu.memory_space<vmem>>, %arg2: memref<96x32xf32, #tpu.memory_space<vmem>>, %arg3: memref<1x32xf32, #tpu.memory_space<vmem>>, %arg4: memref<16x32xf32, #tpu.memory_space<vmem>>, %arg5: memref<1x32xf32, #tpu.memory_space<vmem>>, %arg6: memref<1x32xf32, #tpu.memory_space<vmem>>, %arg7: memref<16x32xf32, #tpu.memory_space<vmem>>) attributes {dimension_semantics = [#tpu.dimension_semantics<parallel>], iteration_bounds = array<i64: 1>, scalar_prefetch = 0 : i64, scratch_operands = 0 : i64, tpu.core_type = #tpu.core_type<tc>, window_params = [{transform_indices = @transform_0, window_bounds = array<i64: 16, 96>}, {pipeline_mode = #tpu.pipeline_mode<synchronous>, transform_indices = @transform_1, window_bounds = array<i64: 96, 32>}, {pipeline_mode = #tpu.pipeline_mode<synchronous>, transform_indices = @transform_2, window_bounds = array<i64: 1, 32>}, {transform_indices = @transform_3, window_bounds = array<i64: 16, 32>}, {pipeline_mode = #tpu.pipeline_mode<synchronous>, transform_indices = @transform_4, window_bounds = array<i64: 1, 32>}, {pipeline_mode = #tpu.pipeline_mode<synchronous>, transform_indices = @transform_5, window_bounds = array<i64: 1, 32>}, {transform_indices = @transform_6, window_bounds = array<i64: 16, 32>}]} {
    %c0 = arith.constant 0 : index
    %c0_0 = arith.constant 0 : index
    %0 = vector.load %arg1[%c0, %c0_0] : memref<16x96xf32, #tpu.memory_space<vmem>>, vector<16x96xf32>
    %c0_1 = arith.constant 0 : index
    %c0_2 = arith.constant 0 : index
    %1 = vector.load %arg2[%c0_1, %c0_2] : memref<96x32xf32, #tpu.memory_space<vmem>>, vector<96x32xf32>
    %cst = arith.constant dense<0.000000e+00> : vector<16x32xf32>
    %2 = tpu.matmul %0, %1, %cst {dimension_numbers = #tpu.dot_dimension_numbers<[1], [0], [0], [1], [0, 0, 1, 1], [], []>} : vector<16x96xf32>, vector<96x32xf32>, vector<16x32xf32> -> vector<16x32xf32>
    %c0_3 = arith.constant 0 : index
    %c0_4 = arith.constant 0 : index
    %3 = vector.load %arg3[%c0_3, %c0_4] : memref<1x32xf32, #tpu.memory_space<vmem>>, vector<1x32xf32>
    %4 = vector.broadcast %3 : vector<1x32xf32> to vector<16x32xf32>
    %5 = arith.addf %2, %4 : vector<16x32xf32>
    %c0_5 = arith.constant 0 : index
    %c0_6 = arith.constant 0 : index
    %6 = vector.load %arg4[%c0_5, %c0_6] : memref<16x32xf32, #tpu.memory_space<vmem>>, vector<16x32xf32>
    %7 = arith.addf %5, %6 : vector<16x32xf32>
    %cst_7 = arith.constant dense<0.000000e+00> : vector<16xf32>
    %8 = vector.multi_reduction <add>, %7, %cst_7 [1] : vector<16x32xf32> to vector<16xf32>
    %9 = vector.shape_cast %8 : vector<16xf32> to vector<16x1xf32>
    %cst_8 = arith.constant 3.200000e+01 : f32
    %10 = vector.broadcast %cst_8 : f32 to vector<16x1xf32>
    %11 = arith.divf %9, %10 : vector<16x1xf32>
    %12 = vector.broadcast %11 : vector<16x1xf32> to vector<16x32xf32>
    %13 = arith.subf %7, %12 : vector<16x32xf32>
    %14 = arith.mulf %13, %13 : vector<16x32xf32>
    %cst_9 = arith.constant dense<0.000000e+00> : vector<16xf32>
    %15 = vector.multi_reduction <add>, %14, %cst_9 [1] : vector<16x32xf32> to vector<16xf32>
    %16 = vector.shape_cast %15 : vector<16xf32> to vector<16x1xf32>
    %cst_10 = arith.constant 3.200000e+01 : f32
    %17 = vector.broadcast %cst_10 : f32 to vector<16x1xf32>
    %18 = arith.divf %16, %17 : vector<16x1xf32>
    %19 = vector.broadcast %11 : vector<16x1xf32> to vector<16x32xf32>
    %20 = arith.subf %7, %19 : vector<16x32xf32>
    %cst_11 = arith.constant 9.99999974E-6 : f32
    %21 = vector.broadcast %cst_11 : f32 to vector<16x1xf32>
    %22 = arith.addf %18, %21 : vector<16x1xf32>
    %23 = math.rsqrt %22 : vector<16x1xf32>
    %24 = vector.broadcast %23 : vector<16x1xf32> to vector<16x32xf32>
    %25 = arith.mulf %20, %24 : vector<16x32xf32>
    %c0_12 = arith.constant 0 : index
    %c0_13 = arith.constant 0 : index
    %26 = vector.load %arg5[%c0_12, %c0_13] : memref<1x32xf32, #tpu.memory_space<vmem>>, vector<1x32xf32>
    %27 = vector.broadcast %26 : vector<1x32xf32> to vector<16x32xf32>
    %28 = arith.mulf %25, %27 : vector<16x32xf32>
    %c0_14 = arith.constant 0 : index
    %c0_15 = arith.constant 0 : index
    %29 = vector.load %arg6[%c0_14, %c0_15] : memref<1x32xf32, #tpu.memory_space<vmem>>, vector<1x32xf32>
    %30 = vector.broadcast %29 : vector<1x32xf32> to vector<16x32xf32>
    %31 = arith.addf %28, %30 : vector<16x32xf32>
    %c0_16 = arith.constant 0 : index
    %c0_17 = arith.constant 0 : index
    %32 = vector.load %arg7[%c0_16, %c0_17] : memref<16x32xf32, #tpu.memory_space<vmem>>, vector<16x32xf32>
    tpu.vector_store %arg7[%c0_16, %c0_17], %31 {strides = array<i32>} : memref<16x32xf32, #tpu.memory_space<vmem>>, vector<16x32xf32>,
    return
  }
  func.func @transform_0(%arg0: i32) -> (i32, i32) {
    %c0_i32 = arith.constant 0 : i32
    %c0_i32_0 = arith.constant 0 : i32
    return %arg0, %c0_i32 : i32, i32
  }
  func.func @transform_1(%arg0: i32) -> (i32, i32) {
    %c0_i32 = arith.constant 0 : i32
    %c0_i32_0 = arith.constant 0 : i32
    %c0_i32_1 = arith.constant 0 : i32
    return %c0_i32, %c0_i32_0 : i32, i32
  }
  func.func @transform_2(%arg0: i32) -> (i32, i32) {
    %c0_i32 = arith.constant 0 : i32
    %c0_i32_0 = arith.constant 0 : i32
    %c0_i32_1 = arith.constant 0 : i32
    return %c0_i32, %c0_i32_0 : i32, i32
  }
  func.func @transform_3(%arg0: i32) -> (i32, i32) {
    %c0_i32 = arith.constant 0 : i32
    %c0_i32_0 = arith.constant 0 : i32
    return %arg0, %c0_i32 : i32, i32
  }
  func.func @transform_4(%arg0: i32) -> (i32, i32) {
    %c0_i32 = arith.constant 0 : i32
    %c0_i32_0 = arith.constant 0 : i32
    %c0_i32_1 = arith.constant 0 : i32
    return %c0_i32, %c0_i32_0 : i32, i32
  }
  func.func @transform_5(%arg0: i32) -> (i32, i32) {
    %c0_i32 = arith.constant 0 : i32
    %c0_i32_0 = arith.constant 0 : i32
    %c0_i32_1 = arith.constant 0 : i32
    return %c0_i32, %c0_i32_0 : i32, i32
  }
  func.func @transform_6(%arg0: i32) -> (i32, i32) {
    %c0_i32 = arith.constant 0 : i32
    %c0_i32_0 = arith.constant 0 : i32
    return %arg0, %c0_i32 : i32, i32
  }
}

module attributes {stable_mosaic.version = 11 : i64} {
  func.func @_linear_nobias_kernel(%arg0: i32, %arg1: memref<16x32xf32, #tpu.memory_space<vmem>>, %arg2: memref<32x80xf32, #tpu.memory_space<vmem>>, %arg3: memref<16x80xf32, #tpu.memory_space<vmem>>) attributes {dimension_semantics = [#tpu.dimension_semantics<parallel>], iteration_bounds = array<i64: 1>, scalar_prefetch = 0 : i64, scratch_operands = 0 : i64, tpu.core_type = #tpu.core_type<tc>, window_params = [{transform_indices = @transform_0, window_bounds = array<i64: 16, 32>}, {pipeline_mode = #tpu.pipeline_mode<synchronous>, transform_indices = @transform_1, window_bounds = array<i64: 32, 80>}, {transform_indices = @transform_2, window_bounds = array<i64: 16, 80>}]} {
    %c0 = arith.constant 0 : index
    %c0_0 = arith.constant 0 : index
    %0 = vector.load %arg1[%c0, %c0_0] : memref<16x32xf32, #tpu.memory_space<vmem>>, vector<16x32xf32>
    %c0_1 = arith.constant 0 : index
    %c0_2 = arith.constant 0 : index
    %1 = vector.load %arg2[%c0_1, %c0_2] : memref<32x80xf32, #tpu.memory_space<vmem>>, vector<32x80xf32>
    %cst = arith.constant dense<0.000000e+00> : vector<16x80xf32>
    %2 = tpu.matmul %0, %1, %cst {dimension_numbers = #tpu.dot_dimension_numbers<[1], [0], [0], [1], [0, 0, 1, 1], [], []>} : vector<16x32xf32>, vector<32x80xf32>, vector<16x80xf32> -> vector<16x80xf32>
    %c0_3 = arith.constant 0 : index
    %c0_4 = arith.constant 0 : index
    %3 = vector.load %arg3[%c0_3, %c0_4] : memref<16x80xf32, #tpu.memory_space<vmem>>, vector<16x80xf32>
    tpu.vector_store %arg3[%c0_3, %c0_4], %2 {strides = array<i32>} : memref<16x80xf32, #tpu.memory_space<vmem>>, vector<16x80xf32>,
    return
  }
  func.func @transform_0(%arg0: i32) -> (i32, i32) {
    %c0_i32 = arith.constant 0 : i32
    %c0_i32_0 = arith.constant 0 : i32
    return %arg0, %c0_i32 : i32, i32
  }
  func.func @transform_1(%arg0: i32) -> (i32, i32) {
    %c0_i32 = arith.constant 0 : i32
    %c0_i32_0 = arith.constant 0 : i32
    %c0_i32_1 = arith.constant 0 : i32
    return %c0_i32, %c0_i32_0 : i32, i32
  }
  func.func @transform_2(%arg0: i32) -> (i32, i32) {
    %c0_i32 = arith.constant 0 : i32
    %c0_i32_0 = arith.constant 0 : i32
    return %arg0, %c0_i32 : i32, i32
  }
}

module attributes {stable_mosaic.version = 11 : i64} {
  func.func @_linear_nobias_kernel(%arg0: i32, %arg1: memref<12x32xf32, #tpu.memory_space<vmem>>, %arg2: memref<32x160xf32, #tpu.memory_space<vmem>>, %arg3: memref<12x160xf32, #tpu.memory_space<vmem>>) attributes {dimension_semantics = [#tpu.dimension_semantics<parallel>], iteration_bounds = array<i64: 1>, scalar_prefetch = 0 : i64, scratch_operands = 0 : i64, tpu.core_type = #tpu.core_type<tc>, window_params = [{transform_indices = @transform_0, window_bounds = array<i64: 12, 32>}, {pipeline_mode = #tpu.pipeline_mode<synchronous>, transform_indices = @transform_1, window_bounds = array<i64: 32, 160>}, {transform_indices = @transform_2, window_bounds = array<i64: 12, 160>}]} {
    %c0 = arith.constant 0 : index
    %c0_0 = arith.constant 0 : index
    %0 = vector.load %arg1[%c0, %c0_0] : memref<12x32xf32, #tpu.memory_space<vmem>>, vector<12x32xf32>
    %c0_1 = arith.constant 0 : index
    %c0_2 = arith.constant 0 : index
    %1 = vector.load %arg2[%c0_1, %c0_2] : memref<32x160xf32, #tpu.memory_space<vmem>>, vector<32x160xf32>
    %cst = arith.constant dense<0.000000e+00> : vector<12x160xf32>
    %2 = tpu.matmul %0, %1, %cst {dimension_numbers = #tpu.dot_dimension_numbers<[1], [0], [0], [1], [0, 0, 1, 1], [], []>} : vector<12x32xf32>, vector<32x160xf32>, vector<12x160xf32> -> vector<12x160xf32>
    %c0_3 = arith.constant 0 : index
    %c0_4 = arith.constant 0 : index
    %3 = vector.load %arg3[%c0_3, %c0_4] : memref<12x160xf32, #tpu.memory_space<vmem>>, vector<12x160xf32>
    tpu.vector_store %arg3[%c0_3, %c0_4], %2 {strides = array<i32>} : memref<12x160xf32, #tpu.memory_space<vmem>>, vector<12x160xf32>,
    return
  }
  func.func @transform_0(%arg0: i32) -> (i32, i32) {
    %c0_i32 = arith.constant 0 : i32
    %c0_i32_0 = arith.constant 0 : i32
    return %arg0, %c0_i32 : i32, i32
  }
  func.func @transform_1(%arg0: i32) -> (i32, i32) {
    %c0_i32 = arith.constant 0 : i32
    %c0_i32_0 = arith.constant 0 : i32
    %c0_i32_1 = arith.constant 0 : i32
    return %c0_i32, %c0_i32_0 : i32, i32
  }
  func.func @transform_2(%arg0: i32) -> (i32, i32) {
    %c0_i32 = arith.constant 0 : i32
    %c0_i32_0 = arith.constant 0 : i32
    return %arg0, %c0_i32 : i32, i32
  }
}

module attributes {stable_mosaic.version = 11 : i64} {
  func.func @_ipa_attn_kernel(%arg0: i32, %arg1: memref<8x8x22xf32, #tpu.memory_space<vmem>>, %arg2: memref<8x6x22xf32, #tpu.memory_space<vmem>>, %arg3: memref<8x6x20xf32, #tpu.memory_space<vmem>>, %arg4: memref<8x8x20xf32, #tpu.memory_space<vmem>>) attributes {dimension_semantics = [#tpu.dimension_semantics<parallel>], iteration_bounds = array<i64: 1>, scalar_prefetch = 0 : i64, scratch_operands = 0 : i64, tpu.core_type = #tpu.core_type<tc>, window_params = [{transform_indices = @transform_0, window_bounds = array<i64: 8, 8, 22>}, {transform_indices = @transform_1, window_bounds = array<i64: 8, 6, 22>}, {transform_indices = @transform_2, window_bounds = array<i64: 8, 6, 20>}, {transform_indices = @transform_3, window_bounds = array<i64: 8, 8, 20>}]} {
    %c0 = arith.constant 0 : index
    %c0_0 = arith.constant 0 : index
    %c0_1 = arith.constant 0 : index
    %0 = vector.load %arg1[%c0, %c0_0, %c0_1] : memref<8x8x22xf32, #tpu.memory_space<vmem>>, vector<8x8x22xf32>
    %c0_2 = arith.constant 0 : index
    %c0_3 = arith.constant 0 : index
    %c0_4 = arith.constant 0 : index
    %1 = vector.load %arg2[%c0_2, %c0_3, %c0_4] : memref<8x6x22xf32, #tpu.memory_space<vmem>>, vector<8x6x22xf32>
    "tpu.trace_start"() <{level = 10 : i32, message = "bid,bjd->bij"}> : () -> ()
    %cst = arith.constant dense<0.000000e+00> : vector<8x8x6xf32>
    %2 = tpu.matmul %0, %1, %cst {dimension_numbers = #tpu.dot_dimension_numbers<[2], [2], [1], [1], [0, 0, 0, 1, 1, 1], [0], [0]>} : vector<8x8x22xf32>, vector<8x6x22xf32>, vector<8x8x6xf32> -> vector<8x8x6xf32>
    "tpu.trace_stop"() : () -> ()
    %cst_5 = arith.constant dense<0xFF800000> : vector<8x8xf32>
    %3 = vector.multi_reduction <maximumf>, %2, %cst_5 [2] : vector<8x8x6xf32> to vector<8x8xf32>
    %4 = vector.shape_cast %3 : vector<8x8xf32> to vector<8x8x1xf32>
    %5 = vector.broadcast %4 : vector<8x8x1xf32> to vector<8x8x6xf32>
    %6 = arith.subf %2, %5 : vector<8x8x6xf32>
    %7 = math.exp %6 : vector<8x8x6xf32>
    %cst_6 = arith.constant dense<0.000000e+00> : vector<8x8xf32>
    %8 = vector.multi_reduction <add>, %7, %cst_6 [2] : vector<8x8x6xf32> to vector<8x8xf32>
    %9 = vector.shape_cast %8 : vector<8x8xf32> to vector<8x8x1xf32>
    %10 = vector.broadcast %9 : vector<8x8x1xf32> to vector<8x8x6xf32>
    %11 = arith.divf %7, %10 : vector<8x8x6xf32>
    %c0_7 = arith.constant 0 : index
    %c0_8 = arith.constant 0 : index
    %c0_9 = arith.constant 0 : index
    %12 = vector.load %arg3[%c0_7, %c0_8, %c0_9] : memref<8x6x20xf32, #tpu.memory_space<vmem>>, vector<8x6x20xf32>
    "tpu.trace_start"() <{level = 10 : i32, message = "bij,bjd->bid"}> : () -> ()
    %cst_10 = arith.constant dense<0.000000e+00> : vector<8x8x20xf32>
    %13 = tpu.matmul %11, %12, %cst_10 {dimension_numbers = #tpu.dot_dimension_numbers<[2], [1], [1], [2], [0, 0, 0, 1, 1, 2], [0], [0]>} : vector<8x8x6xf32>, vector<8x6x20xf32>, vector<8x8x20xf32> -> vector<8x8x20xf32>
    "tpu.trace_stop"() : () -> ()
    %c0_11 = arith.constant 0 : index
    %c0_12 = arith.constant 0 : index
    %c0_13 = arith.constant 0 : index
    %14 = vector.load %arg4[%c0_11, %c0_12, %c0_13] : memref<8x8x20xf32, #tpu.memory_space<vmem>>, vector<8x8x20xf32>
    tpu.vector_store %arg4[%c0_11, %c0_12, %c0_13], %13 {strides = array<i32>} : memref<8x8x20xf32, #tpu.memory_space<vmem>>, vector<8x8x20xf32>,
    return
  }
  func.func @transform_0(%arg0: i32) -> (i32, i32, i32) {
    %c0_i32 = arith.constant 0 : i32
    %c0_i32_0 = arith.constant 0 : i32
    %c0_i32_1 = arith.constant 0 : i32
    return %arg0, %c0_i32, %c0_i32_0 : i32, i32, i32
  }
  func.func @transform_1(%arg0: i32) -> (i32, i32, i32) {
    %c0_i32 = arith.constant 0 : i32
    %c0_i32_0 = arith.constant 0 : i32
    %c0_i32_1 = arith.constant 0 : i32
    return %arg0, %c0_i32, %c0_i32_0 : i32, i32, i32
  }
  func.func @transform_2(%arg0: i32) -> (i32, i32, i32) {
    %c0_i32 = arith.constant 0 : i32
    %c0_i32_0 = arith.constant 0 : i32
    %c0_i32_1 = arith.constant 0 : i32
    return %arg0, %c0_i32, %c0_i32_0 : i32, i32, i32
  }
  func.func @transform_3(%arg0: i32) -> (i32, i32, i32) {
    %c0_i32 = arith.constant 0 : i32
    %c0_i32_0 = arith.constant 0 : i32
    %c0_i32_1 = arith.constant 0 : i32
    return %arg0, %c0_i32, %c0_i32_0 : i32, i32, i32
  }
}

module attributes {stable_mosaic.version = 11 : i64} {
  func.func @_ff_add_ln_kernel(%arg0: i32, %arg1: memref<16x32xf32, #tpu.memory_space<vmem>>, %arg2: memref<32x64xf32, #tpu.memory_space<vmem>>, %arg3: memref<1x64xf32, #tpu.memory_space<vmem>>, %arg4: memref<64x32xf32, #tpu.memory_space<vmem>>, %arg5: memref<1x32xf32, #tpu.memory_space<vmem>>, %arg6: memref<1x32xf32, #tpu.memory_space<vmem>>, %arg7: memref<1x32xf32, #tpu.memory_space<vmem>>, %arg8: memref<16x32xf32, #tpu.memory_space<vmem>>) attributes {dimension_semantics = [#tpu.dimension_semantics<parallel>], iteration_bounds = array<i64: 1>, scalar_prefetch = 0 : i64, scratch_operands = 0 : i64, tpu.core_type = #tpu.core_type<tc>, window_params = [{transform_indices = @transform_0, window_bounds = array<i64: 16, 32>}, {pipeline_mode = #tpu.pipeline_mode<synchronous>, transform_indices = @transform_1, window_bounds = array<i64: 32, 64>}, {pipeline_mode = #tpu.pipeline_mode<synchronous>, transform_indices = @transform_2, window_bounds = array<i64: 1, 64>}, {pipeline_mode = #tpu.pipeline_mode<synchronous>, transform_indices = @transform_3, window_bounds = array<i64: 64, 32>}, {pipeline_mode = #tpu.pipeline_mode<synchronous>, transform_indices = @transform_4, window_bounds = array<i64: 1, 32>}, {pipeline_mode = #tpu.pipeline_mode<synchronous>, transform_indices = @transform_5, window_bounds = array<i64: 1, 32>}, {pipeline_mode = #tpu.pipeline_mode<synchronous>, transform_indices = @transform_6, window_bounds = array<i64: 1, 32>}, {transform_indices = @transform_7, window_bounds = array<i64: 16, 32>}]} {
    %c0 = arith.constant 0 : index
    %c0_0 = arith.constant 0 : index
    %0 = vector.load %arg1[%c0, %c0_0] : memref<16x32xf32, #tpu.memory_space<vmem>>, vector<16x32xf32>
    %c0_1 = arith.constant 0 : index
    %c0_2 = arith.constant 0 : index
    %1 = vector.load %arg2[%c0_1, %c0_2] : memref<32x64xf32, #tpu.memory_space<vmem>>, vector<32x64xf32>
    %cst = arith.constant dense<0.000000e+00> : vector<16x64xf32>
    %2 = tpu.matmul %0, %1, %cst {dimension_numbers = #tpu.dot_dimension_numbers<[1], [0], [0], [1], [0, 0, 1, 1], [], []>} : vector<16x32xf32>, vector<32x64xf32>, vector<16x64xf32> -> vector<16x64xf32>
    %c0_3 = arith.constant 0 : index
    %c0_4 = arith.constant 0 : index
    %3 = vector.load %arg3[%c0_3, %c0_4] : memref<1x64xf32, #tpu.memory_space<vmem>>, vector<1x64xf32>
    %4 = vector.broadcast %3 : vector<1x64xf32> to vector<16x64xf32>
    %5 = arith.addf %2, %4 : vector<16x64xf32>
    %cst_5 = arith.constant 0.000000e+00 : f32
    %6 = vector.broadcast %cst_5 : f32 to vector<16x64xf32>
    %7 = arith.maximumf %5, %6 : vector<16x64xf32>
    %c0_6 = arith.constant 0 : index
    %c0_7 = arith.constant 0 : index
    %8 = vector.load %arg4[%c0_6, %c0_7] : memref<64x32xf32, #tpu.memory_space<vmem>>, vector<64x32xf32>
    %cst_8 = arith.constant dense<0.000000e+00> : vector<16x32xf32>
    %9 = tpu.matmul %7, %8, %cst_8 {dimension_numbers = #tpu.dot_dimension_numbers<[1], [0], [0], [1], [0, 0, 1, 1], [], []>} : vector<16x64xf32>, vector<64x32xf32>, vector<16x32xf32> -> vector<16x32xf32>
    %c0_9 = arith.constant 0 : index
    %c0_10 = arith.constant 0 : index
    %10 = vector.load %arg5[%c0_9, %c0_10] : memref<1x32xf32, #tpu.memory_space<vmem>>, vector<1x32xf32>
    %11 = vector.broadcast %10 : vector<1x32xf32> to vector<16x32xf32>
    %12 = arith.addf %9, %11 : vector<16x32xf32>
    %13 = arith.addf %0, %12 : vector<16x32xf32>
    %cst_11 = arith.constant dense<0.000000e+00> : vector<16xf32>
    %14 = vector.multi_reduction <add>, %13, %cst_11 [1] : vector<16x32xf32> to vector<16xf32>
    %15 = vector.shape_cast %14 : vector<16xf32> to vector<16x1xf32>
    %cst_12 = arith.constant 3.200000e+01 : f32
    %16 = vector.broadcast %cst_12 : f32 to vector<16x1xf32>
    %17 = arith.divf %15, %16 : vector<16x1xf32>
    %18 = vector.broadcast %17 : vector<16x1xf32> to vector<16x32xf32>
    %19 = arith.subf %13, %18 : vector<16x32xf32>
    %20 = arith.mulf %19, %19 : vector<16x32xf32>
    %cst_13 = arith.constant dense<0.000000e+00> : vector<16xf32>
    %21 = vector.multi_reduction <add>, %20, %cst_13 [1] : vector<16x32xf32> to vector<16xf32>
    %22 = vector.shape_cast %21 : vector<16xf32> to vector<16x1xf32>
    %cst_14 = arith.constant 3.200000e+01 : f32
    %23 = vector.broadcast %cst_14 : f32 to vector<16x1xf32>
    %24 = arith.divf %22, %23 : vector<16x1xf32>
    %25 = vector.broadcast %17 : vector<16x1xf32> to vector<16x32xf32>
    %26 = arith.subf %13, %25 : vector<16x32xf32>
    %cst_15 = arith.constant 9.99999974E-6 : f32
    %27 = vector.broadcast %cst_15 : f32 to vector<16x1xf32>
    %28 = arith.addf %24, %27 : vector<16x1xf32>
    %29 = math.rsqrt %28 : vector<16x1xf32>
    %30 = vector.broadcast %29 : vector<16x1xf32> to vector<16x32xf32>
    %31 = arith.mulf %26, %30 : vector<16x32xf32>
    %c0_16 = arith.constant 0 : index
    %c0_17 = arith.constant 0 : index
    %32 = vector.load %arg6[%c0_16, %c0_17] : memref<1x32xf32, #tpu.memory_space<vmem>>, vector<1x32xf32>
    %33 = vector.broadcast %32 : vector<1x32xf32> to vector<16x32xf32>
    %34 = arith.mulf %31, %33 : vector<16x32xf32>
    %c0_18 = arith.constant 0 : index
    %c0_19 = arith.constant 0 : index
    %35 = vector.load %arg7[%c0_18, %c0_19] : memref<1x32xf32, #tpu.memory_space<vmem>>, vector<1x32xf32>
    %36 = vector.broadcast %35 : vector<1x32xf32> to vector<16x32xf32>
    %37 = arith.addf %34, %36 : vector<16x32xf32>
    %c0_20 = arith.constant 0 : index
    %c0_21 = arith.constant 0 : index
    %38 = vector.load %arg8[%c0_20, %c0_21] : memref<16x32xf32, #tpu.memory_space<vmem>>, vector<16x32xf32>
    tpu.vector_store %arg8[%c0_20, %c0_21], %37 {strides = array<i32>} : memref<16x32xf32, #tpu.memory_space<vmem>>, vector<16x32xf32>,
    return
  }
  func.func @transform_0(%arg0: i32) -> (i32, i32) {
    %c0_i32 = arith.constant 0 : i32
    %c0_i32_0 = arith.constant 0 : i32
    return %arg0, %c0_i32 : i32, i32
  }
  func.func @transform_1(%arg0: i32) -> (i32, i32) {
    %c0_i32 = arith.constant 0 : i32
    %c0_i32_0 = arith.constant 0 : i32
    %c0_i32_1 = arith.constant 0 : i32
    return %c0_i32, %c0_i32_0 : i32, i32
  }
  func.func @transform_2(%arg0: i32) -> (i32, i32) {
    %c0_i32 = arith.constant 0 : i32
    %c0_i32_0 = arith.constant 0 : i32
    %c0_i32_1 = arith.constant 0 : i32
    return %c0_i32, %c0_i32_0 : i32, i32
  }
  func.func @transform_3(%arg0: i32) -> (i32, i32) {
    %c0_i32 = arith.constant 0 : i32
    %c0_i32_0 = arith.constant 0 : i32
    %c0_i32_1 = arith.constant 0 : i32
    return %c0_i32, %c0_i32_0 : i32, i32
  }
  func.func @transform_4(%arg0: i32) -> (i32, i32) {
    %c0_i32 = arith.constant 0 : i32
    %c0_i32_0 = arith.constant 0 : i32
    %c0_i32_1 = arith.constant 0 : i32
    return %c0_i32, %c0_i32_0 : i32, i32
  }
  func.func @transform_5(%arg0: i32) -> (i32, i32) {
    %c0_i32 = arith.constant 0 : i32
    %c0_i32_0 = arith.constant 0 : i32
    %c0_i32_1 = arith.constant 0 : i32
    return %c0_i32, %c0_i32_0 : i32, i32
  }
  func.func @transform_6(%arg0: i32) -> (i32, i32) {
    %c0_i32 = arith.constant 0 : i32
    %c0_i32_0 = arith.constant 0 : i32
    %c0_i32_1 = arith.constant 0 : i32
    return %c0_i32, %c0_i32_0 : i32, i32
  }
  func.func @transform_7(%arg0: i32) -> (i32, i32) {
    %c0_i32 = arith.constant 0 : i32
    %c0_i32_0 = arith.constant 0 : i32
    return %arg0, %c0_i32 : i32, i32
  }
}

</mosaic_0001>

<llo_original>
// kernel: neg.43
$region0: #{neg.43}
  #allocation0 [shape = 's32[1]{0}', space=sflag, size = 0x4, scoped, tag = 'scoped memory for neg.43']
  %s0 = inlined_call_operand.vmem [shape: f32[2,8,4], index: 0, kind: input, shape index: {}]
  %s1 = inlined_call_operand.vmem [shape: f32[2,8,4], index: 1, kind: output, shape index: {}]
  %v2 = vld [vmem:[%s0] sm:$0xf]
  %3 = xla_tuple %v2
  %4 = xla_tuple %3
  %v5 = vxor.u32 %v2, 2147483648
  %6 = xla_tuple %v5
  %7 = vst [vmem:[%s1] sm:$0xf] %v5
  %s8 = scalar_lea.vmem %s0, 4
  %v9 = vld [vmem:[%s8] sm:$0xf]
  %10 = xla_tuple %v9
  %11 = xla_tuple %10
  %v12 = vxor.u32 %v9, 2147483648
  %13 = xla_tuple %v12
  %s14 = scalar_lea.vmem %s1, 4
  %15 = vst [vmem:[%s14] sm:$0xf] %v12

// kernel: neg.40
$region0: #{neg.40}
  #allocation0 [shape = 's32[1]{0}', space=sflag, size = 0x4, scoped, tag = 'scoped memory for neg.40']
  %s0 = inlined_call_operand.vmem [shape: f32[2,4,8], index: 0, kind: input, shape index: {}]
  %s1 = inlined_call_operand.vmem [shape: f32[2,4,8], index: 1, kind: output, shape index: {}]
  %v2 = vld [vmem:[%s0] sm:$0xf]
  %3 = xla_tuple %v2
  %4 = xla_tuple %3
  %v5 = vxor.u32 %v2, 2147483648
  %6 = xla_tuple %v5
  %7 = vst [vmem:[%s1] sm:$0xf] %v5
  %s8 = scalar_lea.vmem %s0, 4
  %v9 = vld [vmem:[%s8] sm:$0xf]
  %10 = xla_tuple %v9
  %11 = xla_tuple %10
  %v12 = vxor.u32 %v9, 2147483648
  %13 = xla_tuple %v12
  %s14 = scalar_lea.vmem %s1, 4
  %15 = vst [vmem:[%s14] sm:$0xf] %v12

// kernel: decoder_layer_forward.8
$region0: #{decoder_layer_forward.8}
  #allocation0 [shape = 'u32[]', space=smem, size = 0x4, offset = 0x4, fixed_abs, tag = 'smem constant byte address 0x4 - core index']
  #allocation1 [shape = 'u32[144,128]{1,0:T(1,128)}', space=vmem, size = 0x12000, scoped, tag = 'internal scratch']
  %s0 = inlined_call_operand.vmem [shape: f32[16,32], index: 0, kind: input, shape index: {}]
  %s1 = inlined_call_operand.vmem [shape: f32[32,240], index: 1, kind: input, shape index: {}]
  %s2 = inlined_call_operand.vmem [shape: f32[16,240], index: 2, kind: output, shape index: {}]
  %s3 = sld [smem:[#allocation0]]
  $region18: #{decoder_layer_forward.8} parent=0
    _
  %s5 = ssub.s32 1, %s3
  %s6 = scalar_select 0, %s5, %s3
  // Predicated region
  $region2: #{decoder_layer_forward.8} parent=0 // pred_check
    _
  $region3: #{decoder_layer_forward.8} parent=0 // pred_check_branch
    %8 = sbr.rel (0) target = $region5
  $region4: #{decoder_layer_forward.8} parent=0 // pred_region
    _
  $region5: #{decoder_layer_forward.8} parent=0 // pred_fallthru
    _
  // Predicated region
  $region6: #{decoder_layer_forward.8} parent=0 // pred_check
    _
  $region7: #{decoder_layer_forward.8} parent=0 // pred_check_branch
    %10 = sbr.rel (0) target = $region9
  $region8: #{decoder_layer_forward.8} parent=0 // pred_region
    _
  $region9: #{decoder_layer_forward.8} parent=0 // pred_fallthru
    _
  %v11 = vld [vmem:[%s0] sm:$0xff]
  %v12 = vld [vmem:[%s0 + $0x8] sm:$0xff]
  %v13 = vld [vmem:[%s1] sm:$0xff]
  %v14 = vld [vmem:[%s1 + $0x8] sm:$0xff]
  %v15 = vld [vmem:[%s1 + $0x10] sm:$0xff]
  %v16 = vld [vmem:[%s1 + $0x18] sm:$0xff]
  %v17 = vld [vmem:[%s1 + $0x20] sm:$0xff]
  %v18 = vld [vmem:[%s1 + $0x28] sm:$0xff]
  %v19 = vld [vmem:[%s1 + $0x30] sm:$0xff]
  %v20 = vld [vmem:[%s1 + $0x38] sm:$0xff]
  %vm21 = vcmask 261120
  %v23 = vsel %vm21, %v11, 0
  %v26 = vsel %vm21, %v12, 0
  %28 = vmatprep.subr.mxu0 %v14
  %29 = vmatpush1.msra.mxu0 %v13
  %30 = vmatprep.subr.mxu0 %v16
  %31 = vmatpush1.msra.mxu0 %v15
  %32 = vmatprep.subr.mxu0 %v18
  %33 = vmatpush1.msra.mxu0 %v17
  %34 = vmatprep.subr.mxu0 %v20
  %35 = vmatpush1.msra.mxu0 %v19
  %36 = vmatprep.subr.mxu0 0.0
  %37 = vmatpush1.msra.mxu0 0.0
  %38 = vmatprep.subr.mxu0 0.0
  %39 = vmatpush1.msra.mxu0 0.0
  %40 = vmatprep.subr.mxu0 0.0
  %41 = vmatpush1.msra.mxu0 0.0
  %42 = vmatprep.subr.mxu0 0.0
  %43 = vmatpush1.msra.mxu0 0.0
  %44 = vmatprep.subr.mxu0 0.0
  %45 = vmatpush1.msra.mxu0 0.0
  %46 = vmatprep.subr.mxu0 0.0
  %47 = vmatpush1.msra.mxu0 0.0
  %48 = vmatprep.subr.mxu0 0.0
  %49 = vmatpush1.msra.mxu0 0.0
  %50 = vmatprep.subr.mxu0 0.0
  %51 = vmatpush1.msra.mxu0 0.0
  %52 = vmatprep.subr.mxu0 0.0
  %53 = vmatpush1.msra.mxu0 0.0
  %54 = vmatprep.subr.mxu0 0.0
  %55 = vmatpush1.msra.mxu0 0.0
  %56 = vmatprep.subr.mxu0 0.0
  %57 = vmatpush1.msra.mxu0 0.0
  %58 = vmatprep.subr.mxu0 0.0
  %59 = vmatpush1.msra.mxu0 0.0
  %60 = vmatprep.subr.mxu0 0.0
  %61 = vmatpush1.msra.mxu0 0.0
  %62 = vmatprep.subr.mxu0 0.0
  %63 = vmatpush1.msra.mxu0 0.0
  %64 = vmatprep.subr.mxu0 0.0
  %65 = vmatpush1.msra.mxu0 0.0
  %66 = vmatprep.subr.mxu0 0.0
  %67 = vmatpush1.msra.mxu0 0.0
  %68 = vmatprep.subr.mxu0 0.0
  %69 = vmatpush1.msra.mxu0 0.0
  %70 = vmatprep.subr.mxu0 0.0
  %71 = vmatpush1.msra.mxu0 0.0
  %72 = vmatprep.subr.mxu0 0.0
  %73 = vmatpush1.msra.mxu0 0.0
  %74 = vmatprep.subr.mxu0 0.0
  %75 = vmatpush1.msra.mxu0 0.0
  %76 = vmatprep.subr.mxu0 0.0
  %77 = vmatpush1.msra.mxu0 0.0
  %78 = vmatprep.subr.mxu0 0.0
  %79 = vmatpush1.msra.mxu0 0.0
  %80 = vmatprep.subr.mxu0 0.0
  %81 = vmatpush1.msra.mxu0 0.0
  %82 = vmatprep.subr.mxu0 0.0
  %83 = vmatpush1.msra.mxu0 0.0
  %84 = vmatprep.subr.mxu0 0.0
  %85 = vmatpush1.msra.mxu0 0.0
  %86 = vmatprep.subr.mxu0 0.0
  %87 = vmatpush1.msra.mxu0 0.0
  %88 = vmatprep.subr.mxu0 0.0
  %89 = vmatpush1.msra.mxu0 0.0
  %90 = vmatprep.subr.mxu0 0.0
  %91 = vmatpush1.msra.mxu0 0.0
  %92 = vmatprep.mubr.f32.mxu0 0.0
  %93 = vmatmul.mubr.f32.gmra.mrb[0].mxu0 %v23
  %v94 = vpop.f32.mrb[0].mxu0
  %v95 = vadd.f32 0.0, %v94
  %v96 = vpop.f32.mrb[0].mxu0
  %v97 = vadd.f32 0.0, %v96
  %98 = vmatprep.mubr.f32.mxu0 0.0
  %99 = vmatmul.mubr.f32.gmra.mrb[0].mxu0 %v26
  %v100 = vpop.f32.mrb[0].mxu0
  %v101 = vadd.f32 0.0, %v100
  %v102 = vpop.f32.mrb[0].mxu0
  %v103 = vadd.f32 0.0, %v102
  %104 = vdwg.mxu0
  %105 = vst [vmem:[%s2] sm:$0xff] %v95
  %vm106 = vcmask 916480
  %107 = vst.msk [vmem:[%s2 + $0x8] sm:$0xff] %vm106, %v97
  %108 = vst [vmem:[%s2 + $0x10] sm:$0xff] %v101
  %109 = vst.msk [vmem:[%s2 + $0x18] sm:$0xff] %vm106, %v103
  // Predicated region
  $region10: #{decoder_layer_forward.8} parent=0 // pred_check
    _
  $region11: #{decoder_layer_forward.8} parent=0 // pred_check_branch
    %111 = sbr.rel (0) target = $region13
  $region12: #{decoder_layer_forward.8} parent=0 // pred_region
    _
  $region13: #{decoder_layer_forward.8} parent=0 // pred_fallthru
    _
  // Predicated region
  $region14: #{decoder_layer_forward.8} parent=0 // pred_check
    _
  $region15: #{decoder_layer_forward.8} parent=0 // pred_check_branch
    %113 = sbr.rel (0) target = $region17
  $region16: #{decoder_layer_forward.8} parent=0 // pred_region
    _
  $region17: #{decoder_layer_forward.8} parent=0 // pred_fallthru
    _

// kernel: decoder_layer_forward.9
$region0: #{decoder_layer_forward.9}
  #allocation0 [shape = 'u32[]', space=smem, size = 0x4, offset = 0x4, fixed_abs, tag = 'smem constant byte address 0x4 - core index']
  #allocation1 [shape = 'u32[144,128]{1,0:T(1,128)}', space=vmem, size = 0x12000, scoped, tag = 'internal scratch']
  %s0 = inlined_call_operand.vmem [shape: f32[8,8,22], index: 0, kind: input, shape index: {}]
  %s1 = inlined_call_operand.vmem [shape: f32[8,8,22], index: 1, kind: input, shape index: {}]
  %s2 = inlined_call_operand.vmem [shape: f32[8,8,20], index: 2, kind: input, shape index: {}]
  %s3 = inlined_call_operand.vmem [shape: f32[8,8,20], index: 3, kind: output, shape index: {}]
  %s4 = sld [smem:[#allocation0]]
  $region22: #{decoder_layer_forward.9} parent=0
    _
  %s6 = ssub.s32 1, %s4
  %s7 = scalar_select 0, %s6, %s4
  // Predicated region
  $region2: #{decoder_layer_forward.9} parent=0 // pred_check
    _
  $region3: #{decoder_layer_forward.9} parent=0 // pred_check_branch
    %9 = sbr.rel (0) target = $region5
  $region4: #{decoder_layer_forward.9} parent=0 // pred_region
    _
  $region5: #{decoder_layer_forward.9} parent=0 // pred_fallthru
    _
  // Predicated region
  $region6: #{decoder_layer_forward.9} parent=0 // pred_check
    _
  $region7: #{decoder_layer_forward.9} parent=0 // pred_check_branch
    %11 = sbr.rel (0) target = $region9
  $region8: #{decoder_layer_forward.9} parent=0 // pred_region
    _
  $region9: #{decoder_layer_forward.9} parent=0 // pred_fallthru
    _
  // Predicated region
  $region10: #{decoder_layer_forward.9} parent=0 // pred_check
    _
  $region11: #{decoder_layer_forward.9} parent=0 // pred_check_branch
    %13 = sbr.rel (0) target = $region13
  $region12: #{decoder_layer_forward.9} parent=0 // pred_region
    _
  $region13: #{decoder_layer_forward.9} parent=0 // pred_fallthru
    _
  %v14 = vld [vmem:[%s0] sm:$0xff]
  %v15 = vld [vmem:[%s0 + $0x8] sm:$0xff]
  %v16 = vld [vmem:[%s0 + $0x10] sm:$0xff]
  %v17 = vld [vmem:[%s0 + $0x18] sm:$0xff]
  %v18 = vld [vmem:[%s0 + $0x20] sm:$0xff]
  %v19 = vld [vmem:[%s0 + $0x28] sm:$0xff]
  %v20 = vld [vmem:[%s0 + $0x30] sm:$0xff]
  %v21 = vld [vmem:[%s0 + $0x38] sm:$0xff]
  %v22 = vld [vmem:[%s1] sm:$0xff]
  %v23 = vld [vmem:[%s1 + $0x8] sm:$0xff]
  %v24 = vld [vmem:[%s1 + $0x10] sm:$0xff]
  %v25 = vld [vmem:[%s1 + $0x18] sm:$0xff]
  %v26 = vld [vmem:[%s1 + $0x20] sm:$0xff]
  %v27 = vld [vmem:[%s1 + $0x28] sm:$0xff]
  %v28 = vld [vmem:[%s1 + $0x30] sm:$0xff]
  %v29 = vld [vmem:[%s1 + $0x38] sm:$0xff]
  %vm30 = vcmask 179200
  %v32 = vsel %vm30, %v14, 0
  %v35 = vsel %vm30, %v22, 0
  %37 = vmatprep.subr.mxu0 0.0
  %38 = vmatpush1.xpose.msra.mxu0 %v35
  %39 = vmatprep.subr.mxu0 0.0
  %40 = vmatpush1.xpose.msra.mxu0 0.0
  %41 = vmatprep.subr.mxu0 0.0
  %42 = vmatpush1.xpose.msra.mxu0 0.0
  %43 = vmatprep.subr.mxu0 0.0
  %44 = vmatpush1.xpose.msra.mxu0 0.0
  %45 = vmatprep.subr.mxu0 0.0
  %46 = vmatpush1.xpose.msra.mxu0 0.0
  %47 = vmatprep.subr.mxu0 0.0
  %48 = vmatpush1.xpose.msra.mxu0 0.0
  %49 = vmatprep.subr.mxu0 0.0
  %50 = vmatpush1.xpose.msra.mxu0 0.0
  %51 = vmatprep.subr.mxu0 0.0
  %52 = vmatpush1.xpose.msra.mxu0 0.0
  %53 = vmatprep.subr.mxu0 0.0
  %54 = vmatpush1.xpose.msra.mxu0 0.0
  %55 = vmatprep.subr.mxu0 0.0
  %56 = vmatpush1.xpose.msra.mxu0 0.0
  %57 = vmatprep.subr.mxu0 0.0
  %58 = vmatpush1.xpose.msra.mxu0 0.0
  %59 = vmatprep.subr.mxu0 0.0
  %60 = vmatpush1.xpose.msra.mxu0 0.0
  %61 = vmatprep.subr.mxu0 0.0
  %62 = vmatpush1.xpose.msra.mxu0 0.0
  %63 = vmatprep.subr.mxu0 0.0
  %64 = vmatpush1.xpose.msra.mxu0 0.0
  %65 = vmatprep.subr.mxu0 0.0
  %66 = vmatpush1.xpose.msra.mxu0 0.0
  %67 = vmatprep.subr.mxu0 0.0
  %68 = vmatpush1.xpose.msra.mxu0 0.0
  %69 = vmatprep.subr.mxu0 0.0
  %70 = vmatpush1.xpose.msra.mxu0 0.0
  %71 = vmatprep.subr.mxu0 0.0
  %72 = vmatpush1.xpose.msra.mxu0 0.0
  %73 = vmatprep.subr.mxu0 0.0
  %74 = vmatpush1.xpose.msra.mxu0 0.0
  %75 = vmatprep.subr.mxu0 0.0
  %76 = vmatpush1.xpose.msra.mxu0 0.0
  %77 = vmatprep.subr.mxu0 0.0
  %78 = vmatpush1.xpose.msra.mxu0 0.0
  %79 = vmatprep.subr.mxu0 0.0
  %80 = vmatpush1.xpose.msra.mxu0 0.0
  %81 = vmatprep.subr.mxu0 0.0
  %82 = vmatpush1.xpose.msra.mxu0 0.0
  %83 = vmatprep.subr.mxu0 0.0
  %84 = vmatpush1.xpose.msra.mxu0 0.0
  %85 = vmatprep.subr.mxu0 0.0
  %86 = vmatpush1.xpose.msra.mxu0 0.0
  %87 = vmatprep.subr.mxu0 0.0
  %88 = vmatpush1.xpose.msra.mxu0 0.0
  %89 = vmatprep.subr.mxu0 0.0
  %90 = vmatpush1.xpose.msra.mxu0 0.0
  %91 = vmatprep.subr.mxu0 0.0
  %92 = vmatpush1.xpose.msra.mxu0 0.0
  %93 = vmatprep.subr.mxu0 0.0
  %94 = vmatpush1.xpose.msra.mxu0 0.0
  %95 = vmatprep.subr.mxu0 0.0
  %96 = vmatpush1.xpose.msra.mxu0 0.0
  %97 = vmatprep.subr.mxu0 0.0
  %98 = vmatpush1.xpose.msra.mxu0 0.0
  %99 = vmatprep.subr.mxu0 0.0
  %100 = vmatpush1.xpose.msra.mxu0 0.0
  %101 = vmatprep.mubr.f32.mxu0 0.0
  %102 = vmatmul.mubr.f32.gmra.mrb[0].mxu0 %v32
  %v103 = vpop.f32.mrb[0].mxu0
  %v104 = vadd.f32 0.0, %v103
  %v105 = vpop.f32.mrb[0].mxu0
  %106 = vdwg.mxu0
  %v108 = vsel %vm30, %v15, 0
  %v111 = vsel %vm30, %v23, 0
  %113 = vmatprep.subr.mxu0 0.0
  %114 = vmatpush1.xpose.msra.mxu0 %v111
  %115 = vmatprep.subr.mxu0 0.0
  %116 = vmatpush1.xpose.msra.mxu0 0.0
  %117 = vmatprep.subr.mxu0 0.0
  %118 = vmatpush1.xpose.msra.mxu0 0.0
  %119 = vmatprep.subr.mxu0 0.0
  %120 = vmatpush1.xpose.msra.mxu0 0.0
  %121 = vmatprep.subr.mxu0 0.0
  %122 = vmatpush1.xpose.msra.mxu0 0.0
  %123 = vmatprep.subr.mxu0 0.0
  %124 = vmatpush1.xpose.msra.mxu0 0.0
  %125 = vmatprep.subr.mxu0 0.0
  %126 = vmatpush1.xpose.msra.mxu0 0.0
  %127 = vmatprep.subr.mxu0 0.0
  %128 = vmatpush1.xpose.msra.mxu0 0.0
  %129 = vmatprep.subr.mxu0 0.0
  %130 = vmatpush1.xpose.msra.mxu0 0.0
  %131 = vmatprep.subr.mxu0 0.0
  %132 = vmatpush1.xpose.msra.mxu0 0.0
  %133 = vmatprep.subr.mxu0 0.0
  %134 = vmatpush1.xpose.msra.mxu0 0.0
  %135 = vmatprep.subr.mxu0 0.0
  %136 = vmatpush1.xpose.msra.mxu0 0.0
  %137 = vmatprep.subr.mxu0 0.0
  %138 = vmatpush1.xpose.msra.mxu0 0.0
  %139 = vmatprep.subr.mxu0 0.0
  %140 = vmatpush1.xpose.msra.mxu0 0.0
  %141 = vmatprep.subr.mxu0 0.0
  %142 = vmatpush1.xpose.msra.mxu0 0.0
  %143 = vmatprep.subr.mxu0 0.0
  %144 = vmatpush1.xpose.msra.mxu0 0.0
  %145 = vmatprep.subr.mxu0 0.0
  %146 = vmatpush1.xpose.msra.mxu0 0.0
  %147 = vmatprep.subr.mxu0 0.0
  %148 = vmatpush1.xpose.msra.mxu0 0.0
  %149 = vmatprep.subr.mxu0 0.0
  %150 = vmatpush1.xpose.msra.mxu0 0.0
  %151 = vmatprep.subr.mxu0 0.0
  %152 = vmatpush1.xpose.msra.mxu0 0.0
  %153 = vmatprep.subr.mxu0 0.0
  %154 = vmatpush1.xpose.msra.mxu0 0.0
  %155 = vmatprep.subr.mxu0 0.0
  %156 = vmatpush1.xpose.msra.mxu0 0.0
  %157 = vmatprep.subr.mxu0 0.0
  %158 = vmatpush1.xpose.msra.mxu0 0.0
  %159 = vmatprep.subr.mxu0 0.0
  %160 = vmatpush1.xpose.msra.mxu0 0.0
  %161 = vmatprep.subr.mxu0 0.0
  %162 = vmatpush1.xpose.msra.mxu0 0.0
  %163 = vmatprep.subr.mxu0 0.0
  %164 = vmatpush1.xpose.msra.mxu0 0.0
  %165 = vmatprep.subr.mxu0 0.0
  %166 = vmatpush1.xpose.msra.mxu0 0.0
  %167 = vmatprep.subr.mxu0 0.0
  %168 = vmatpush1.xpose.msra.mxu0 0.0
  %169 = vmatprep.subr.mxu0 0.0
  %170 = vmatpush1.xpose.msra.mxu0 0.0
  %171 = vmatprep.subr.mxu0 0.0
  %172 = vmatpush1.xpose.msra.mxu0 0.0
  %173 = vmatprep.subr.mxu0 0.0
  %174 = vmatpush1.xpose.msra.mxu0 0.0
  %175 = vmatprep.subr.mxu0 0.0
  %176 = vmatpush1.xpose.msra.mxu0 0.0
  %177 = vmatprep.mubr.f32.mxu0 0.0
  %178 = vmatmul.mubr.f32.gmra.mrb[0].mxu0 %v108
  %v179 = vpop.f32.mrb[0].mxu0
  %v180 = vadd.f32 0.0, %v179
  %v181 = vpop.f32.mrb[0].mxu0
  %182 = vdwg.mxu0
  %v184 = vsel %vm30, %v16, 0
  %v187 = vsel %vm30, %v24, 0
  %189 = vmatprep.subr.mxu0 0.0
  %190 = vmatpush1.xpose.msra.mxu0 %v187
  %191 = vmatprep.subr.mxu0 0.0
  %192 = vmatpush1.xpose.msra.mxu0 0.0
  %193 = vmatprep.subr.mxu0 0.0
  %194 = vmatpush1.xpose.msra.mxu0 0.0
  %195 = vmatprep.subr.mxu0 0.0
  %196 = vmatpush1.xpose.msra.mxu0 0.0
  %197 = vmatprep.subr.mxu0 0.0
  %198 = vmatpush1.xpose.msra.mxu0 0.0
  %199 = vmatprep.subr.mxu0 0.0
  %200 = vmatpush1.xpose.msra.mxu0 0.0
  %201 = vmatprep.subr.mxu0 0.0
  %202 = vmatpush1.xpose.msra.mxu0 0.0
  %203 = vmatprep.subr.mxu0 0.0
  %204 = vmatpush1.xpose.msra.mxu0 0.0
  %205 = vmatprep.subr.mxu0 0.0
  %206 = vmatpush1.xpose.msra.mxu0 0.0
  %207 = vmatprep.subr.mxu0 0.0
  %208 = vmatpush1.xpose.msra.mxu0 0.0
  %209 = vmatprep.subr.mxu0 0.0
  %210 = vmatpush1.xpose.msra.mxu0 0.0
  %211 = vmatprep.subr.mxu0 0.0
  %212 = vmatpush1.xpose.msra.mxu0 0.0
  %213 = vmatprep.subr.mxu0 0.0
  %214 = vmatpush1.xpose.msra.mxu0 0.0
  %215 = vmatprep.subr.mxu0 0.0
  %216 = vmatpush1.xpose.msra.mxu0 0.0
  %217 = vmatprep.subr.mxu0 0.0
  %218 = vmatpush1.xpose.msra.mxu0 0.0
  %219 = vmatprep.subr.mxu0 0.0
  %220 = vmatpush1.xpose.msra.mxu0 0.0
  %221 = vmatprep.subr.mxu0 0.0
  %222 = vmatpush1.xpose.msra.mxu0 0.0
  %223 = vmatprep.subr.mxu0 0.0
  %224 = vmatpush1.xpose.msra.mxu0 0.0
  %225 = vmatprep.subr.mxu0 0.0
  %226 = vmatpush1.xpose.msra.mxu0 0.0
  %227 = vmatprep.subr.mxu0 0.0
  %228 = vmatpush1.xpose.msra.mxu0 0.0
  %229 = vmatprep.subr.mxu0 0.0
  %230 = vmatpush1.xpose.msra.mxu0 0.0
  %231 = vmatprep.subr.mxu0 0.0
  %232 = vmatpush1.xpose.msra.mxu0 0.0
  %233 = vmatprep.subr.mxu0 0.0
  %234 = vmatpush1.xpose.msra.mxu0 0.0
  %235 = vmatprep.subr.mxu0 0.0
  %236 = vmatpush1.xpose.msra.mxu0 0.0
  %237 = vmatprep.subr.mxu0 0.0
  %238 = vmatpush1.xpose.msra.mxu0 0.0
  %239 = vmatprep.subr.mxu0 0.0
  %240 = vmatpush1.xpose.msra.mxu0 0.0
  %241 = vmatprep.subr.mxu0 0.0
  %242 = vmatpush1.xpose.msra.mxu0 0.0
  %243 = vmatprep.subr.mxu0 0.0
  %244 = vmatpush1.xpose.msra.mxu0 0.0
  %245 = vmatprep.subr.mxu0 0.0
  %246 = vmatpush1.xpose.msra.mxu0 0.0
  %247 = vmatprep.subr.mxu0 0.0
  %248 = vmatpush1.xpose.msra.mxu0 0.0
  %249 = vmatprep.subr.mxu0 0.0
  %250 = vmatpush1.xpose.msra.mxu0 0.0
  %251 = vmatprep.subr.mxu0 0.0
  %252 = vmatpush1.xpose.msra.mxu0 0.0
  %253 = vmatprep.mubr.f32.mxu0 0.0
  %254 = vmatmul.mubr.f32.gmra.mrb[0].mxu0 %v184
  %v255 = vpop.f32.mrb[0].mxu0
  %v256 = vadd.f32 0.0, %v255
  %v257 = vpop.f32.mrb[0].mxu0
  %258 = vdwg.mxu0
  %v260 = vsel %vm30, %v17, 0
  %v263 = vsel %vm30, %v25, 0
  %265 = vmatprep.subr.mxu0 0.0
  %266 = vmatpush1.xpose.msra.mxu0 %v263
  %267 = vmatprep.subr.mxu0 0.0
  %268 = vmatpush1.xpose.msra.mxu0 0.0
  %269 = vmatprep.subr.mxu0 0.0
  %270 = vmatpush1.xpose.msra.mxu0 0.0
  %271 = vmatprep.subr.mxu0 0.0
  %272 = vmatpush1.xpose.msra.mxu0 0.0
  %273 = vmatprep.subr.mxu0 0.0
  %274 = vmatpush1.xpose.msra.mxu0 0.0
  %275 = vmatprep.subr.mxu0 0.0
  %276 = vmatpush1.xpose.msra.mxu0 0.0
  %277 = vmatprep.subr.mxu0 0.0
  %278 = vmatpush1.xpose.msra.mxu0 0.0
  %279 = vmatprep.subr.mxu0 0.0
  %280 = vmatpush1.xpose.msra.mxu0 0.0
  %281 = vmatprep.subr.mxu0 0.0
  %282 = vmatpush1.xpose.msra.mxu0 0.0
  %283 = vmatprep.subr.mxu0 0.0
  %284 = vmatpush1.xpose.msra.mxu0 0.0
  %285 = vmatprep.subr.mxu0 0.0
  %286 = vmatpush1.xpose.msra.mxu0 0.0
  %287 = vmatprep.subr.mxu0 0.0
  %288 = vmatpush1.xpose.msra.mxu0 0.0
  %289 = vmatprep.subr.mxu0 0.0
  %290 = vmatpush1.xpose.msra.mxu0 0.0
  %291 = vmatprep.subr.mxu0 0.0
  %292 = vmatpush1.xpose.msra.mxu0 0.0
  %293 = vmatprep.subr.mxu0 0.0
  %294 = vmatpush1.xpose.msra.mxu0 0.0
  %295 = vmatprep.subr.mxu0 0.0
  %296 = vmatpush1.xpose.msra.mxu0 0.0
  %297 = vmatprep.subr.mxu0 0.0
  %298 = vmatpush1.xpose.msra.mxu0 0.0
  %299 = vmatprep.subr.mxu0 0.0
  %300 = vmatpush1.xpose.msra.mxu0 0.0
  %301 = vmatprep.subr.mxu0 0.0
  %302 = vmatpush1.xpose.msra.mxu0 0.0
  %303 = vmatprep.subr.mxu0 0.0
  %304 = vmatpush1.xpose.msra.mxu0 0.0
  %305 = vmatprep.subr.mxu0 0.0
  %306 = vmatpush1.xpose.msra.mxu0 0.0
  %307 = vmatprep.subr.mxu0 0.0
  %308 = vmatpush1.xpose.msra.mxu0 0.0
  %309 = vmatprep.subr.mxu0 0.0
  %310 = vmatpush1.xpose.msra.mxu0 0.0
  %311 = vmatprep.subr.mxu0 0.0
  %312 = vmatpush1.xpose.msra.mxu0 0.0
  %313 = vmatprep.subr.mxu0 0.0
  %314 = vmatpush1.xpose.msra.mxu0 0.0
  %315 = vmatprep.subr.mxu0 0.0
  %316 = vmatpush1.xpose.msra.mxu0 0.0
  %317 = vmatprep.subr.mxu0 0.0
  %318 = vmatpush1.xpose.msra.mxu0 0.0
  %319 = vmatprep.subr.mxu0 0.0
  %320 = vmatpush1.xpose.msra.mxu0 0.0
  %321 = vmatprep.subr.mxu0 0.0
  %322 = vmatpush1.xpose.msra.mxu0 0.0
  %323 = vmatprep.subr.mxu0 0.0
  %324 = vmatpush1.xpose.msra.mxu0 0.0
  %325 = vmatprep.subr.mxu0 0.0
  %326 = vmatpush1.xpose.msra.mxu0 0.0
  %327 = vmatprep.subr.mxu0 0.0
  %328 = vmatpush1.xpose.msra.mxu0 0.0
  %329 = vmatprep.mubr.f32.mxu0 0.0
  %330 = vmatmul.mubr.f32.gmra.mrb[0].mxu0 %v260
  %v331 = vpop.f32.mrb[0].mxu0
  %v332 = vadd.f32 0.0, %v331
  %v333 = vpop.f32.mrb[0].mxu0
  %334 = vdwg.mxu0
  %v336 = vsel %vm30, %v18, 0
  %v339 = vsel %vm30, %v26, 0
  %341 = vmatprep.subr.mxu0 0.0
  %342 = vmatpush1.xpose.msra.mxu0 %v339
  %343 = vmatprep.subr.mxu0 0.0
  %344 = vmatpush1.xpose.msra.mxu0 0.0
  %345 = vmatprep.subr.mxu0 0.0
  %346 = vmatpush1.xpose.msra.mxu0 0.0
  %347 = vmatprep.subr.mxu0 0.0
  %348 = vmatpush1.xpose.msra.mxu0 0.0
  %349 = vmatprep.subr.mxu0 0.0
  %350 = vmatpush1.xpose.msra.mxu0 0.0
  %351 = vmatprep.subr.mxu0 0.0
  %352 = vmatpush1.xpose.msra.mxu0 0.0
  %353 = vmatprep.subr.mxu0 0.0
  %354 = vmatpush1.xpose.msra.mxu0 0.0
  %355 = vmatprep.subr.mxu0 0.0
  %356 = vmatpush1.xpose.msra.mxu0 0.0
  %357 = vmatprep.subr.mxu0 0.0
  %358 = vmatpush1.xpose.msra.mxu0 0.0
  %359 = vmatprep.subr.mxu0 0.0
  %360 = vmatpush1.xpose.msra.mxu0 0.0
  %361 = vmatprep.subr.mxu0 0.0
  %362 = vmatpush1.xpose.msra.mxu0 0.0
  %363 = vmatprep.subr.mxu0 0.0
  %364 = vmatpush1.xpose.msra.mxu0 0.0
  %365 = vmatprep.subr.mxu0 0.0
  %366 = vmatpush1.xpose.msra.mxu0 0.0
  %367 = vmatprep.subr.mxu0 0.0
  %368 = vmatpush1.xpose.msra.mxu0 0.0
  %369 = vmatprep.subr.mxu0 0.0
  %370 = vmatpush1.xpose.msra.mxu0 0.0
  %371 = vmatprep.subr.mxu0 0.0
  %372 = vmatpush1.xpose.msra.mxu0 0.0
  %373 = vmatprep.subr.mxu0 0.0
  %374 = vmatpush1.xpose.msra.mxu0 0.0
  %375 = vmatprep.subr.mxu0 0.0
  %376 = vmatpush1.xpose.msra.mxu0 0.0
  %377 = vmatprep.subr.mxu0 0.0
  %378 = vmatpush1.xpose.msra.mxu0 0.0
  %379 = vmatprep.subr.mxu0 0.0
  %380 = vmatpush1.xpose.msra.mxu0 0.0
  %381 = vmatprep.subr.mxu0 0.0
  %382 = vmatpush1.xpose.msra.mxu0 0.0
  %383 = vmatprep.subr.mxu0 0.0
  %384 = vmatpush1.xpose.msra.mxu0 0.0
  %385 = vmatprep.subr.mxu0 0.0
  %386 = vmatpush1.xpose.msra.mxu0 0.0
  %387 = vmatprep.subr.mxu0 0.0
  %388 = vmatpush1.xpose.msra.mxu0 0.0
  %389 = vmatprep.subr.mxu0 0.0
  %390 = vmatpush1.xpose.msra.mxu0 0.0
  %391 = vmatprep.subr.mxu0 0.0
  %392 = vmatpush1.xpose.msra.mxu0 0.0
  %393 = vmatprep.subr.mxu0 0.0
  %394 = vmatpush1.xpose.msra.mxu0 0.0
  %395 = vmatprep.subr.mxu0 0.0
  %396 = vmatpush1.xpose.msra.mxu0 0.0
  %397 = vmatprep.subr.mxu0 0.0
  %398 = vmatpush1.xpose.msra.mxu0 0.0
  %399 = vmatprep.subr.mxu0 0.0
  %400 = vmatpush1.xpose.msra.mxu0 0.0
  %401 = vmatprep.subr.mxu0 0.0
  %402 = vmatpush1.xpose.msra.mxu0 0.0
  %403 = vmatprep.subr.mxu0 0.0
  %404 = vmatpush1.xpose.msra.mxu0 0.0
  %405 = vmatprep.mubr.f32.mxu0 0.0
  %406 = vmatmul.mubr.f32.gmra.mrb[0].mxu0 %v336
  %v407 = vpop.f32.mrb[0].mxu0
  %v408 = vadd.f32 0.0, %v407
  %v409 = vpop.f32.mrb[0].mxu0
  %410 = vdwg.mxu0
  %v412 = vsel %vm30, %v19, 0
  %v415 = vsel %vm30, %v27, 0
  %417 = vmatprep.subr.mxu0 0.0
  %418 = vmatpush1.xpose.msra.mxu0 %v415
  %419 = vmatprep.subr.mxu0 0.0
  %420 = vmatpush1.xpose.msra.mxu0 0.0
  %421 = vmatprep.subr.mxu0 0.0
  %422 = vmatpush1.xpose.msra.mxu0 0.0
  %423 = vmatprep.subr.mxu0 0.0
  %424 = vmatpush1.xpose.msra.mxu0 0.0
  %425 = vmatprep.subr.mxu0 0.0
  %426 = vmatpush1.xpose.msra.mxu0 0.0
  %427 = vmatprep.subr.mxu0 0.0
  %428 = vmatpush1.xpose.msra.mxu0 0.0
  %429 = vmatprep.subr.mxu0 0.0
  %430 = vmatpush1.xpose.msra.mxu0 0.0
  %431 = vmatprep.subr.mxu0 0.0
  %432 = vmatpush1.xpose.msra.mxu0 0.0
  %433 = vmatprep.subr.mxu0 0.0
  %434 = vmatpush1.xpose.msra.mxu0 0.0
  %435 = vmatprep.subr.mxu0 0.0
  %436 = vmatpush1.xpose.msra.mxu0 0.0
  %437 = vmatprep.subr.mxu0 0.0
  %438 = vmatpush1.xpose.msra.mxu0 0.0
  %439 = vmatprep.subr.mxu0 0.0
  %440 = vmatpush1.xpose.msra.mxu0 0.0
  %441 = vmatprep.subr.mxu0 0.0
  %442 = vmatpush1.xpose.msra.mxu0 0.0
  %443 = vmatprep.subr.mxu0 0.0
  %444 = vmatpush1.xpose.msra.mxu0 0.0
  %445 = vmatprep.subr.mxu0 0.0
  %446 = vmatpush1.xpose.msra.mxu0 0.0
  %447 = vmatprep.subr.mxu0 0.0
  %448 = vmatpush1.xpose.msra.mxu0 0.0
  %449 = vmatprep.subr.mxu0 0.0
  %450 = vmatpush1.xpose.msra.mxu0 0.0
  %451 = vmatprep.subr.mxu0 0.0
  %452 = vmatpush1.xpose.msra.mxu0 0.0
  %453 = vmatprep.subr.mxu0 0.0
  %454 = vmatpush1.xpose.msra.mxu0 0.0
  %455 = vmatprep.subr.mxu0 0.0
  %456 = vmatpush1.xpose.msra.mxu0 0.0
  %457 = vmatprep.subr.mxu0 0.0
  %458 = vmatpush1.xpose.msra.mxu0 0.0
  %459 = vmatprep.subr.mxu0 0.0
  %460 = vmatpush1.xpose.msra.mxu0 0.0
  %461 = vmatprep.subr.mxu0 0.0
  %462 = vmatpush1.xpose.msra.mxu0 0.0
  %463 = vmatprep.subr.mxu0 0.0
  %464 = vmatpush1.xpose.msra.mxu0 0.0
  %465 = vmatprep.subr.mxu0 0.0
  %466 = vmatpush1.xpose.msra.mxu0 0.0
  %467 = vmatprep.subr.mxu0 0.0
  %468 = vmatpush1.xpose.msra.mxu0 0.0
  %469 = vmatprep.subr.mxu0 0.0
  %470 = vmatpush1.xpose.msra.mxu0 0.0
  %471 = vmatprep.subr.mxu0 0.0
  %472 = vmatpush1.xpose.msra.mxu0 0.0
  %473 = vmatprep.subr.mxu0 0.0
  %474 = vmatpush1.xpose.msra.mxu0 0.0
  %475 = vmatprep.subr.mxu0 0.0
  %476 = vmatpush1.xpose.msra.mxu0 0.0
  %477 = vmatprep.subr.mxu0 0.0
  %478 = vmatpush1.xpose.msra.mxu0 0.0
  %479 = vmatprep.subr.mxu0 0.0
  %480 = vmatpush1.xpose.msra.mxu0 0.0
  %481 = vmatprep.mubr.f32.mxu0 0.0
  %482 = vmatmul.mubr.f32.gmra.mrb[0].mxu0 %v412
  %v483 = vpop.f32.mrb[0].mxu0
  %v484 = vadd.f32 0.0, %v483
  %v485 = vpop.f32.mrb[0].mxu0
  %486 = vdwg.mxu0
  %v488 = vsel %vm30, %v20, 0
  %v491 = vsel %vm30, %v28, 0
  %493 = vmatprep.subr.mxu0 0.0
  %494 = vmatpush1.xpose.msra.mxu0 %v491
  %495 = vmatprep.subr.mxu0 0.0
  %496 = vmatpush1.xpose.msra.mxu0 0.0
  %497 = vmatprep.subr.mxu0 0.0
  %498 = vmatpush1.xpose.msra.mxu0 0.0
  %499 = vmatprep.subr.mxu0 0.0
  %500 = vmatpush1.xpose.msra.mxu0 0.0
  %501 = vmatprep.subr.mxu0 0.0
  %502 = vmatpush1.xpose.msra.mxu0 0.0
  %503 = vmatprep.subr.mxu0 0.0
  %504 = vmatpush1.xpose.msra.mxu0 0.0
  %505 = vmatprep.subr.mxu0 0.0
  %506 = vmatpush1.xpose.msra.mxu0 0.0
  %507 = vmatprep.subr.mxu0 0.0
  %508 = vmatpush1.xpose.msra.mxu0 0.0
  %509 = vmatprep.subr.mxu0 0.0
  %510 = vmatpush1.xpose.msra.mxu0 0.0
  %511 = vmatprep.subr.mxu0 0.0
  %512 = vmatpush1.xpose.msra.mxu0 0.0
  %513 = vmatprep.subr.mxu0 0.0
  %514 = vmatpush1.xpose.msra.mxu0 0.0
  %515 = vmatprep.subr.mxu0 0.0
  %516 = vmatpush1.xpose.msra.mxu0 0.0
  %517 = vmatprep.subr.mxu0 0.0
  %518 = vmatpush1.xpose.msra.mxu0 0.0
  %519 = vmatprep.subr.mxu0 0.0
  %520 = vmatpush1.xpose.msra.mxu0 0.0
  %521 = vmatprep.subr.mxu0 0.0
  %522 = vmatpush1.xpose.msra.mxu0 0.0
  %523 = vmatprep.subr.mxu0 0.0
  %524 = vmatpush1.xpose.msra.mxu0 0.0
  %525 = vmatprep.subr.mxu0 0.0
  %526 = vmatpush1.xpose.msra.mxu0 0.0
  %527 = vmatprep.subr.mxu0 0.0
  %528 = vmatpush1.xpose.msra.mxu0 0.0
  %529 = vmatprep.subr.mxu0 0.0
  %530 = vmatpush1.xpose.msra.mxu0 0.0
  %531 = vmatprep.subr.mxu0 0.0
  %532 = vmatpush1.xpose.msra.mxu0 0.0
  %533 = vmatprep.subr.mxu0 0.0
  %534 = vmatpush1.xpose.msra.mxu0 0.0
  %535 = vmatprep.subr.mxu0 0.0
  %536 = vmatpush1.xpose.msra.mxu0 0.0
  %537 = vmatprep.subr.mxu0 0.0
  %538 = vmatpush1.xpose.msra.mxu0 0.0
  %539 = vmatprep.subr.mxu0 0.0
  %540 = vmatpush1.xpose.msra.mxu0 0.0
  %541 = vmatprep.subr.mxu0 0.0
  %542 = vmatpush1.xpose.msra.mxu0 0.0
  %543 = vmatprep.subr.mxu0 0.0
  %544 = vmatpush1.xpose.msra.mxu0 0.0
  %545 = vmatprep.subr.mxu0 0.0
  %546 = vmatpush1.xpose.msra.mxu0 0.0
  %547 = vmatprep.subr.mxu0 0.0
  %548 = vmatpush1.xpose.msra.mxu0 0.0
  %549 = vmatprep.subr.mxu0 0.0
  %550 = vmatpush1.xpose.msra.mxu0 0.0
  %551 = vmatprep.subr.mxu0 0.0
  %552 = vmatpush1.xpose.msra.mxu0 0.0
  %553 = vmatprep.subr.mxu0 0.0
  %554 = vmatpush1.xpose.msra.mxu0 0.0
  %555 = vmatprep.subr.mxu0 0.0
  %556 = vmatpush1.xpose.msra.mxu0 0.0
  %557 = vmatprep.mubr.f32.mxu0 0.0
  %558 = vmatmul.mubr.f32.gmra.mrb[0].mxu0 %v488
  %v559 = vpop.f32.mrb[0].mxu0
  %v560 = vadd.f32 0.0, %v559
  %v561 = vpop.f32.mrb[0].mxu0
  %562 = vdwg.mxu0
  %v564 = vsel %vm30, %v21, 0
  %v567 = vsel %vm30, %v29, 0
  %569 = vmatprep.subr.mxu0 0.0
  %570 = vmatpush1.xpose.msra.mxu0 %v567
  %571 = vmatprep.subr.mxu0 0.0
  %572 = vmatpush1.xpose.msra.mxu0 0.0
  %573 = vmatprep.subr.mxu0 0.0
  %574 = vmatpush1.xpose.msra.mxu0 0.0
  %575 = vmatprep.subr.mxu0 0.0
  %576 = vmatpush1.xpose.msra.mxu0 0.0
  %577 = vmatprep.subr.mxu0 0.0
  %578 = vmatpush1.xpose.msra.mxu0 0.0
  %579 = vmatprep.subr.mxu0 0.0
  %580 = vmatpush1.xpose.msra.mxu0 0.0
  %581 = vmatprep.subr.mxu0 0.0
  %582 = vmatpush1.xpose.msra.mxu0 0.0
  %583 = vmatprep.subr.mxu0 0.0
  %584 = vmatpush1.xpose.msra.mxu0 0.0
  %585 = vmatprep.subr.mxu0 0.0
  %586 = vmatpush1.xpose.msra.mxu0 0.0
  %587 = vmatprep.subr.mxu0 0.0
  %588 = vmatpush1.xpose.msra.mxu0 0.0
  %589 = vmatprep.subr.mxu0 0.0
  %590 = vmatpush1.xpose.msra.mxu0 0.0
  %591 = vmatprep.subr.mxu0 0.0
  %592 = vmatpush1.xpose.msra.mxu0 0.0
  %593 = vmatprep.subr.mxu0 0.0
  %594 = vmatpush1.xpose.msra.mxu0 0.0
  %595 = vmatprep.subr.mxu0 0.0
  %596 = vmatpush1.xpose.msra.mxu0 0.0
  %597 = vmatprep.subr.mxu0 0.0
  %598 = vmatpush1.xpose.msra.mxu0 0.0
  %599 = vmatprep.subr.mxu0 0.0
  %600 = vmatpush1.xpose.msra.mxu0 0.0
  %601 = vmatprep.subr.mxu0 0.0
  %602 = vmatpush1.xpose.msra.mxu0 0.0
  %603 = vmatprep.subr.mxu0 0.0
  %604 = vmatpush1.xpose.msra.mxu0 0.0
  %605 = vmatprep.subr.mxu0 0.0
  %606 = vmatpush1.xpose.msra.mxu0 0.0
  %607 = vmatprep.subr.mxu0 0.0
  %608 = vmatpush1.xpose.msra.mxu0 0.0
  %609 = vmatprep.subr.mxu0 0.0
  %610 = vmatpush1.xpose.msra.mxu0 0.0
  %611 = vmatprep.subr.mxu0 0.0
  %612 = vmatpush1.xpose.msra.mxu0 0.0
  %613 = vmatprep.subr.mxu0 0.0
  %614 = vmatpush1.xpose.msra.mxu0 0.0
  %615 = vmatprep.subr.mxu0 0.0
  %616 = vmatpush1.xpose.msra.mxu0 0.0
  %617 = vmatprep.subr.mxu0 0.0
  %618 = vmatpush1.xpose.msra.mxu0 0.0
  %619 = vmatprep.subr.mxu0 0.0
  %620 = vmatpush1.xpose.msra.mxu0 0.0
  %621 = vmatprep.subr.mxu0 0.0
  %622 = vmatpush1.xpose.msra.mxu0 0.0
  %623 = vmatprep.subr.mxu0 0.0
  %624 = vmatpush1.xpose.msra.mxu0 0.0
  %625 = vmatprep.subr.mxu0 0.0
  %626 = vmatpush1.xpose.msra.mxu0 0.0
  %627 = vmatprep.subr.mxu0 0.0
  %628 = vmatpush1.xpose.msra.mxu0 0.0
  %629 = vmatprep.subr.mxu0 0.0
  %630 = vmatpush1.xpose.msra.mxu0 0.0
  %631 = vmatprep.subr.mxu0 0.0
  %632 = vmatpush1.xpose.msra.mxu0 0.0
  %633 = vmatprep.mubr.f32.mxu0 0.0
  %634 = vmatmul.mubr.f32.gmra.mrb[0].mxu0 %v564
  %v635 = vpop.f32.mrb[0].mxu0
  %v636 = vadd.f32 0.0, %v635
  %v637 = vpop.f32.mrb[0].mxu0
  %638 = vdwg.mxu0
  %vm639 = vcmask 64512
  %v640 = vsel %vm639, %v104, -inf
  %641 = vmax.xlane.f32.xlu0 %v640
  %v642 = vpop.xlane.xlu0 %641
  %v643 = vsel %vm639, %v180, -inf
  %644 = vmax.xlane.f32.xlu0 %v643
  %v645 = vpop.xlane.xlu0 %644
  %v646 = vsel %vm639, %v256, -inf
  %647 = vmax.xlane.f32.xlu0 %v646
  %v648 = vpop.xlane.xlu0 %647
  %v649 = vsel %vm639, %v332, -inf
  %650 = vmax.xlane.f32.xlu0 %v649
  %v651 = vpop.xlane.xlu0 %650
  %v652 = vsel %vm639, %v408, -inf
  %653 = vmax.xlane.f32.xlu0 %v652
  %v654 = vpop.xlane.xlu0 %653
  %v655 = vsel %vm639, %v484, -inf
  %656 = vmax.xlane.f32.xlu0 %v655
  %v657 = vpop.xlane.xlu0 %656
  %v658 = vsel %vm639, %v560, -inf
  %659 = vmax.xlane.f32.xlu0 %v658
  %v660 = vpop.xlane.xlu0 %659
  %v661 = vsel %vm639, %v636, -inf
  %662 = vmax.xlane.f32.xlu0 %v661
  %v663 = vpop.xlane.xlu0 %662
  %v664 = vsub.f32 %v104, %v642
  %v665 = vsub.f32 %v180, %v645
  %v666 = vsub.f32 %v256, %v648
  %v667 = vsub.f32 %v332, %v651
  %v668 = vsub.f32 %v408, %v654
  %v669 = vsub.f32 %v484, %v657
  %v670 = vsub.f32 %v560, %v660
  %v671 = vsub.f32 %v636, %v663
  %v672 = vmul.f32 %v664, 1.442695
  %v673 = vpow.pop %v672
  %v674 = vmul.f32 %v665, 1.442695
  %v675 = vpow.pop %v674
  %v676 = vmul.f32 %v666, 1.442695
  %v677 = vpow.pop %v676
  %v678 = vmul.f32 %v667, 1.442695
  %v679 = vpow.pop %v678
  %v680 = vmul.f32 %v668, 1.442695
  %v681 = vpow.pop %v680
  %v682 = vmul.f32 %v669, 1.442695
  %v683 = vpow.pop %v682
  %v684 = vmul.f32 %v670, 1.442695
  %v685 = vpow.pop %v684
  %v686 = vmul.f32 %v671, 1.442695
  %v687 = vpow.pop %v686
  %v688 = vsel %vm639, %v673, 0.0
  %689 = vadd.xlane.f32.xlu0 %v688
  %v690 = vpop.xlane.xlu0 %689
  %v691 = vsel %vm639, %v675, 0.0
  %692 = vadd.xlane.f32.xlu0 %v691
  %v693 = vpop.xlane.xlu0 %692
  %v694 = vsel %vm639, %v677, 0.0
  %695 = vadd.xlane.f32.xlu0 %v694
  %v696 = vpop.xlane.xlu0 %695
  %v697 = vsel %vm639, %v679, 0.0
  %698 = vadd.xlane.f32.xlu0 %v697
  %v699 = vpop.xlane.xlu0 %698
  %v700 = vsel %vm639, %v681, 0.0
  %701 = vadd.xlane.f32.xlu0 %v700
  %v702 = vpop.xlane.xlu0 %701
  %v703 = vsel %vm639, %v683, 0.0
  %704 = vadd.xlane.f32.xlu0 %v703
  %v705 = vpop.xlane.xlu0 %704
  %v706 = vsel %vm639, %v685, 0.0
  %707 = vadd.xlane.f32.xlu0 %v706
  %v708 = vpop.xlane.xlu0 %707
  %v709 = vsel %vm639, %v687, 0.0
  %710 = vadd.xlane.f32.xlu0 %v709
  %v711 = vpop.xlane.xlu0 %710
  %v712 = vrcp.pop %v690
  %v713 = vmul.f32 %v673, %v712
  %v714 = vrcp.pop %v693
  %v715 = vmul.f32 %v675, %v714
  %v716 = vrcp.pop %v696
  %v717 = vmul.f32 %v677, %v716
  %v718 = vrcp.pop %v699
  %v719 = vmul.f32 %v679, %v718
  %v720 = vrcp.pop %v702
  %v721 = vmul.f32 %v681, %v720
  %v722 = vrcp.pop %v705
  %v723 = vmul.f32 %v683, %v722
  %v724 = vrcp.pop %v708
  %v725 = vmul.f32 %v685, %v724
  %v726 = vrcp.pop %v711
  %v727 = vmul.f32 %v687, %v726
  %v728 = vld [vmem:[%s2] sm:$0xff]
  %v729 = vld [vmem:[%s2 + $0x8] sm:$0xff]
  %v730 = vld [vmem:[%s2 + $0x10] sm:$0xff]
  %v731 = vld [vmem:[%s2 + $0x18] sm:$0xff]
  %v732 = vld [vmem:[%s2 + $0x20] sm:$0xff]
  %v733 = vld [vmem:[%s2 + $0x28] sm:$0xff]
  %v734 = vld [vmem:[%s2 + $0x30] sm:$0xff]
  %v735 = vld [vmem:[%s2 + $0x38] sm:$0xff]
  %v737 = vsel %vm639, %v713, 0
  %739 = vmatprep.subr.mxu0 0.0
  %740 = vmatpush1.msra.mxu0 %v728
  %741 = vmatprep.subr.mxu0 0.0
  %742 = vmatpush1.msra.mxu0 0.0
  %743 = vmatprep.subr.mxu0 0.0
  %744 = vmatpush1.msra.mxu0 0.0
  %745 = vmatprep.subr.mxu0 0.0
  %746 = vmatpush1.msra.mxu0 0.0
  %747 = vmatprep.subr.mxu0 0.0
  %748 = vmatpush1.msra.mxu0 0.0
  %749 = vmatprep.subr.mxu0 0.0
  %750 = vmatpush1.msra.mxu0 0.0
  %751 = vmatprep.subr.mxu0 0.0
  %752 = vmatpush1.msra.mxu0 0.0
  %753 = vmatprep.subr.mxu0 0.0
  %754 = vmatpush1.msra.mxu0 0.0
  %755 = vmatprep.subr.mxu0 0.0
  %756 = vmatpush1.msra.mxu0 0.0
  %757 = vmatprep.subr.mxu0 0.0
  %758 = vmatpush1.msra.mxu0 0.0
  %759 = vmatprep.subr.mxu0 0.0
  %760 = vmatpush1.msra.mxu0 0.0
  %761 = vmatprep.subr.mxu0 0.0
  %762 = vmatpush1.msra.mxu0 0.0
  %763 = vmatprep.subr.mxu0 0.0
  %764 = vmatpush1.msra.mxu0 0.0
  %765 = vmatprep.subr.mxu0 0.0
  %766 = vmatpush1.msra.mxu0 0.0
  %767 = vmatprep.subr.mxu0 0.0
  %768 = vmatpush1.msra.mxu0 0.0
  %769 = vmatprep.subr.mxu0 0.0
  %770 = vmatpush1.msra.mxu0 0.0
  %771 = vmatprep.subr.mxu0 0.0
  %772 = vmatpush1.msra.mxu0 0.0
  %773 = vmatprep.subr.mxu0 0.0
  %774 = vmatpush1.msra.mxu0 0.0
  %775 = vmatprep.subr.mxu0 0.0
  %776 = vmatpush1.msra.mxu0 0.0
  %777 = vmatprep.subr.mxu0 0.0
  %778 = vmatpush1.msra.mxu0 0.0
  %779 = vmatprep.subr.mxu0 0.0
  %780 = vmatpush1.msra.mxu0 0.0
  %781 = vmatprep.subr.mxu0 0.0
  %782 = vmatpush1.msra.mxu0 0.0
  %783 = vmatprep.subr.mxu0 0.0
  %784 = vmatpush1.msra.mxu0 0.0
  %785 = vmatprep.subr.mxu0 0.0
  %786 = vmatpush1.msra.mxu0 0.0
  %787 = vmatprep.subr.mxu0 0.0
  %788 = vmatpush1.msra.mxu0 0.0
  %789 = vmatprep.subr.mxu0 0.0
  %790 = vmatpush1.msra.mxu0 0.0
  %791 = vmatprep.subr.mxu0 0.0
  %792 = vmatpush1.msra.mxu0 0.0
  %793 = vmatprep.subr.mxu0 0.0
  %794 = vmatpush1.msra.mxu0 0.0
  %795 = vmatprep.subr.mxu0 0.0
  %796 = vmatpush1.msra.mxu0 0.0
  %797 = vmatprep.subr.mxu0 0.0
  %798 = vmatpush1.msra.mxu0 0.0
  %799 = vmatprep.subr.mxu0 0.0
  %800 = vmatpush1.msra.mxu0 0.0
  %801 = vmatprep.subr.mxu0 0.0
  %802 = vmatpush1.msra.mxu0 0.0
  %803 = vmatprep.mubr.f32.mxu0 0.0
  %804 = vmatmul.mubr.f32.gmra.mrb[0].mxu0 %v737
  %v805 = vpop.f32.mrb[0].mxu0
  %v806 = vadd.f32 0.0, %v805
  %v807 = vpop.f32.mrb[0].mxu0
  %808 = vdwg.mxu0
  %v810 = vsel %vm639, %v715, 0
  %812 = vmatprep.subr.mxu0 0.0
  %813 = vmatpush1.msra.mxu0 %v729
  %814 = vmatprep.subr.mxu0 0.0
  %815 = vmatpush1.msra.mxu0 0.0
  %816 = vmatprep.subr.mxu0 0.0
  %817 = vmatpush1.msra.mxu0 0.0
  %818 = vmatprep.subr.mxu0 0.0
  %819 = vmatpush1.msra.mxu0 0.0
  %820 = vmatprep.subr.mxu0 0.0
  %821 = vmatpush1.msra.mxu0 0.0
  %822 = vmatprep.subr.mxu0 0.0
  %823 = vmatpush1.msra.mxu0 0.0
  %824 = vmatprep.subr.mxu0 0.0
  %825 = vmatpush1.msra.mxu0 0.0
  %826 = vmatprep.subr.mxu0 0.0
  %827 = vmatpush1.msra.mxu0 0.0
  %828 = vmatprep.subr.mxu0 0.0
  %829 = vmatpush1.msra.mxu0 0.0
  %830 = vmatprep.subr.mxu0 0.0
  %831 = vmatpush1.msra.mxu0 0.0
  %832 = vmatprep.subr.mxu0 0.0
  %833 = vmatpush1.msra.mxu0 0.0
  %834 = vmatprep.subr.mxu0 0.0
  %835 = vmatpush1.msra.mxu0 0.0
  %836 = vmatprep.subr.mxu0 0.0
  %837 = vmatpush1.msra.mxu0 0.0
  %838 = vmatprep.subr.mxu0 0.0
  %839 = vmatpush1.msra.mxu0 0.0
  %840 = vmatprep.subr.mxu0 0.0
  %841 = vmatpush1.msra.mxu0 0.0
  %842 = vmatprep.subr.mxu0 0.0
  %843 = vmatpush1.msra.mxu0 0.0
  %844 = vmatprep.subr.mxu0 0.0
  %845 = vmatpush1.msra.mxu0 0.0
  %846 = vmatprep.subr.mxu0 0.0
  %847 = vmatpush1.msra.mxu0 0.0
  %848 = vmatprep.subr.mxu0 0.0
  %849 = vmatpush1.msra.mxu0 0.0
  %850 = vmatprep.subr.mxu0 0.0
  %851 = vmatpush1.msra.mxu0 0.0
  %852 = vmatprep.subr.mxu0 0.0
  %853 = vmatpush1.msra.mxu0 0.0
  %854 = vmatprep.subr.mxu0 0.0
  %855 = vmatpush1.msra.mxu0 0.0
  %856 = vmatprep.subr.mxu0 0.0
  %857 = vmatpush1.msra.mxu0 0.0
  %858 = vmatprep.subr.mxu0 0.0
  %859 = vmatpush1.msra.mxu0 0.0
  %860 = vmatprep.subr.mxu0 0.0
  %861 = vmatpush1.msra.mxu0 0.0
  %862 = vmatprep.subr.mxu0 0.0
  %863 = vmatpush1.msra.mxu0 0.0
  %864 = vmatprep.subr.mxu0 0.0
  %865 = vmatpush1.msra.mxu0 0.0
  %866 = vmatprep.subr.mxu0 0.0
  %867 = vmatpush1.msra.mxu0 0.0
  %868 = vmatprep.subr.mxu0 0.0
  %869 = vmatpush1.msra.mxu0 0.0
  %870 = vmatprep.subr.mxu0 0.0
  %871 = vmatpush1.msra.mxu0 0.0
  %872 = vmatprep.subr.mxu0 0.0
  %873 = vmatpush1.msra.mxu0 0.0
  %874 = vmatprep.subr.mxu0 0.0
  %875 = vmatpush1.msra.mxu0 0.0
  %876 = vmatprep.mubr.f32.mxu0 0.0
  %877 = vmatmul.mubr.f32.gmra.mrb[0].mxu0 %v810
  %v878 = vpop.f32.mrb[0].mxu0
  %v879 = vadd.f32 0.0, %v878
  %v880 = vpop.f32.mrb[0].mxu0
  %881 = vdwg.mxu0
  %v883 = vsel %vm639, %v717, 0
  %885 = vmatprep.subr.mxu0 0.0
  %886 = vmatpush1.msra.mxu0 %v730
  %887 = vmatprep.subr.mxu0 0.0
  %888 = vmatpush1.msra.mxu0 0.0
  %889 = vmatprep.subr.mxu0 0.0
  %890 = vmatpush1.msra.mxu0 0.0
  %891 = vmatprep.subr.mxu0 0.0
  %892 = vmatpush1.msra.mxu0 0.0
  %893 = vmatprep.subr.mxu0 0.0
  %894 = vmatpush1.msra.mxu0 0.0
  %895 = vmatprep.subr.mxu0 0.0
  %896 = vmatpush1.msra.mxu0 0.0
  %897 = vmatprep.subr.mxu0 0.0
  %898 = vmatpush1.msra.mxu0 0.0
  %899 = vmatprep.subr.mxu0 0.0
  %900 = vmatpush1.msra.mxu0 0.0
  %901 = vmatprep.subr.mxu0 0.0
  %902 = vmatpush1.msra.mxu0 0.0
  %903 = vmatprep.subr.mxu0 0.0
  %904 = vmatpush1.msra.mxu0 0.0
  %905 = vmatprep.subr.mxu0 0.0
  %906 = vmatpush1.msra.mxu0 0.0
  %907 = vmatprep.subr.mxu0 0.0
  %908 = vmatpush1.msra.mxu0 0.0
  %909 = vmatprep.subr.mxu0 0.0
  %910 = vmatpush1.msra.mxu0 0.0
  %911 = vmatprep.subr.mxu0 0.0
  %912 = vmatpush1.msra.mxu0 0.0
  %913 = vmatprep.subr.mxu0 0.0
  %914 = vmatpush1.msra.mxu0 0.0
  %915 = vmatprep.subr.mxu0 0.0
  %916 = vmatpush1.msra.mxu0 0.0
  %917 = vmatprep.subr.mxu0 0.0
  %918 = vmatpush1.msra.mxu0 0.0
  %919 = vmatprep.subr.mxu0 0.0
  %920 = vmatpush1.msra.mxu0 0.0
  %921 = vmatprep.subr.mxu0 0.0
  %922 = vmatpush1.msra.mxu0 0.0
  %923 = vmatprep.subr.mxu0 0.0
  %924 = vmatpush1.msra.mxu0 0.0
  %925 = vmatprep.subr.mxu0 0.0
  %926 = vmatpush1.msra.mxu0 0.0
  %927 = vmatprep.subr.mxu0 0.0
  %928 = vmatpush1.msra.mxu0 0.0
  %929 = vmatprep.subr.mxu0 0.0
  %930 = vmatpush1.msra.mxu0 0.0
  %931 = vmatprep.subr.mxu0 0.0
  %932 = vmatpush1.msra.mxu0 0.0
  %933 = vmatprep.subr.mxu0 0.0
  %934 = vmatpush1.msra.mxu0 0.0
  %935 = vmatprep.subr.mxu0 0.0
  %936 = vmatpush1.msra.mxu0 0.0
  %937 = vmatprep.subr.mxu0 0.0
  %938 = vmatpush1.msra.mxu0 0.0
  %939 = vmatprep.subr.mxu0 0.0
  %940 = vmatpush1.msra.mxu0 0.0
  %941 = vmatprep.subr.mxu0 0.0
  %942 = vmatpush1.msra.mxu0 0.0
  %943 = vmatprep.subr.mxu0 0.0
  %944 = vmatpush1.msra.mxu0 0.0
  %945 = vmatprep.subr.mxu0 0.0
  %946 = vmatpush1.msra.mxu0 0.0
  %947 = vmatprep.subr.mxu0 0.0
  %948 = vmatpush1.msra.mxu0 0.0
  %949 = vmatprep.mubr.f32.mxu0 0.0
  %950 = vmatmul.mubr.f32.gmra.mrb[0].mxu0 %v883
  %v951 = vpop.f32.mrb[0].mxu0
  %v952 = vadd.f32 0.0, %v951
  %v953 = vpop.f32.mrb[0].mxu0
  %954 = vdwg.mxu0
  %v956 = vsel %vm639, %v719, 0
  %958 = vmatprep.subr.mxu0 0.0
  %959 = vmatpush1.msra.mxu0 %v731
  %960 = vmatprep.subr.mxu0 0.0
  %961 = vmatpush1.msra.mxu0 0.0
  %962 = vmatprep.subr.mxu0 0.0
  %963 = vmatpush1.msra.mxu0 0.0
  %964 = vmatprep.subr.mxu0 0.0
  %965 = vmatpush1.msra.mxu0 0.0
  %966 = vmatprep.subr.mxu0 0.0
  %967 = vmatpush1.msra.mxu0 0.0
  %968 = vmatprep.subr.mxu0 0.0
  %969 = vmatpush1.msra.mxu0 0.0
  %970 = vmatprep.subr.mxu0 0.0
  %971 = vmatpush1.msra.mxu0 0.0
  %972 = vmatprep.subr.mxu0 0.0
  %973 = vmatpush1.msra.mxu0 0.0
  %974 = vmatprep.subr.mxu0 0.0
  %975 = vmatpush1.msra.mxu0 0.0
  %976 = vmatprep.subr.mxu0 0.0
  %977 = vmatpush1.msra.mxu0 0.0
  %978 = vmatprep.subr.mxu0 0.0
  %979 = vmatpush1.msra.mxu0 0.0
  %980 = vmatprep.subr.mxu0 0.0
  %981 = vmatpush1.msra.mxu0 0.0
  %982 = vmatprep.subr.mxu0 0.0
  %983 = vmatpush1.msra.mxu0 0.0
  %984 = vmatprep.subr.mxu0 0.0
  %985 = vmatpush1.msra.mxu0 0.0
  %986 = vmatprep.subr.mxu0 0.0
  %987 = vmatpush1.msra.mxu0 0.0
  %988 = vmatprep.subr.mxu0 0.0
  %989 = vmatpush1.msra.mxu0 0.0
  %990 = vmatprep.subr.mxu0 0.0
  %991 = vmatpush1.msra.mxu0 0.0
  %992 = vmatprep.subr.mxu0 0.0
  %993 = vmatpush1.msra.mxu0 0.0
  %994 = vmatprep.subr.mxu0 0.0
  %995 = vmatpush1.msra.mxu0 0.0
  %996 = vmatprep.subr.mxu0 0.0
  %997 = vmatpush1.msra.mxu0 0.0
  %998 = vmatprep.subr.mxu0 0.0
  %999 = vmatpush1.msra.mxu0 0.0
  %1000 = vmatprep.subr.mxu0 0.0
  %1001 = vmatpush1.msra.mxu0 0.0
  %1002 = vmatprep.subr.mxu0 0.0
  %1003 = vmatpush1.msra.mxu0 0.0
  %1004 = vmatprep.subr.mxu0 0.0
  %1005 = vmatpush1.msra.mxu0 0.0
  %1006 = vmatprep.subr.mxu0 0.0
  %1007 = vmatpush1.msra.mxu0 0.0
  %1008 = vmatprep.subr.mxu0 0.0
  %1009 = vmatpush1.msra.mxu0 0.0
  %1010 = vmatprep.subr.mxu0 0.0
  %1011 = vmatpush1.msra.mxu0 0.0
  %1012 = vmatprep.subr.mxu0 0.0
  %1013 = vmatpush1.msra.mxu0 0.0
  %1014 = vmatprep.subr.mxu0 0.0
  %1015 = vmatpush1.msra.mxu0 0.0
  %1016 = vmatprep.subr.mxu0 0.0
  %1017 = vmatpush1.msra.mxu0 0.0
  %1018 = vmatprep.subr.mxu0 0.0
  %1019 = vmatpush1.msra.mxu0 0.0
  %1020 = vmatprep.subr.mxu0 0.0
  %1021 = vmatpush1.msra.mxu0 0.0
  %1022 = vmatprep.mubr.f32.mxu0 0.0
  %1023 = vmatmul.mubr.f32.gmra.mrb[0].mxu0 %v956
  %v1024 = vpop.f32.mrb[0].mxu0
  %v1025 = vadd.f32 0.0, %v1024
  %v1026 = vpop.f32.mrb[0].mxu0
  %1027 = vdwg.mxu0
  %v1029 = vsel %vm639, %v721, 0
  %1031 = vmatprep.subr.mxu0 0.0
  %1032 = vmatpush1.msra.mxu0 %v732
  %1033 = vmatprep.subr.mxu0 0.0
  %1034 = vmatpush1.msra.mxu0 0.0
  %1035 = vmatprep.subr.mxu0 0.0
  %1036 = vmatpush1.msra.mxu0 0.0
  %1037 = vmatprep.subr.mxu0 0.0
  %1038 = vmatpush1.msra.mxu0 0.0
  %1039 = vmatprep.subr.mxu0 0.0
  %1040 = vmatpush1.msra.mxu0 0.0
  %1041 = vmatprep.subr.mxu0 0.0
  %1042 = vmatpush1.msra.mxu0 0.0
  %1043 = vmatprep.subr.mxu0 0.0
  %1044 = vmatpush1.msra.mxu0 0.0
  %1045 = vmatprep.subr.mxu0 0.0
  %1046 = vmatpush1.msra.mxu0 0.0
  %1047 = vmatprep.subr.mxu0 0.0
  %1048 = vmatpush1.msra.mxu0 0.0
  %1049 = vmatprep.subr.mxu0 0.0
  %1050 = vmatpush1.msra.mxu0 0.0
  %1051 = vmatprep.subr.mxu0 0.0
  %1052 = vmatpush1.msra.mxu0 0.0
  %1053 = vmatprep.subr.mxu0 0.0
  %1054 = vmatpush1.msra.mxu0 0.0
  %1055 = vmatprep.subr.mxu0 0.0
  %1056 = vmatpush1.msra.mxu0 0.0
  %1057 = vmatprep.subr.mxu0 0.0
  %1058 = vmatpush1.msra.mxu0 0.0
  %1059 = vmatprep.subr.mxu0 0.0
  %1060 = vmatpush1.msra.mxu0 0.0
  %1061 = vmatprep.subr.mxu0 0.0
  %1062 = vmatpush1.msra.mxu0 0.0
  %1063 = vmatprep.subr.mxu0 0.0
  %1064 = vmatpush1.msra.mxu0 0.0
  %1065 = vmatprep.subr.mxu0 0.0
  %1066 = vmatpush1.msra.mxu0 0.0
  %1067 = vmatprep.subr.mxu0 0.0
  %1068 = vmatpush1.msra.mxu0 0.0
  %1069 = vmatprep.subr.mxu0 0.0
  %1070 = vmatpush1.msra.mxu0 0.0
  %1071 = vmatprep.subr.mxu0 0.0
  %1072 = vmatpush1.msra.mxu0 0.0
  %1073 = vmatprep.subr.mxu0 0.0
  %1074 = vmatpush1.msra.mxu0 0.0
  %1075 = vmatprep.subr.mxu0 0.0
  %1076 = vmatpush1.msra.mxu0 0.0
  %1077 = vmatprep.subr.mxu0 0.0
  %1078 = vmatpush1.msra.mxu0 0.0
  %1079 = vmatprep.subr.mxu0 0.0
  %1080 = vmatpush1.msra.mxu0 0.0
  %1081 = vmatprep.subr.mxu0 0.0
  %1082 = vmatpush1.msra.mxu0 0.0
  %1083 = vmatprep.subr.mxu0 0.0
  %1084 = vmatpush1.msra.mxu0 0.0
  %1085 = vmatprep.subr.mxu0 0.0
  %1086 = vmatpush1.msra.mxu0 0.0
  %1087 = vmatprep.subr.mxu0 0.0
  %1088 = vmatpush1.msra.mxu0 0.0
  %1089 = vmatprep.subr.mxu0 0.0
  %1090 = vmatpush1.msra.mxu0 0.0
  %1091 = vmatprep.subr.mxu0 0.0
  %1092 = vmatpush1.msra.mxu0 0.0
  %1093 = vmatprep.subr.mxu0 0.0
  %1094 = vmatpush1.msra.mxu0 0.0
  %1095 = vmatprep.mubr.f32.mxu0 0.0
  %1096 = vmatmul.mubr.f32.gmra.mrb[0].mxu0 %v1029
  %v1097 = vpop.f32.mrb[0].mxu0
  %v1098 = vadd.f32 0.0, %v1097
  %v1099 = vpop.f32.mrb[0].mxu0
  %1100 = vdwg.mxu0
  %v1102 = vsel %vm639, %v723, 0
  %1104 = vmatprep.subr.mxu0 0.0
  %1105 = vmatpush1.msra.mxu0 %v733
  %1106 = vmatprep.subr.mxu0 0.0
  %1107 = vmatpush1.msra.mxu0 0.0
  %1108 = vmatprep.subr.mxu0 0.0
  %1109 = vmatpush1.msra.mxu0 0.0
  %1110 = vmatprep.subr.mxu0 0.0
  %1111 = vmatpush1.msra.mxu0 0.0
  %1112 = vmatprep.subr.mxu0 0.0
  %1113 = vmatpush1.msra.mxu0 0.0
  %1114 = vmatprep.subr.mxu0 0.0
  %1115 = vmatpush1.msra.mxu0 0.0
  %1116 = vmatprep.subr.mxu0 0.0
  %1117 = vmatpush1.msra.mxu0 0.0
  %1118 = vmatprep.subr.mxu0 0.0
  %1119 = vmatpush1.msra.mxu0 0.0
  %1120 = vmatprep.subr.mxu0 0.0
  %1121 = vmatpush1.msra.mxu0 0.0
  %1122 = vmatprep.subr.mxu0 0.0
  %1123 = vmatpush1.msra.mxu0 0.0
  %1124 = vmatprep.subr.mxu0 0.0
  %1125 = vmatpush1.msra.mxu0 0.0
  %1126 = vmatprep.subr.mxu0 0.0
  %1127 = vmatpush1.msra.mxu0 0.0
  %1128 = vmatprep.subr.mxu0 0.0
  %1129 = vmatpush1.msra.mxu0 0.0
  %1130 = vmatprep.subr.mxu0 0.0
  %1131 = vmatpush1.msra.mxu0 0.0
  %1132 = vmatprep.subr.mxu0 0.0
  %1133 = vmatpush1.msra.mxu0 0.0
  %1134 = vmatprep.subr.mxu0 0.0
  %1135 = vmatpush1.msra.mxu0 0.0
  %1136 = vmatprep.subr.mxu0 0.0
  %1137 = vmatpush1.msra.mxu0 0.0
  %1138 = vmatprep.subr.mxu0 0.0
  %1139 = vmatpush1.msra.mxu0 0.0
  %1140 = vmatprep.subr.mxu0 0.0
  %1141 = vmatpush1.msra.mxu0 0.0
  %1142 = vmatprep.subr.mxu0 0.0
  %1143 = vmatpush1.msra.mxu0 0.0
  %1144 = vmatprep.subr.mxu0 0.0
  %1145 = vmatpush1.msra.mxu0 0.0
  %1146 = vmatprep.subr.mxu0 0.0
  %1147 = vmatpush1.msra.mxu0 0.0
  %1148 = vmatprep.subr.mxu0 0.0
  %1149 = vmatpush1.msra.mxu0 0.0
  %1150 = vmatprep.subr.mxu0 0.0
  %1151 = vmatpush1.msra.mxu0 0.0
  %1152 = vmatprep.subr.mxu0 0.0
  %1153 = vmatpush1.msra.mxu0 0.0
  %1154 = vmatprep.subr.mxu0 0.0
  %1155 = vmatpush1.msra.mxu0 0.0
  %1156 = vmatprep.subr.mxu0 0.0
  %1157 = vmatpush1.msra.mxu0 0.0
  %1158 = vmatprep.subr.mxu0 0.0
  %1159 = vmatpush1.msra.mxu0 0.0
  %1160 = vmatprep.subr.mxu0 0.0
  %1161 = vmatpush1.msra.mxu0 0.0
  %1162 = vmatprep.subr.mxu0 0.0
  %1163 = vmatpush1.msra.mxu0 0.0
  %1164 = vmatprep.subr.mxu0 0.0
  %1165 = vmatpush1.msra.mxu0 0.0
  %1166 = vmatprep.subr.mxu0 0.0
  %1167 = vmatpush1.msra.mxu0 0.0
  %1168 = vmatprep.mubr.f32.mxu0 0.0
  %1169 = vmatmul.mubr.f32.gmra.mrb[0].mxu0 %v1102
  %v1170 = vpop.f32.mrb[0].mxu0
  %v1171 = vadd.f32 0.0, %v1170
  %v1172 = vpop.f32.mrb[0].mxu0
  %1173 = vdwg.mxu0
  %v1175 = vsel %vm639, %v725, 0
  %1177 = vmatprep.subr.mxu0 0.0
  %1178 = vmatpush1.msra.mxu0 %v734
  %1179 = vmatprep.subr.mxu0 0.0
  %1180 = vmatpush1.msra.mxu0 0.0
  %1181 = vmatprep.subr.mxu0 0.0
  %1182 = vmatpush1.msra.mxu0 0.0
  %1183 = vmatprep.subr.mxu0 0.0
  %1184 = vmatpush1.msra.mxu0 0.0
  %1185 = vmatprep.subr.mxu0 0.0
  %1186 = vmatpush1.msra.mxu0 0.0
  %1187 = vmatprep.subr.mxu0 0.0
  %1188 = vmatpush1.msra.mxu0 0.0
  %1189 = vmatprep.subr.mxu0 0.0
  %1190 = vmatpush1.msra.mxu0 0.0
  %1191 = vmatprep.subr.mxu0 0.0
  %1192 = vmatpush1.msra.mxu0 0.0
  %1193 = vmatprep.subr.mxu0 0.0
  %1194 = vmatpush1.msra.mxu0 0.0
  %1195 = vmatprep.subr.mxu0 0.0
  %1196 = vmatpush1.msra.mxu0 0.0
  %1197 = vmatprep.subr.mxu0 0.0
  %1198 = vmatpush1.msra.mxu0 0.0
  %1199 = vmatprep.subr.mxu0 0.0
  %1200 = vmatpush1.msra.mxu0 0.0
  %1201 = vmatprep.subr.mxu0 0.0
  %1202 = vmatpush1.msra.mxu0 0.0
  %1203 = vmatprep.subr.mxu0 0.0
  %1204 = vmatpush1.msra.mxu0 0.0
  %1205 = vmatprep.subr.mxu0 0.0
  %1206 = vmatpush1.msra.mxu0 0.0
  %1207 = vmatprep.subr.mxu0 0.0
  %1208 = vmatpush1.msra.mxu0 0.0
  %1209 = vmatprep.subr.mxu0 0.0
  %1210 = vmatpush1.msra.mxu0 0.0
  %1211 = vmatprep.subr.mxu0 0.0
  %1212 = vmatpush1.msra.mxu0 0.0
  %1213 = vmatprep.subr.mxu0 0.0
  %1214 = vmatpush1.msra.mxu0 0.0
  %1215 = vmatprep.subr.mxu0 0.0
  %1216 = vmatpush1.msra.mxu0 0.0
  %1217 = vmatprep.subr.mxu0 0.0
  %1218 = vmatpush1.msra.mxu0 0.0
  %1219 = vmatprep.subr.mxu0 0.0
  %1220 = vmatpush1.msra.mxu0 0.0
  %1221 = vmatprep.subr.mxu0 0.0
  %1222 = vmatpush1.msra.mxu0 0.0
  %1223 = vmatprep.subr.mxu0 0.0
  %1224 = vmatpush1.msra.mxu0 0.0
  %1225 = vmatprep.subr.mxu0 0.0
  %1226 = vmatpush1.msra.mxu0 0.0
  %1227 = vmatprep.subr.mxu0 0.0
  %1228 = vmatpush1.msra.mxu0 0.0
  %1229 = vmatprep.subr.mxu0 0.0
  %1230 = vmatpush1.msra.mxu0 0.0
  %1231 = vmatprep.subr.mxu0 0.0
  %1232 = vmatpush1.msra.mxu0 0.0
  %1233 = vmatprep.subr.mxu0 0.0
  %1234 = vmatpush1.msra.mxu0 0.0
  %1235 = vmatprep.subr.mxu0 0.0
  %1236 = vmatpush1.msra.mxu0 0.0
  %1237 = vmatprep.subr.mxu0 0.0
  %1238 = vmatpush1.msra.mxu0 0.0
  %1239 = vmatprep.subr.mxu0 0.0
  %1240 = vmatpush1.msra.mxu0 0.0
  %1241 = vmatprep.mubr.f32.mxu0 0.0
  %1242 = vmatmul.mubr.f32.gmra.mrb[0].mxu0 %v1175
  %v1243 = vpop.f32.mrb[0].mxu0
  %v1244 = vadd.f32 0.0, %v1243
  %v1245 = vpop.f32.mrb[0].mxu0
  %1246 = vdwg.mxu0
  %v1248 = vsel %vm639, %v727, 0
  %1250 = vmatprep.subr.mxu0 0.0
  %1251 = vmatpush1.msra.mxu0 %v735
  %1252 = vmatprep.subr.mxu0 0.0
  %1253 = vmatpush1.msra.mxu0 0.0
  %1254 = vmatprep.subr.mxu0 0.0
  %1255 = vmatpush1.msra.mxu0 0.0
  %1256 = vmatprep.subr.mxu0 0.0
  %1257 = vmatpush1.msra.mxu0 0.0
  %1258 = vmatprep.subr.mxu0 0.0
  %1259 = vmatpush1.msra.mxu0 0.0
  %1260 = vmatprep.subr.mxu0 0.0
  %1261 = vmatpush1.msra.mxu0 0.0
  %1262 = vmatprep.subr.mxu0 0.0
  %1263 = vmatpush1.msra.mxu0 0.0
  %1264 = vmatprep.subr.mxu0 0.0
  %1265 = vmatpush1.msra.mxu0 0.0
  %1266 = vmatprep.subr.mxu0 0.0
  %1267 = vmatpush1.msra.mxu0 0.0
  %1268 = vmatprep.subr.mxu0 0.0
  %1269 = vmatpush1.msra.mxu0 0.0
  %1270 = vmatprep.subr.mxu0 0.0
  %1271 = vmatpush1.msra.mxu0 0.0
  %1272 = vmatprep.subr.mxu0 0.0
  %1273 = vmatpush1.msra.mxu0 0.0
  %1274 = vmatprep.subr.mxu0 0.0
  %1275 = vmatpush1.msra.mxu0 0.0
  %1276 = vmatprep.subr.mxu0 0.0
  %1277 = vmatpush1.msra.mxu0 0.0
  %1278 = vmatprep.subr.mxu0 0.0
  %1279 = vmatpush1.msra.mxu0 0.0
  %1280 = vmatprep.subr.mxu0 0.0
  %1281 = vmatpush1.msra.mxu0 0.0
  %1282 = vmatprep.subr.mxu0 0.0
  %1283 = vmatpush1.msra.mxu0 0.0
  %1284 = vmatprep.subr.mxu0 0.0
  %1285 = vmatpush1.msra.mxu0 0.0
  %1286 = vmatprep.subr.mxu0 0.0
  %1287 = vmatpush1.msra.mxu0 0.0
  %1288 = vmatprep.subr.mxu0 0.0
  %1289 = vmatpush1.msra.mxu0 0.0
  %1290 = vmatprep.subr.mxu0 0.0
  %1291 = vmatpush1.msra.mxu0 0.0
  %1292 = vmatprep.subr.mxu0 0.0
  %1293 = vmatpush1.msra.mxu0 0.0
  %1294 = vmatprep.subr.mxu0 0.0
  %1295 = vmatpush1.msra.mxu0 0.0
  %1296 = vmatprep.subr.mxu0 0.0
  %1297 = vmatpush1.msra.mxu0 0.0
  %1298 = vmatprep.subr.mxu0 0.0
  %1299 = vmatpush1.msra.mxu0 0.0
  %1300 = vmatprep.subr.mxu0 0.0
  %1301 = vmatpush1.msra.mxu0 0.0
  %1302 = vmatprep.subr.mxu0 0.0
  %1303 = vmatpush1.msra.mxu0 0.0
  %1304 = vmatprep.subr.mxu0 0.0
  %1305 = vmatpush1.msra.mxu0 0.0
  %1306 = vmatprep.subr.mxu0 0.0
  %1307 = vmatpush1.msra.mxu0 0.0
  %1308 = vmatprep.subr.mxu0 0.0
  %1309 = vmatpush1.msra.mxu0 0.0
  %1310 = vmatprep.subr.mxu0 0.0
  %1311 = vmatpush1.msra.mxu0 0.0
  %1312 = vmatprep.subr.mxu0 0.0
  %1313 = vmatpush1.msra.mxu0 0.0
  %1314 = vmatprep.mubr.f32.mxu0 0.0
  %1315 = vmatmul.mubr.f32.gmra.mrb[0].mxu0 %v1248
  %v1316 = vpop.f32.mrb[0].mxu0
  %v1317 = vadd.f32 0.0, %v1316
  %v1318 = vpop.f32.mrb[0].mxu0
  %1319 = vdwg.mxu0
  %vm1320 = vcmask 162816
  %1321 = vst.msk [vmem:[%s3] sm:$0xff] %vm1320, %v806
  %1322 = vst.msk [vmem:[%s3 + $0x8] sm:$0xff] %vm1320, %v879
  %1323 = vst.msk [vmem:[%s3 + $0x10] sm:$0xff] %vm1320, %v952
  %1324 = vst.msk [vmem:[%s3 + $0x18] sm:$0xff] %vm1320, %v1025
  %1325 = vst.msk [vmem:[%s3 + $0x20] sm:$0xff] %vm1320, %v1098
  %1326 = vst.msk [vmem:[%s3 + $0x28] sm:$0xff] %vm1320, %v1171
  %1327 = vst.msk [vmem:[%s3 + $0x30] sm:$0xff] %vm1320, %v1244
  %1328 = vst.msk [vmem:[%s3 + $0x38] sm:$0xff] %vm1320, %v1317
  // Predicated region
  $region14: #{decoder_layer_forward.9} parent=0 // pred_check
    _
  $region15: #{decoder_layer_forward.9} parent=0 // pred_check_branch
    %1330 = sbr.rel (0) target = $region17
  $region16: #{decoder_layer_forward.9} parent=0 // pred_region
    _
  $region17: #{decoder_layer_forward.9} parent=0 // pred_fallthru
    _
  // Predicated region
  $region18: #{decoder_layer_forward.9} parent=0 // pred_check
    _
  $region19: #{decoder_layer_forward.9} parent=0 // pred_check_branch
    %1332 = sbr.rel (0) target = $region21
  $region20: #{decoder_layer_forward.9} parent=0 // pred_region
    _
  $region21: #{decoder_layer_forward.9} parent=0 // pred_fallthru
    _

// kernel: decoder_layer_forward.10
$region0: #{decoder_layer_forward.10}
  #allocation0 [shape = 'u32[]', space=smem, size = 0x4, offset = 0x4, fixed_abs, tag = 'smem constant byte address 0x4 - core index']
  #allocation1 [shape = 'u32[144,128]{1,0:T(1,128)}', space=vmem, size = 0x12000, scoped, tag = 'internal scratch']
  %s0 = inlined_call_operand.vmem [shape: f32[16,96], index: 0, kind: input, shape index: {}]
  %s1 = inlined_call_operand.vmem [shape: f32[96,32], index: 1, kind: input, shape index: {}]
  %s2 = inlined_call_operand.vmem [shape: f32[1,32], index: 2, kind: input, shape index: {}]
  %s3 = inlined_call_operand.vmem [shape: f32[16,32], index: 3, kind: input, shape index: {}]
  %s4 = inlined_call_operand.vmem [shape: f32[1,32], index: 4, kind: input, shape index: {}]
  %s5 = inlined_call_operand.vmem [shape: f32[1,32], index: 5, kind: input, shape index: {}]
  %s6 = inlined_call_operand.vmem [shape: f32[16,32], index: 6, kind: output, shape index: {}]
  %s7 = sld [smem:[#allocation0]]
  $region34: #{decoder_layer_forward.10} parent=0
    _
  %s9 = ssub.s32 1, %s7
  %s10 = scalar_select 0, %s9, %s7
  // Predicated region
  $region2: #{decoder_layer_forward.10} parent=0 // pred_check
    _
  $region3: #{decoder_layer_forward.10} parent=0 // pred_check_branch
    %12 = sbr.rel (0) target = $region5
  $region4: #{decoder_layer_forward.10} parent=0 // pred_region
    _
  $region5: #{decoder_layer_forward.10} parent=0 // pred_fallthru
    _
  // Predicated region
  $region6: #{decoder_layer_forward.10} parent=0 // pred_check
    _
  $region7: #{decoder_layer_forward.10} parent=0 // pred_check_branch
    %14 = sbr.rel (0) target = $region9
  $region8: #{decoder_layer_forward.10} parent=0 // pred_region
    _
  $region9: #{decoder_layer_forward.10} parent=0 // pred_fallthru
    _
  // Predicated region
  $region10: #{decoder_layer_forward.10} parent=0 // pred_check
    _
  $region11: #{decoder_layer_forward.10} parent=0 // pred_check_branch
    %16 = sbr.rel (0) target = $region13
  $region12: #{decoder_layer_forward.10} parent=0 // pred_region
    _
  $region13: #{decoder_layer_forward.10} parent=0 // pred_fallthru
    _
  // Predicated region
  $region14: #{decoder_layer_forward.10} parent=0 // pred_check
    _
  $region15: #{decoder_layer_forward.10} parent=0 // pred_check_branch
    %18 = sbr.rel (0) target = $region17
  $region16: #{decoder_layer_forward.10} parent=0 // pred_region
    _
  $region17: #{decoder_layer_forward.10} parent=0 // pred_fallthru
    _
  // Predicated region
  $region18: #{decoder_layer_forward.10} parent=0 // pred_check
    _
  $region19: #{decoder_layer_forward.10} parent=0 // pred_check_branch
    %20 = sbr.rel (0) target = $region21
  $region20: #{decoder_layer_forward.10} parent=0 // pred_region
    _
  $region21: #{decoder_layer_forward.10} parent=0 // pred_fallthru
    _
  // Predicated region
  $region22: #{decoder_layer_forward.10} parent=0 // pred_check
    _
  $region23: #{decoder_layer_forward.10} parent=0 // pred_check_branch
    %22 = sbr.rel (0) target = $region25
  $region24: #{decoder_layer_forward.10} parent=0 // pred_region
    _
  $region25: #{decoder_layer_forward.10} parent=0 // pred_fallthru
    _
  %v23 = vld [vmem:[%s0] sm:$0xff]
  %v24 = vld [vmem:[%s0 + $0x8] sm:$0xff]
  %v25 = vld [vmem:[%s1] sm:$0xff]
  %v26 = vld [vmem:[%s1 + $0x8] sm:$0xff]
  %v27 = vld [vmem:[%s1 + $0x10] sm:$0xff]
  %v28 = vld [vmem:[%s1 + $0x18] sm:$0xff]
  %v29 = vld [vmem:[%s1 + $0x20] sm:$0xff]
  %v30 = vld [vmem:[%s1 + $0x28] sm:$0xff]
  %v31 = vld [vmem:[%s1 + $0x30] sm:$0xff]
  %v32 = vld [vmem:[%s1 + $0x38] sm:$0xff]
  %v33 = vld [vmem:[%s1 + $0x40] sm:$0xff]
  %v34 = vld [vmem:[%s1 + $0x48] sm:$0xff]
  %v35 = vld [vmem:[%s1 + $0x50] sm:$0xff]
  %v36 = vld [vmem:[%s1 + $0x58] sm:$0xff]
  %v37 = vld [vmem:[%s2] sm:$0x1]
  %v39 = vlaneseq
  %v40 = vshrl.u32 %v39, 7
  %v41 = vsub.s32 0, %v40
  %v42 = vrot.slane %v37, %v41
  %vm44 = vcmask 785408
  %v46 = vsel %vm44, %v23, 0
  %v49 = vsel %vm44, %v24, 0
  %51 = vmatprep.subr.mxu0 0.0
  %52 = vmatpush1.msra.mxu0 %v25
  %53 = vmatprep.subr.mxu0 0.0
  %54 = vmatpush1.msra.mxu0 %v26
  %55 = vmatprep.subr.mxu0 0.0
  %56 = vmatpush1.msra.mxu0 %v27
  %57 = vmatprep.subr.mxu0 0.0
  %58 = vmatpush1.msra.mxu0 %v28
  %59 = vmatprep.subr.mxu0 0.0
  %60 = vmatpush1.msra.mxu0 %v29
  %61 = vmatprep.subr.mxu0 0.0
  %62 = vmatpush1.msra.mxu0 %v30
  %63 = vmatprep.subr.mxu0 0.0
  %64 = vmatpush1.msra.mxu0 %v31
  %65 = vmatprep.subr.mxu0 0.0
  %66 = vmatpush1.msra.mxu0 %v32
  %67 = vmatprep.subr.mxu0 0.0
  %68 = vmatpush1.msra.mxu0 %v33
  %69 = vmatprep.subr.mxu0 0.0
  %70 = vmatpush1.msra.mxu0 %v34
  %71 = vmatprep.subr.mxu0 0.0
  %72 = vmatpush1.msra.mxu0 %v35
  %73 = vmatprep.subr.mxu0 0.0
  %74 = vmatpush1.msra.mxu0 %v36
  %75 = vmatprep.subr.mxu0 0.0
  %76 = vmatpush1.msra.mxu0 0.0
  %77 = vmatprep.subr.mxu0 0.0
  %78 = vmatpush1.msra.mxu0 0.0
  %79 = vmatprep.subr.mxu0 0.0
  %80 = vmatpush1.msra.mxu0 0.0
  %81 = vmatprep.subr.mxu0 0.0
  %82 = vmatpush1.msra.mxu0 0.0
  %83 = vmatprep.subr.mxu0 0.0
  %84 = vmatpush1.msra.mxu0 0.0
  %85 = vmatprep.subr.mxu0 0.0
  %86 = vmatpush1.msra.mxu0 0.0
  %87 = vmatprep.subr.mxu0 0.0
  %88 = vmatpush1.msra.mxu0 0.0
  %89 = vmatprep.subr.mxu0 0.0
  %90 = vmatpush1.msra.mxu0 0.0
  %91 = vmatprep.subr.mxu0 0.0
  %92 = vmatpush1.msra.mxu0 0.0
  %93 = vmatprep.subr.mxu0 0.0
  %94 = vmatpush1.msra.mxu0 0.0
  %95 = vmatprep.subr.mxu0 0.0
  %96 = vmatpush1.msra.mxu0 0.0
  %97 = vmatprep.subr.mxu0 0.0
  %98 = vmatpush1.msra.mxu0 0.0
  %99 = vmatprep.subr.mxu0 0.0
  %100 = vmatpush1.msra.mxu0 0.0
  %101 = vmatprep.subr.mxu0 0.0
  %102 = vmatpush1.msra.mxu0 0.0
  %103 = vmatprep.subr.mxu0 0.0
  %104 = vmatpush1.msra.mxu0 0.0
  %105 = vmatprep.subr.mxu0 0.0
  %106 = vmatpush1.msra.mxu0 0.0
  %107 = vmatprep.subr.mxu0 0.0
  %108 = vmatpush1.msra.mxu0 0.0
  %109 = vmatprep.subr.mxu0 0.0
  %110 = vmatpush1.msra.mxu0 0.0
  %111 = vmatprep.subr.mxu0 0.0
  %112 = vmatpush1.msra.mxu0 0.0
  %113 = vmatprep.subr.mxu0 0.0
  %114 = vmatpush1.msra.mxu0 0.0
  %115 = vmatprep.mubr.f32.mxu0 0.0
  %116 = vmatmul.mubr.f32.gmra.mrb[0].mxu0 %v46
  %v117 = vpop.f32.mrb[0].mxu0
  %v118 = vadd.f32 %v42, %v117
  %v119 = vpop.f32.mrb[0].mxu0
  %120 = vmatprep.mubr.f32.mxu0 0.0
  %121 = vmatmul.mubr.f32.gmra.mrb[0].mxu0 %v49
  %v122 = vpop.f32.mrb[0].mxu0
  %v123 = vadd.f32 %v42, %v122
  %v124 = vpop.f32.mrb[0].mxu0
  %125 = vdwg.mxu0
  %v126 = vld [vmem:[%s3] sm:$0xff]
  %v127 = vld [vmem:[%s3 + $0x8] sm:$0xff]
  %v128 = vadd.f32 %v118, %v126
  %v129 = vadd.f32 %v123, %v127
  %vm130 = vcmask 261120
  %v131 = vsel %vm130, %v128, 0.0
  %132 = vadd.xlane.f32.xlu0 %v131
  %v133 = vpop.xlane.xlu0 %132
  %v134 = vsel %vm130, %v129, 0.0
  %135 = vadd.xlane.f32.xlu0 %v134
  %v136 = vpop.xlane.xlu0 %135
  %v137 = vrcp.pop 32.0
  %v138 = vmul.f32 %v133, %v137
  %v139 = vmul.f32 %v136, %v137
  %v140 = vsub.f32 %v128, %v138
  %v141 = vsub.f32 %v129, %v139
  %v142 = vmul.f32 %v140, %v140
  %v143 = vmul.f32 %v141, %v141
  %v144 = vsel %vm130, %v142, 0.0
  %145 = vadd.xlane.f32.xlu0 %v144
  %v146 = vpop.xlane.xlu0 %145
  %v147 = vsel %vm130, %v143, 0.0
  %148 = vadd.xlane.f32.xlu0 %v147
  %v149 = vpop.xlane.xlu0 %148
  %v150 = vmul.f32 %v146, %v137
  %v151 = vmul.f32 %v149, %v137
  %v152 = vadd.f32 %v150, 1e-05
  %v153 = vadd.f32 %v151, 1e-05
  %v154 = vrsqrt.pop %v152
  %v155 = vrsqrt.pop %v153
  %v156 = vmul.f32 %v140, %v154
  %v157 = vmul.f32 %v141, %v155
  %v158 = vld [vmem:[%s4] sm:$0x1]
  %v160 = vlaneseq
  %v161 = vshrl.u32 %v160, 7
  %v162 = vsub.s32 0, %v161
  %v163 = vrot.slane %v158, %v162
  %v165 = vmul.f32 %v156, %v163
  %v166 = vmul.f32 %v157, %v163
  %v167 = vld [vmem:[%s5] sm:$0x1]
  %v169 = vlaneseq
  %v170 = vshrl.u32 %v169, 7
  %v171 = vsub.s32 0, %v170
  %v172 = vrot.slane %v167, %v171
  %v174 = vadd.f32 %v165, %v172
  %v175 = vadd.f32 %v166, %v172
  %176 = vst.msk [vmem:[%s6] sm:$0xff] %vm130, %v174
  %177 = vst.msk [vmem:[%s6 + $0x8] sm:$0xff] %vm130, %v175
  // Predicated region
  $region26: #{decoder_layer_forward.10} parent=0 // pred_check
    _
  $region27: #{decoder_layer_forward.10} parent=0 // pred_check_branch
    %179 = sbr.rel (0) target = $region29
  $region28: #{decoder_layer_forward.10} parent=0 // pred_region
    _
  $region29: #{decoder_layer_forward.10} parent=0 // pred_fallthru
    _
  // Predicated region
  $region30: #{decoder_layer_forward.10} parent=0 // pred_check
    _
  $region31: #{decoder_layer_forward.10} parent=0 // pred_check_branch
    %181 = sbr.rel (0) target = $region33
  $region32: #{decoder_layer_forward.10} parent=0 // pred_region
    _
  $region33: #{decoder_layer_forward.10} parent=0 // pred_fallthru
    _

// kernel: decoder_layer_forward.11
$region0: #{decoder_layer_forward.11}
  #allocation0 [shape = 'u32[]', space=smem, size = 0x4, offset = 0x4, fixed_abs, tag = 'smem constant byte address 0x4 - core index']
  #allocation1 [shape = 'u32[144,128]{1,0:T(1,128)}', space=vmem, size = 0x12000, scoped, tag = 'internal scratch']
  %s0 = inlined_call_operand.vmem [shape: f32[16,32], index: 0, kind: input, shape index: {}]
  %s1 = inlined_call_operand.vmem [shape: f32[32,80], index: 1, kind: input, shape index: {}]
  %s2 = inlined_call_operand.vmem [shape: f32[16,80], index: 2, kind: output, shape index: {}]
  %s3 = sld [smem:[#allocation0]]
  $region18: #{decoder_layer_forward.11} parent=0
    _
  %s5 = ssub.s32 1, %s3
  %s6 = scalar_select 0, %s5, %s3
  // Predicated region
  $region2: #{decoder_layer_forward.11} parent=0 // pred_check
    _
  $region3: #{decoder_layer_forward.11} parent=0 // pred_check_branch
    %8 = sbr.rel (0) target = $region5
  $region4: #{decoder_layer_forward.11} parent=0 // pred_region
    _
  $region5: #{decoder_layer_forward.11} parent=0 // pred_fallthru
    _
  // Predicated region
  $region6: #{decoder_layer_forward.11} parent=0 // pred_check
    _
  $region7: #{decoder_layer_forward.11} parent=0 // pred_check_branch
    %10 = sbr.rel (0) target = $region9
  $region8: #{decoder_layer_forward.11} parent=0 // pred_region
    _
  $region9: #{decoder_layer_forward.11} parent=0 // pred_fallthru
    _
  %v11 = vld [vmem:[%s0] sm:$0xff]
  %v12 = vld [vmem:[%s0 + $0x8] sm:$0xff]
  %v13 = vld [vmem:[%s1] sm:$0xff]
  %v14 = vld [vmem:[%s1 + $0x8] sm:$0xff]
  %v15 = vld [vmem:[%s1 + $0x10] sm:$0xff]
  %v16 = vld [vmem:[%s1 + $0x18] sm:$0xff]
  %vm17 = vcmask 261120
  %v19 = vsel %vm17, %v11, 0
  %v22 = vsel %vm17, %v12, 0
  %24 = vmatprep.subr.mxu0 0.0
  %25 = vmatpush1.msra.mxu0 %v13
  %26 = vmatprep.subr.mxu0 0.0
  %27 = vmatpush1.msra.mxu0 %v14
  %28 = vmatprep.subr.mxu0 0.0
  %29 = vmatpush1.msra.mxu0 %v15
  %30 = vmatprep.subr.mxu0 0.0
  %31 = vmatpush1.msra.mxu0 %v16
  %32 = vmatprep.subr.mxu0 0.0
  %33 = vmatpush1.msra.mxu0 0.0
  %34 = vmatprep.subr.mxu0 0.0
  %35 = vmatpush1.msra.mxu0 0.0
  %36 = vmatprep.subr.mxu0 0.0
  %37 = vmatpush1.msra.mxu0 0.0
  %38 = vmatprep.subr.mxu0 0.0
  %39 = vmatpush1.msra.mxu0 0.0
  %40 = vmatprep.subr.mxu0 0.0
  %41 = vmatpush1.msra.mxu0 0.0
  %42 = vmatprep.subr.mxu0 0.0
  %43 = vmatpush1.msra.mxu0 0.0
  %44 = vmatprep.subr.mxu0 0.0
  %45 = vmatpush1.msra.mxu0 0.0
  %46 = vmatprep.subr.mxu0 0.0
  %47 = vmatpush1.msra.mxu0 0.0
  %48 = vmatprep.subr.mxu0 0.0
  %49 = vmatpush1.msra.mxu0 0.0
  %50 = vmatprep.subr.mxu0 0.0
  %51 = vmatpush1.msra.mxu0 0.0
  %52 = vmatprep.subr.mxu0 0.0
  %53 = vmatpush1.msra.mxu0 0.0
  %54 = vmatprep.subr.mxu0 0.0
  %55 = vmatpush1.msra.mxu0 0.0
  %56 = vmatprep.subr.mxu0 0.0
  %57 = vmatpush1.msra.mxu0 0.0
  %58 = vmatprep.subr.mxu0 0.0
  %59 = vmatpush1.msra.mxu0 0.0
  %60 = vmatprep.subr.mxu0 0.0
  %61 = vmatpush1.msra.mxu0 0.0
  %62 = vmatprep.subr.mxu0 0.0
  %63 = vmatpush1.msra.mxu0 0.0
  %64 = vmatprep.subr.mxu0 0.0
  %65 = vmatpush1.msra.mxu0 0.0
  %66 = vmatprep.subr.mxu0 0.0
  %67 = vmatpush1.msra.mxu0 0.0
  %68 = vmatprep.subr.mxu0 0.0
  %69 = vmatpush1.msra.mxu0 0.0
  %70 = vmatprep.subr.mxu0 0.0
  %71 = vmatpush1.msra.mxu0 0.0
  %72 = vmatprep.subr.mxu0 0.0
  %73 = vmatpush1.msra.mxu0 0.0
  %74 = vmatprep.subr.mxu0 0.0
  %75 = vmatpush1.msra.mxu0 0.0
  %76 = vmatprep.subr.mxu0 0.0
  %77 = vmatpush1.msra.mxu0 0.0
  %78 = vmatprep.subr.mxu0 0.0
  %79 = vmatpush1.msra.mxu0 0.0
  %80 = vmatprep.subr.mxu0 0.0
  %81 = vmatpush1.msra.mxu0 0.0
  %82 = vmatprep.subr.mxu0 0.0
  %83 = vmatpush1.msra.mxu0 0.0
  %84 = vmatprep.subr.mxu0 0.0
  %85 = vmatpush1.msra.mxu0 0.0
  %86 = vmatprep.subr.mxu0 0.0
  %87 = vmatpush1.msra.mxu0 0.0
  %88 = vmatprep.mubr.f32.mxu0 0.0
  %89 = vmatmul.mubr.f32.gmra.mrb[0].mxu0 %v19
  %v90 = vpop.f32.mrb[0].mxu0
  %v91 = vadd.f32 0.0, %v90
  %v92 = vpop.f32.mrb[0].mxu0
  %93 = vmatprep.mubr.f32.mxu0 0.0
  %94 = vmatmul.mubr.f32.gmra.mrb[0].mxu0 %v22
  %v95 = vpop.f32.mrb[0].mxu0
  %v96 = vadd.f32 0.0, %v95
  %v97 = vpop.f32.mrb[0].mxu0
  %98 = vdwg.mxu0
  %vm99 = vcmask 654336
  %100 = vst.msk [vmem:[%s2] sm:$0xff] %vm99, %v91
  %101 = vst.msk [vmem:[%s2 + $0x8] sm:$0xff] %vm99, %v96
  // Predicated region
  $region10: #{decoder_layer_forward.11} parent=0 // pred_check
    _
  $region11: #{decoder_layer_forward.11} parent=0 // pred_check_branch
    %103 = sbr.rel (0) target = $region13
  $region12: #{decoder_layer_forward.11} parent=0 // pred_region
    _
  $region13: #{decoder_layer_forward.11} parent=0 // pred_fallthru
    _
  // Predicated region
  $region14: #{decoder_layer_forward.11} parent=0 // pred_check
    _
  $region15: #{decoder_layer_forward.11} parent=0 // pred_check_branch
    %105 = sbr.rel (0) target = $region17
  $region16: #{decoder_layer_forward.11} parent=0 // pred_region
    _
  $region17: #{decoder_layer_forward.11} parent=0 // pred_fallthru
    _

// kernel: decoder_layer_forward.12
$region0: #{decoder_layer_forward.12}
  #allocation0 [shape = 'u32[]', space=smem, size = 0x4, offset = 0x4, fixed_abs, tag = 'smem constant byte address 0x4 - core index']
  #allocation1 [shape = 'u32[144,128]{1,0:T(1,128)}', space=vmem, size = 0x12000, scoped, tag = 'internal scratch']
  %s0 = inlined_call_operand.vmem [shape: f32[12,32], index: 0, kind: input, shape index: {}]
  %s1 = inlined_call_operand.vmem [shape: f32[32,160], index: 1, kind: input, shape index: {}]
  %s2 = inlined_call_operand.vmem [shape: f32[12,160], index: 2, kind: output, shape index: {}]
  %s3 = sld [smem:[#allocation0]]
  $region18: #{decoder_layer_forward.12} parent=0
    _
  %s5 = ssub.s32 1, %s3
  %s6 = scalar_select 0, %s5, %s3
  // Predicated region
  $region2: #{decoder_layer_forward.12} parent=0 // pred_check
    _
  $region3: #{decoder_layer_forward.12} parent=0 // pred_check_branch
    %8 = sbr.rel (0) target = $region5
  $region4: #{decoder_layer_forward.12} parent=0 // pred_region
    _
  $region5: #{decoder_layer_forward.12} parent=0 // pred_fallthru
    _
  // Predicated region
  $region6: #{decoder_layer_forward.12} parent=0 // pred_check
    _
  $region7: #{decoder_layer_forward.12} parent=0 // pred_check_branch
    %10 = sbr.rel (0) target = $region9
  $region8: #{decoder_layer_forward.12} parent=0 // pred_region
    _
  $region9: #{decoder_layer_forward.12} parent=0 // pred_fallthru
    _
  %v11 = vld [vmem:[%s0] sm:$0xff]
  %v12 = vld [vmem:[%s0 + $0x8] sm:$0xf]
  %v13 = vld [vmem:[%s1] sm:$0xff]
  %v14 = vld [vmem:[%s1 + $0x8] sm:$0xff]
  %v15 = vld [vmem:[%s1 + $0x10] sm:$0xff]
  %v16 = vld [vmem:[%s1 + $0x18] sm:$0xff]
  %v17 = vld [vmem:[%s1 + $0x20] sm:$0xff]
  %v18 = vld [vmem:[%s1 + $0x28] sm:$0xff]
  %v19 = vld [vmem:[%s1 + $0x30] sm:$0xff]
  %v20 = vld [vmem:[%s1 + $0x38] sm:$0xff]
  %vm21 = vcmask 261120
  %v23 = vsel %vm21, %v11, 0
  %v26 = vsel %vm21, %v12, 0
  %28 = vmatprep.subr.mxu0 %v14
  %29 = vmatpush1.msra.mxu0 %v13
  %30 = vmatprep.subr.mxu0 %v16
  %31 = vmatpush1.msra.mxu0 %v15
  %32 = vmatprep.subr.mxu0 %v18
  %33 = vmatpush1.msra.mxu0 %v17
  %34 = vmatprep.subr.mxu0 %v20
  %35 = vmatpush1.msra.mxu0 %v19
  %36 = vmatprep.subr.mxu0 0.0
  %37 = vmatpush1.msra.mxu0 0.0
  %38 = vmatprep.subr.mxu0 0.0
  %39 = vmatpush1.msra.mxu0 0.0
  %40 = vmatprep.subr.mxu0 0.0
  %41 = vmatpush1.msra.mxu0 0.0
  %42 = vmatprep.subr.mxu0 0.0
  %43 = vmatpush1.msra.mxu0 0.0
  %44 = vmatprep.subr.mxu0 0.0
  %45 = vmatpush1.msra.mxu0 0.0
  %46 = vmatprep.subr.mxu0 0.0
  %47 = vmatpush1.msra.mxu0 0.0
  %48 = vmatprep.subr.mxu0 0.0
  %49 = vmatpush1.msra.mxu0 0.0
  %50 = vmatprep.subr.mxu0 0.0
  %51 = vmatpush1.msra.mxu0 0.0
  %52 = vmatprep.subr.mxu0 0.0
  %53 = vmatpush1.msra.mxu0 0.0
  %54 = vmatprep.subr.mxu0 0.0
  %55 = vmatpush1.msra.mxu0 0.0
  %56 = vmatprep.subr.mxu0 0.0
  %57 = vmatpush1.msra.mxu0 0.0
  %58 = vmatprep.subr.mxu0 0.0
  %59 = vmatpush1.msra.mxu0 0.0
  %60 = vmatprep.subr.mxu0 0.0
  %61 = vmatpush1.msra.mxu0 0.0
  %62 = vmatprep.subr.mxu0 0.0
  %63 = vmatpush1.msra.mxu0 0.0
  %64 = vmatprep.subr.mxu0 0.0
  %65 = vmatpush1.msra.mxu0 0.0
  %66 = vmatprep.subr.mxu0 0.0
  %67 = vmatpush1.msra.mxu0 0.0
  %68 = vmatprep.subr.mxu0 0.0
  %69 = vmatpush1.msra.mxu0 0.0
  %70 = vmatprep.subr.mxu0 0.0
  %71 = vmatpush1.msra.mxu0 0.0
  %72 = vmatprep.subr.mxu0 0.0
  %73 = vmatpush1.msra.mxu0 0.0
  %74 = vmatprep.subr.mxu0 0.0
  %75 = vmatpush1.msra.mxu0 0.0
  %76 = vmatprep.subr.mxu0 0.0
  %77 = vmatpush1.msra.mxu0 0.0
  %78 = vmatprep.subr.mxu0 0.0
  %79 = vmatpush1.msra.mxu0 0.0
  %80 = vmatprep.subr.mxu0 0.0
  %81 = vmatpush1.msra.mxu0 0.0
  %82 = vmatprep.subr.mxu0 0.0
  %83 = vmatpush1.msra.mxu0 0.0
  %84 = vmatprep.subr.mxu0 0.0
  %85 = vmatpush1.msra.mxu0 0.0
  %86 = vmatprep.subr.mxu0 0.0
  %87 = vmatpush1.msra.mxu0 0.0
  %88 = vmatprep.subr.mxu0 0.0
  %89 = vmatpush1.msra.mxu0 0.0
  %90 = vmatprep.subr.mxu0 0.0
  %91 = vmatpush1.msra.mxu0 0.0
  %92 = vmatprep.mubr.f32.mxu0 0.0
  %93 = vmatmul.mubr.f32.gmra.mrb[0].mxu0 %v23
  %v94 = vpop.f32.mrb[0].mxu0
  %v95 = vadd.f32 0.0, %v94
  %v96 = vpop.f32.mrb[0].mxu0
  %v97 = vadd.f32 0.0, %v96
  %98 = vmatprep.mubr.f32.mxu0 0.0
  %99 = vmatmul.mubr.f32.gmra.mrb[0].mxu0 %v26
  %v100 = vpop.f32.mrb[0].mxu0
  %v101 = vadd.f32 0.0, %v100
  %v102 = vpop.f32.mrb[0].mxu0
  %v103 = vadd.f32 0.0, %v102
  %104 = vdwg.mxu0
  %105 = vst [vmem:[%s2] sm:$0xff] %v95
  %106 = vst.msk [vmem:[%s2 + $0x8] sm:$0xff] %vm21, %v97
  %107 = vst [vmem:[%s2 + $0x10] sm:$0xf] %v101
  %vm108 = vcmask 257024
  %109 = vst.msk [vmem:[%s2 + $0x18] sm:$0xf] %vm108, %v103
  // Predicated region
  $region10: #{decoder_layer_forward.12} parent=0 // pred_check
    _
  $region11: #{decoder_layer_forward.12} parent=0 // pred_check_branch
    %111 = sbr.rel (0) target = $region13
  $region12: #{decoder_layer_forward.12} parent=0 // pred_region
    _
  $region13: #{decoder_layer_forward.12} parent=0 // pred_fallthru
    _
  // Predicated region
  $region14: #{decoder_layer_forward.12} parent=0 // pred_check
    _
  $region15: #{decoder_layer_forward.12} parent=0 // pred_check_branch
    %113 = sbr.rel (0) target = $region17
  $region16: #{decoder_layer_forward.12} parent=0 // pred_region
    _
  $region17: #{decoder_layer_forward.12} parent=0 // pred_fallthru
    _

// kernel: neg.42
$region0: #{neg.42}
  #allocation0 [shape = 's32[1]{0}', space=sflag, size = 0x4, scoped, tag = 'scoped memory for neg.42']
  %s0 = inlined_call_operand.vmem [shape: f32[2,4,6], index: 0, kind: input, shape index: {}]
  %s1 = inlined_call_operand.vmem [shape: f32[2,4,6], index: 1, kind: output, shape index: {}]
  %v2 = vld [vmem:[%s0] sm:$0xf]
  %3 = xla_tuple %v2
  %4 = xla_tuple %3
  %v5 = vxor.u32 %v2, 2147483648
  %6 = xla_tuple %v5
  %7 = vst [vmem:[%s1] sm:$0xf] %v5
  %s8 = scalar_lea.vmem %s0, 4
  %v9 = vld [vmem:[%s8] sm:$0xf]
  %10 = xla_tuple %v9
  %11 = xla_tuple %10
  %v12 = vxor.u32 %v9, 2147483648
  %13 = xla_tuple %v12
  %s14 = scalar_lea.vmem %s1, 4
  %15 = vst [vmem:[%s14] sm:$0xf] %v12

// kernel: decoder_layer_forward.15
$region0: #{decoder_layer_forward.15}
  #allocation0 [shape = 'u32[]', space=smem, size = 0x4, offset = 0x4, fixed_abs, tag = 'smem constant byte address 0x4 - core index']
  #allocation1 [shape = 'u32[144,128]{1,0:T(1,128)}', space=vmem, size = 0x12000, scoped, tag = 'internal scratch']
  %s0 = inlined_call_operand.vmem [shape: f32[16,32], index: 0, kind: input, shape index: {}]
  %s1 = inlined_call_operand.vmem [shape: f32[32,64], index: 1, kind: input, shape index: {}]
  %s2 = inlined_call_operand.vmem [shape: f32[1,64], index: 2, kind: input, shape index: {}]
  %s3 = inlined_call_operand.vmem [shape: f32[64,32], index: 3, kind: input, shape index: {}]
  %s4 = inlined_call_operand.vmem [shape: f32[1,32], index: 4, kind: input, shape index: {}]
  %s5 = inlined_call_operand.vmem [shape: f32[1,32], index: 5, kind: input, shape index: {}]
  %s6 = inlined_call_operand.vmem [shape: f32[1,32], index: 6, kind: input, shape index: {}]
  %s7 = inlined_call_operand.hbm [shape: f32[16,32], index: 7, kind: output, shape index: {}]
  %s8 = sld [smem:[#allocation0]]
  $region38: #{decoder_layer_forward.15} parent=0
    _
  %s10 = ssub.s32 1, %s8
  %s11 = scalar_select 0, %s10, %s8
  $region1: #{decoder_layer_forward.15} parent=0
    #allocation2 [shape = 'u8[8192]{0}', space=vmem, size = 0x2000, scoped, tag = 'output window, operand 0, single buffered']
    #allocation3 [shape = 's32[1]{0}', space=sflag, size = 0x4, scoped, tag = 'scoped memory for decoder_layer_forward.15']
    %12 = vsyncpa [#allocation3], 0
    // Predicated region
    $region2: #{decoder_layer_forward.15} parent=1 // pred_check
      _
    $region3: #{decoder_layer_forward.15} parent=1 // pred_check_branch
      %14 = sbr.rel (0) target = $region5
    $region4: #{decoder_layer_forward.15} parent=1 // pred_region
      _
    $region5: #{decoder_layer_forward.15} parent=1 // pred_fallthru
      _
    // Predicated region
    $region6: #{decoder_layer_forward.15} parent=1 // pred_check
      _
    $region7: #{decoder_layer_forward.15} parent=1 // pred_check_branch
      %16 = sbr.rel (0) target = $region9
    $region8: #{decoder_layer_forward.15} parent=1 // pred_region
      _
    $region9: #{decoder_layer_forward.15} parent=1 // pred_fallthru
      _
    // Predicated region
    $region10: #{decoder_layer_forward.15} parent=1 // pred_check
      _
    $region11: #{decoder_layer_forward.15} parent=1 // pred_check_branch
      %18 = sbr.rel (0) target = $region13
    $region12: #{decoder_layer_forward.15} parent=1 // pred_region
      _
    $region13: #{decoder_layer_forward.15} parent=1 // pred_fallthru
      _
    // Predicated region
    $region14: #{decoder_layer_forward.15} parent=1 // pred_check
      _
    $region15: #{decoder_layer_forward.15} parent=1 // pred_check_branch
      %20 = sbr.rel (0) target = $region17
    $region16: #{decoder_layer_forward.15} parent=1 // pred_region
      _
    $region17: #{decoder_layer_forward.15} parent=1 // pred_fallthru
      _
    // Predicated region
    $region18: #{decoder_layer_forward.15} parent=1 // pred_check
      _
    $region19: #{decoder_layer_forward.15} parent=1 // pred_check_branch
      %22 = sbr.rel (0) target = $region21
    $region20: #{decoder_layer_forward.15} parent=1 // pred_region
      _
    $region21: #{decoder_layer_forward.15} parent=1 // pred_fallthru
      _
    // Predicated region
    $region22: #{decoder_layer_forward.15} parent=1 // pred_check
      _
    $region23: #{decoder_layer_forward.15} parent=1 // pred_check_branch
      %24 = sbr.rel (0) target = $region25
    $region24: #{decoder_layer_forward.15} parent=1 // pred_region
      _
    $region25: #{decoder_layer_forward.15} parent=1 // pred_fallthru
      _
    // Predicated region
    $region26: #{decoder_layer_forward.15} parent=1 // pred_check
      _
    $region27: #{decoder_layer_forward.15} parent=1 // pred_check_branch
      %26 = sbr.rel (0) target = $region29
    $region28: #{decoder_layer_forward.15} parent=1 // pred_region
      _
    $region29: #{decoder_layer_forward.15} parent=1 // pred_fallthru
      _
    %v27 = vld [vmem:[%s0] sm:$0xff]
    %v28 = vld [vmem:[%s0 + $0x8] sm:$0xff]
    %v29 = vld [vmem:[%s1] sm:$0xff]
    %v30 = vld [vmem:[%s1 + $0x8] sm:$0xff]
    %v31 = vld [vmem:[%s1 + $0x10] sm:$0xff]
    %v32 = vld [vmem:[%s1 + $0x18] sm:$0xff]
    %v33 = vld [vmem:[%s2] sm:$0x1]
    %v35 = vlaneseq
    %v36 = vshrl.u32 %v35, 7
    %v37 = vsub.s32 0, %v36
    %v38 = vrot.slane %v33, %v37
    %vm40 = vcmask 261120
    %v42 = vsel %vm40, %v27, 0
    %v45 = vsel %vm40, %v28, 0
    %47 = vmatprep.subr.mxu0 0.0
    %48 = vmatpush1.msra.mxu0 %v29
    %49 = vmatprep.subr.mxu0 0.0
    %50 = vmatpush1.msra.mxu0 %v30
    %51 = vmatprep.subr.mxu0 0.0
    %52 = vmatpush1.msra.mxu0 %v31
    %53 = vmatprep.subr.mxu0 0.0
    %54 = vmatpush1.msra.mxu0 %v32
    %55 = vmatprep.subr.mxu0 0.0
    %56 = vmatpush1.msra.mxu0 0.0
    %57 = vmatprep.subr.mxu0 0.0
    %58 = vmatpush1.msra.mxu0 0.0
    %59 = vmatprep.subr.mxu0 0.0
    %60 = vmatpush1.msra.mxu0 0.0
    %61 = vmatprep.subr.mxu0 0.0
    %62 = vmatpush1.msra.mxu0 0.0
    %63 = vmatprep.subr.mxu0 0.0
    %64 = vmatpush1.msra.mxu0 0.0
    %65 = vmatprep.subr.mxu0 0.0
    %66 = vmatpush1.msra.mxu0 0.0
    %67 = vmatprep.subr.mxu0 0.0
    %68 = vmatpush1.msra.mxu0 0.0
    %69 = vmatprep.subr.mxu0 0.0
    %70 = vmatpush1.msra.mxu0 0.0
    %71 = vmatprep.subr.mxu0 0.0
    %72 = vmatpush1.msra.mxu0 0.0
    %73 = vmatprep.subr.mxu0 0.0
    %74 = vmatpush1.msra.mxu0 0.0
    %75 = vmatprep.subr.mxu0 0.0
    %76 = vmatpush1.msra.mxu0 0.0
    %77 = vmatprep.subr.mxu0 0.0
    %78 = vmatpush1.msra.mxu0 0.0
    %79 = vmatprep.subr.mxu0 0.0
    %80 = vmatpush1.msra.mxu0 0.0
    %81 = vmatprep.subr.mxu0 0.0
    %82 = vmatpush1.msra.mxu0 0.0
    %83 = vmatprep.subr.mxu0 0.0
    %84 = vmatpush1.msra.mxu0 0.0
    %85 = vmatprep.subr.mxu0 0.0
    %86 = vmatpush1.msra.mxu0 0.0
    %87 = vmatprep.subr.mxu0 0.0
    %88 = vmatpush1.msra.mxu0 0.0
    %89 = vmatprep.subr.mxu0 0.0
    %90 = vmatpush1.msra.mxu0 0.0
    %91 = vmatprep.subr.mxu0 0.0
    %92 = vmatpush1.msra.mxu0 0.0
    %93 = vmatprep.subr.mxu0 0.0
    %94 = vmatpush1.msra.mxu0 0.0
    %95 = vmatprep.subr.mxu0 0.0
    %96 = vmatpush1.msra.mxu0 0.0
    %97 = vmatprep.subr.mxu0 0.0
    %98 = vmatpush1.msra.mxu0 0.0
    %99 = vmatprep.subr.mxu0 0.0
    %100 = vmatpush1.msra.mxu0 0.0
    %101 = vmatprep.subr.mxu0 0.0
    %102 = vmatpush1.msra.mxu0 0.0
    %103 = vmatprep.subr.mxu0 0.0
    %104 = vmatpush1.msra.mxu0 0.0
    %105 = vmatprep.subr.mxu0 0.0
    %106 = vmatpush1.msra.mxu0 0.0
    %107 = vmatprep.subr.mxu0 0.0
    %108 = vmatpush1.msra.mxu0 0.0
    %109 = vmatprep.subr.mxu0 0.0
    %110 = vmatpush1.msra.mxu0 0.0
    %111 = vmatprep.mubr.f32.mxu0 0.0
    %112 = vmatmul.mubr.f32.gmra.mrb[0].mxu0 %v42
    %v113 = vpop.f32.mrb[0].mxu0
    %v114 = vadd.f32 %v38, %v113
    %v115 = vpop.f32.mrb[0].mxu0
    %116 = vmatprep.mubr.f32.mxu0 0.0
    %117 = vmatmul.mubr.f32.gmra.mrb[0].mxu0 %v45
    %v118 = vpop.f32.mrb[0].mxu0
    %v119 = vadd.f32 %v38, %v118
    %v120 = vpop.f32.mrb[0].mxu0
    %121 = vdwg.mxu0
    %v122 = vmax.f32 %v114, 0.0
    %v123 = vmax.f32 %v119, 0.0
    %v124 = vld [vmem:[%s3] sm:$0xff]
    %v125 = vld [vmem:[%s3 + $0x8] sm:$0xff]
    %v126 = vld [vmem:[%s3 + $0x10] sm:$0xff]
    %v127 = vld [vmem:[%s3 + $0x18] sm:$0xff]
    %v128 = vld [vmem:[%s3 + $0x20] sm:$0xff]
    %v129 = vld [vmem:[%s3 + $0x28] sm:$0xff]
    %v130 = vld [vmem:[%s3 + $0x30] sm:$0xff]
    %v131 = vld [vmem:[%s3 + $0x38] sm:$0xff]
    %v132 = vld [vmem:[%s4] sm:$0x1]
    %v134 = vlaneseq
    %v135 = vshrl.u32 %v134, 7
    %v136 = vsub.s32 0, %v135
    %v137 = vrot.slane %v132, %v136
    %vm139 = vcmask 523264
    %v141 = vsel %vm139, %v122, 0
    %v144 = vsel %vm139, %v123, 0
    %146 = vmatprep.subr.mxu0 0.0
    %147 = vmatpush1.msra.mxu0 %v124
    %148 = vmatprep.subr.mxu0 0.0
    %149 = vmatpush1.msra.mxu0 %v125
    %150 = vmatprep.subr.mxu0 0.0
    %151 = vmatpush1.msra.mxu0 %v126
    %152 = vmatprep.subr.mxu0 0.0
    %153 = vmatpush1.msra.mxu0 %v127
    %154 = vmatprep.subr.mxu0 0.0
    %155 = vmatpush1.msra.mxu0 %v128
    %156 = vmatprep.subr.mxu0 0.0
    %157 = vmatpush1.msra.mxu0 %v129
    %158 = vmatprep.subr.mxu0 0.0
    %159 = vmatpush1.msra.mxu0 %v130
    %160 = vmatprep.subr.mxu0 0.0
    %161 = vmatpush1.msra.mxu0 %v131
    %162 = vmatprep.subr.mxu0 0.0
    %163 = vmatpush1.msra.mxu0 0.0
    %164 = vmatprep.subr.mxu0 0.0
    %165 = vmatpush1.msra.mxu0 0.0
    %166 = vmatprep.subr.mxu0 0.0
    %167 = vmatpush1.msra.mxu0 0.0
    %168 = vmatprep.subr.mxu0 0.0
    %169 = vmatpush1.msra.mxu0 0.0
    %170 = vmatprep.subr.mxu0 0.0
    %171 = vmatpush1.msra.mxu0 0.0
    %172 = vmatprep.subr.mxu0 0.0
    %173 = vmatpush1.msra.mxu0 0.0
    %174 = vmatprep.subr.mxu0 0.0
    %175 = vmatpush1.msra.mxu0 0.0
    %176 = vmatprep.subr.mxu0 0.0
    %177 = vmatpush1.msra.mxu0 0.0
    %178 = vmatprep.subr.mxu0 0.0
    %179 = vmatpush1.msra.mxu0 0.0
    %180 = vmatprep.subr.mxu0 0.0
    %181 = vmatpush1.msra.mxu0 0.0
    %182 = vmatprep.subr.mxu0 0.0
    %183 = vmatpush1.msra.mxu0 0.0
    %184 = vmatprep.subr.mxu0 0.0
    %185 = vmatpush1.msra.mxu0 0.0
    %186 = vmatprep.subr.mxu0 0.0
    %187 = vmatpush1.msra.mxu0 0.0
    %188 = vmatprep.subr.mxu0 0.0
    %189 = vmatpush1.msra.mxu0 0.0
    %190 = vmatprep.subr.mxu0 0.0
    %191 = vmatpush1.msra.mxu0 0.0
    %192 = vmatprep.subr.mxu0 0.0
    %193 = vmatpush1.msra.mxu0 0.0
    %194 = vmatprep.subr.mxu0 0.0
    %195 = vmatpush1.msra.mxu0 0.0
    %196 = vmatprep.subr.mxu0 0.0
    %197 = vmatpush1.msra.mxu0 0.0
    %198 = vmatprep.subr.mxu0 0.0
    %199 = vmatpush1.msra.mxu0 0.0
    %200 = vmatprep.subr.mxu0 0.0
    %201 = vmatpush1.msra.mxu0 0.0
    %202 = vmatprep.subr.mxu0 0.0
    %203 = vmatpush1.msra.mxu0 0.0
    %204 = vmatprep.subr.mxu0 0.0
    %205 = vmatpush1.msra.mxu0 0.0
    %206 = vmatprep.subr.mxu0 0.0
    %207 = vmatpush1.msra.mxu0 0.0
    %208 = vmatprep.subr.mxu0 0.0
    %209 = vmatpush1.msra.mxu0 0.0
    %210 = vmatprep.mubr.f32.mxu0 0.0
    %211 = vmatmul.mubr.f32.gmra.mrb[0].mxu0 %v141
    %v212 = vpop.f32.mrb[0].mxu0
    %v213 = vadd.f32 %v137, %v212
    %v214 = vpop.f32.mrb[0].mxu0
    %215 = vmatprep.mubr.f32.mxu0 0.0
    %216 = vmatmul.mubr.f32.gmra.mrb[0].mxu0 %v144
    %v217 = vpop.f32.mrb[0].mxu0
    %v218 = vadd.f32 %v137, %v217
    %v219 = vpop.f32.mrb[0].mxu0
    %220 = vdwg.mxu0
    %v221 = vadd.f32 %v27, %v213
    %v222 = vadd.f32 %v28, %v218
    %v223 = vsel %vm40, %v221, 0.0
    %224 = vadd.xlane.f32.xlu0 %v223
    %v225 = vpop.xlane.xlu0 %224
    %v226 = vsel %vm40, %v222, 0.0
    %227 = vadd.xlane.f32.xlu0 %v226
    %v228 = vpop.xlane.xlu0 %227
    %v229 = vrcp.pop 32.0
    %v230 = vmul.f32 %v225, %v229
    %v231 = vmul.f32 %v228, %v229
    %v232 = vsub.f32 %v221, %v230
    %v233 = vsub.f32 %v222, %v231
    %v234 = vmul.f32 %v232, %v232
    %v235 = vmul.f32 %v233, %v233
    %v236 = vsel %vm40, %v234, 0.0
    %237 = vadd.xlane.f32.xlu0 %v236
    %v238 = vpop.xlane.xlu0 %237
    %v239 = vsel %vm40, %v235, 0.0
    %240 = vadd.xlane.f32.xlu0 %v239
    %v241 = vpop.xlane.xlu0 %240
    %v242 = vmul.f32 %v238, %v229
    %v243 = vmul.f32 %v241, %v229
    %v244 = vadd.f32 %v242, 1e-05
    %v245 = vadd.f32 %v243, 1e-05
    %v246 = vrsqrt.pop %v244
    %v247 = vrsqrt.pop %v245
    %v248 = vmul.f32 %v232, %v246
    %v249 = vmul.f32 %v233, %v247
    %v250 = vld [vmem:[%s5] sm:$0x1]
    %v252 = vlaneseq
    %v253 = vshrl.u32 %v252, 7
    %v254 = vsub.s32 0, %v253
    %v255 = vrot.slane %v250, %v254
    %v257 = vmul.f32 %v248, %v255
    %v258 = vmul.f32 %v249, %v255
    %v259 = vld [vmem:[%s6] sm:$0x1]
    %v261 = vlaneseq
    %v262 = vshrl.u32 %v261, 7
    %v263 = vsub.s32 0, %v262
    %v264 = vrot.slane %v259, %v263
    %v266 = vadd.f32 %v257, %v264
    %v267 = vadd.f32 %v258, %v264
    %268 = vst.msk [vmem:[#allocation2] sm:$0xff] %vm40, %v266
    %269 = vst.msk [vmem:[#allocation2 + $0x8] sm:$0xff] %vm40, %v267
    // Predicated region
    $region30: #{decoder_layer_forward.15} parent=1 // pred_check
      _
    $region31: #{decoder_layer_forward.15} parent=1 // pred_check_branch
      %271 = sbr.rel (0) target = $region33
    $region32: #{decoder_layer_forward.15} parent=1 // pred_region
      %s273 = ssub.s32 256, 256
      %274 = vsyncadd [#allocation3], %s273
      %s275 = sshll.u32 [#allocation2], 4
      %s276 = int_to_ptr.vmem [resolvable:$true] %s275
      %281 = dma.vmem_to_hbm [thread:$0]  %s276, 256, %s7, [#allocation3], 128, 128, 8
    $region33: #{decoder_layer_forward.15} parent=1 // pred_fallthru
      _
    // Predicated region
    $region34: #{decoder_layer_forward.15} parent=1 // pred_check
      _
    $region35: #{decoder_layer_forward.15} parent=1 // pred_check_branch
      %283 = sbr.rel (0) target = $region37
    $region36: #{decoder_layer_forward.15} parent=1 // pred_region
      %284 = dma.done [#allocation3], 256
    $region37: #{decoder_layer_forward.15} parent=1 // pred_fallthru
      _
    %285 = vsyncpa [#allocation3], 1

// kernel: decoder_layer_forward.13
$region0: #{decoder_layer_forward.13}
  #allocation0 [shape = 'u32[]', space=smem, size = 0x4, offset = 0x4, fixed_abs, tag = 'smem constant byte address 0x4 - core index']
  #allocation1 [shape = 'u32[144,128]{1,0:T(1,128)}', space=vmem, size = 0x12000, scoped, tag = 'internal scratch']
  %s0 = inlined_call_operand.vmem [shape: f32[8,8,22], index: 0, kind: input, shape index: {}]
  %s1 = inlined_call_operand.vmem [shape: f32[8,6,22], index: 1, kind: input, shape index: {}]
  %s2 = inlined_call_operand.vmem [shape: f32[8,6,20], index: 2, kind: input, shape index: {}]
  %s3 = inlined_call_operand.vmem [shape: f32[8,8,20], index: 3, kind: output, shape index: {}]
  %s4 = sld [smem:[#allocation0]]
  $region22: #{decoder_layer_forward.13} parent=0
    _
  %s6 = ssub.s32 1, %s4
  %s7 = scalar_select 0, %s6, %s4
  // Predicated region
  $region2: #{decoder_layer_forward.13} parent=0 // pred_check
    _
  $region3: #{decoder_layer_forward.13} parent=0 // pred_check_branch
    %9 = sbr.rel (0) target = $region5
  $region4: #{decoder_layer_forward.13} parent=0 // pred_region
    _
  $region5: #{decoder_layer_forward.13} parent=0 // pred_fallthru
    _
  // Predicated region
  $region6: #{decoder_layer_forward.13} parent=0 // pred_check
    _
  $region7: #{decoder_layer_forward.13} parent=0 // pred_check_branch
    %11 = sbr.rel (0) target = $region9
  $region8: #{decoder_layer_forward.13} parent=0 // pred_region
    _
  $region9: #{decoder_layer_forward.13} parent=0 // pred_fallthru
    _
  // Predicated region
  $region10: #{decoder_layer_forward.13} parent=0 // pred_check
    _
  $region11: #{decoder_layer_forward.13} parent=0 // pred_check_branch
    %13 = sbr.rel (0) target = $region13
  $region12: #{decoder_layer_forward.13} parent=0 // pred_region
    _
  $region13: #{decoder_layer_forward.13} parent=0 // pred_fallthru
    _
  %v14 = vld [vmem:[%s0] sm:$0xff]
  %v15 = vld [vmem:[%s0 + $0x8] sm:$0xff]
  %v16 = vld [vmem:[%s0 + $0x10] sm:$0xff]
  %v17 = vld [vmem:[%s0 + $0x18] sm:$0xff]
  %v18 = vld [vmem:[%s0 + $0x20] sm:$0xff]
  %v19 = vld [vmem:[%s0 + $0x28] sm:$0xff]
  %v20 = vld [vmem:[%s0 + $0x30] sm:$0xff]
  %v21 = vld [vmem:[%s0 + $0x38] sm:$0xff]
  %v22 = vld [vmem:[%s1] sm:$0x3f]
  %v23 = vld [vmem:[%s1 + $0x8] sm:$0x3f]
  %v24 = vld [vmem:[%s1 + $0x10] sm:$0x3f]
  %v25 = vld [vmem:[%s1 + $0x18] sm:$0x3f]
  %v26 = vld [vmem:[%s1 + $0x20] sm:$0x3f]
  %v27 = vld [vmem:[%s1 + $0x28] sm:$0x3f]
  %v28 = vld [vmem:[%s1 + $0x30] sm:$0x3f]
  %v29 = vld [vmem:[%s1 + $0x38] sm:$0x3f]
  %vm30 = vcmask 179200
  %v32 = vsel %vm30, %v14, 0
  %v35 = vsel %vm30, %v22, 0
  %37 = vmatprep.subr.mxu0 0.0
  %38 = vmatpush1.xpose.msra.mxu0 %v35
  %39 = vmatprep.subr.mxu0 0.0
  %40 = vmatpush1.xpose.msra.mxu0 0.0
  %41 = vmatprep.subr.mxu0 0.0
  %42 = vmatpush1.xpose.msra.mxu0 0.0
  %43 = vmatprep.subr.mxu0 0.0
  %44 = vmatpush1.xpose.msra.mxu0 0.0
  %45 = vmatprep.subr.mxu0 0.0
  %46 = vmatpush1.xpose.msra.mxu0 0.0
  %47 = vmatprep.subr.mxu0 0.0
  %48 = vmatpush1.xpose.msra.mxu0 0.0
  %49 = vmatprep.subr.mxu0 0.0
  %50 = vmatpush1.xpose.msra.mxu0 0.0
  %51 = vmatprep.subr.mxu0 0.0
  %52 = vmatpush1.xpose.msra.mxu0 0.0
  %53 = vmatprep.subr.mxu0 0.0
  %54 = vmatpush1.xpose.msra.mxu0 0.0
  %55 = vmatprep.subr.mxu0 0.0
  %56 = vmatpush1.xpose.msra.mxu0 0.0
  %57 = vmatprep.subr.mxu0 0.0
  %58 = vmatpush1.xpose.msra.mxu0 0.0
  %59 = vmatprep.subr.mxu0 0.0
  %60 = vmatpush1.xpose.msra.mxu0 0.0
  %61 = vmatprep.subr.mxu0 0.0
  %62 = vmatpush1.xpose.msra.mxu0 0.0
  %63 = vmatprep.subr.mxu0 0.0
  %64 = vmatpush1.xpose.msra.mxu0 0.0
  %65 = vmatprep.subr.mxu0 0.0
  %66 = vmatpush1.xpose.msra.mxu0 0.0
  %67 = vmatprep.subr.mxu0 0.0
  %68 = vmatpush1.xpose.msra.mxu0 0.0
  %69 = vmatprep.subr.mxu0 0.0
  %70 = vmatpush1.xpose.msra.mxu0 0.0
  %71 = vmatprep.subr.mxu0 0.0
  %72 = vmatpush1.xpose.msra.mxu0 0.0
  %73 = vmatprep.subr.mxu0 0.0
  %74 = vmatpush1.xpose.msra.mxu0 0.0
  %75 = vmatprep.subr.mxu0 0.0
  %76 = vmatpush1.xpose.msra.mxu0 0.0
  %77 = vmatprep.subr.mxu0 0.0
  %78 = vmatpush1.xpose.msra.mxu0 0.0
  %79 = vmatprep.subr.mxu0 0.0
  %80 = vmatpush1.xpose.msra.mxu0 0.0
  %81 = vmatprep.subr.mxu0 0.0
  %82 = vmatpush1.xpose.msra.mxu0 0.0
  %83 = vmatprep.subr.mxu0 0.0
  %84 = vmatpush1.xpose.msra.mxu0 0.0
  %85 = vmatprep.subr.mxu0 0.0
  %86 = vmatpush1.xpose.msra.mxu0 0.0
  %87 = vmatprep.subr.mxu0 0.0
  %88 = vmatpush1.xpose.msra.mxu0 0.0
  %89 = vmatprep.subr.mxu0 0.0
  %90 = vmatpush1.xpose.msra.mxu0 0.0
  %91 = vmatprep.subr.mxu0 0.0
  %92 = vmatpush1.xpose.msra.mxu0 0.0
  %93 = vmatprep.subr.mxu0 0.0
  %94 = vmatpush1.xpose.msra.mxu0 0.0
  %95 = vmatprep.subr.mxu0 0.0
  %96 = vmatpush1.xpose.msra.mxu0 0.0
  %97 = vmatprep.subr.mxu0 0.0
  %98 = vmatpush1.xpose.msra.mxu0 0.0
  %99 = vmatprep.subr.mxu0 0.0
  %100 = vmatpush1.xpose.msra.mxu0 0.0
  %101 = vmatprep.mubr.f32.mxu0 0.0
  %102 = vmatmul.mubr.f32.gmra.mrb[0].mxu0 %v32
  %v103 = vpop.f32.mrb[0].mxu0
  %v104 = vadd.f32 0.0, %v103
  %v105 = vpop.f32.mrb[0].mxu0
  %106 = vdwg.mxu0
  %v108 = vsel %vm30, %v15, 0
  %v111 = vsel %vm30, %v23, 0
  %113 = vmatprep.subr.mxu0 0.0
  %114 = vmatpush1.xpose.msra.mxu0 %v111
  %115 = vmatprep.subr.mxu0 0.0
  %116 = vmatpush1.xpose.msra.mxu0 0.0
  %117 = vmatprep.subr.mxu0 0.0
  %118 = vmatpush1.xpose.msra.mxu0 0.0
  %119 = vmatprep.subr.mxu0 0.0
  %120 = vmatpush1.xpose.msra.mxu0 0.0
  %121 = vmatprep.subr.mxu0 0.0
  %122 = vmatpush1.xpose.msra.mxu0 0.0
  %123 = vmatprep.subr.mxu0 0.0
  %124 = vmatpush1.xpose.msra.mxu0 0.0
  %125 = vmatprep.subr.mxu0 0.0
  %126 = vmatpush1.xpose.msra.mxu0 0.0
  %127 = vmatprep.subr.mxu0 0.0
  %128 = vmatpush1.xpose.msra.mxu0 0.0
  %129 = vmatprep.subr.mxu0 0.0
  %130 = vmatpush1.xpose.msra.mxu0 0.0
  %131 = vmatprep.subr.mxu0 0.0
  %132 = vmatpush1.xpose.msra.mxu0 0.0
  %133 = vmatprep.subr.mxu0 0.0
  %134 = vmatpush1.xpose.msra.mxu0 0.0
  %135 = vmatprep.subr.mxu0 0.0
  %136 = vmatpush1.xpose.msra.mxu0 0.0
  %137 = vmatprep.subr.mxu0 0.0
  %138 = vmatpush1.xpose.msra.mxu0 0.0
  %139 = vmatprep.subr.mxu0 0.0
  %140 = vmatpush1.xpose.msra.mxu0 0.0
  %141 = vmatprep.subr.mxu0 0.0
  %142 = vmatpush1.xpose.msra.mxu0 0.0
  %143 = vmatprep.subr.mxu0 0.0
  %144 = vmatpush1.xpose.msra.mxu0 0.0
  %145 = vmatprep.subr.mxu0 0.0
  %146 = vmatpush1.xpose.msra.mxu0 0.0
  %147 = vmatprep.subr.mxu0 0.0
  %148 = vmatpush1.xpose.msra.mxu0 0.0
  %149 = vmatprep.subr.mxu0 0.0
  %150 = vmatpush1.xpose.msra.mxu0 0.0
  %151 = vmatprep.subr.mxu0 0.0
  %152 = vmatpush1.xpose.msra.mxu0 0.0
  %153 = vmatprep.subr.mxu0 0.0
  %154 = vmatpush1.xpose.msra.mxu0 0.0
  %155 = vmatprep.subr.mxu0 0.0
  %156 = vmatpush1.xpose.msra.mxu0 0.0
  %157 = vmatprep.subr.mxu0 0.0
  %158 = vmatpush1.xpose.msra.mxu0 0.0
  %159 = vmatprep.subr.mxu0 0.0
  %160 = vmatpush1.xpose.msra.mxu0 0.0
  %161 = vmatprep.subr.mxu0 0.0
  %162 = vmatpush1.xpose.msra.mxu0 0.0
  %163 = vmatprep.subr.mxu0 0.0
  %164 = vmatpush1.xpose.msra.mxu0 0.0
  %165 = vmatprep.subr.mxu0 0.0
  %166 = vmatpush1.xpose.msra.mxu0 0.0
  %167 = vmatprep.subr.mxu0 0.0
  %168 = vmatpush1.xpose.msra.mxu0 0.0
  %169 = vmatprep.subr.mxu0 0.0
  %170 = vmatpush1.xpose.msra.mxu0 0.0
  %171 = vmatprep.subr.mxu0 0.0
  %172 = vmatpush1.xpose.msra.mxu0 0.0
  %173 = vmatprep.subr.mxu0 0.0
  %174 = vmatpush1.xpose.msra.mxu0 0.0
  %175 = vmatprep.subr.mxu0 0.0
  %176 = vmatpush1.xpose.msra.mxu0 0.0
  %177 = vmatprep.mubr.f32.mxu0 0.0
  %178 = vmatmul.mubr.f32.gmra.mrb[0].mxu0 %v108
  %v179 = vpop.f32.mrb[0].mxu0
  %v180 = vadd.f32 0.0, %v179
  %v181 = vpop.f32.mrb[0].mxu0
  %182 = vdwg.mxu0
  %v184 = vsel %vm30, %v16, 0
  %v187 = vsel %vm30, %v24, 0
  %189 = vmatprep.subr.mxu0 0.0
  %190 = vmatpush1.xpose.msra.mxu0 %v187
  %191 = vmatprep.subr.mxu0 0.0
  %192 = vmatpush1.xpose.msra.mxu0 0.0
  %193 = vmatprep.subr.mxu0 0.0
  %194 = vmatpush1.xpose.msra.mxu0 0.0
  %195 = vmatprep.subr.mxu0 0.0
  %196 = vmatpush1.xpose.msra.mxu0 0.0
  %197 = vmatprep.subr.mxu0 0.0
  %198 = vmatpush1.xpose.msra.mxu0 0.0
  %199 = vmatprep.subr.mxu0 0.0
  %200 = vmatpush1.xpose.msra.mxu0 0.0
  %201 = vmatprep.subr.mxu0 0.0
  %202 = vmatpush1.xpose.msra.mxu0 0.0
  %203 = vmatprep.subr.mxu0 0.0
  %204 = vmatpush1.xpose.msra.mxu0 0.0
  %205 = vmatprep.subr.mxu0 0.0
  %206 = vmatpush1.xpose.msra.mxu0 0.0
  %207 = vmatprep.subr.mxu0 0.0
  %208 = vmatpush1.xpose.msra.mxu0 0.0
  %209 = vmatprep.subr.mxu0 0.0
  %210 = vmatpush1.xpose.msra.mxu0 0.0
  %211 = vmatprep.subr.mxu0 0.0
  %212 = vmatpush1.xpose.msra.mxu0 0.0
  %213 = vmatprep.subr.mxu0 0.0
  %214 = vmatpush1.xpose.msra.mxu0 0.0
  %215 = vmatprep.subr.mxu0 0.0
  %216 = vmatpush1.xpose.msra.mxu0 0.0
  %217 = vmatprep.subr.mxu0 0.0
  %218 = vmatpush1.xpose.msra.mxu0 0.0
  %219 = vmatprep.subr.mxu0 0.0
  %220 = vmatpush1.xpose.msra.mxu0 0.0
  %221 = vmatprep.subr.mxu0 0.0
  %222 = vmatpush1.xpose.msra.mxu0 0.0
  %223 = vmatprep.subr.mxu0 0.0
  %224 = vmatpush1.xpose.msra.mxu0 0.0
  %225 = vmatprep.subr.mxu0 0.0
  %226 = vmatpush1.xpose.msra.mxu0 0.0
  %227 = vmatprep.subr.mxu0 0.0
  %228 = vmatpush1.xpose.msra.mxu0 0.0
  %229 = vmatprep.subr.mxu0 0.0
  %230 = vmatpush1.xpose.msra.mxu0 0.0
  %231 = vmatprep.subr.mxu0 0.0
  %232 = vmatpush1.xpose.msra.mxu0 0.0
  %233 = vmatprep.subr.mxu0 0.0
  %234 = vmatpush1.xpose.msra.mxu0 0.0
  %235 = vmatprep.subr.mxu0 0.0
  %236 = vmatpush1.xpose.msra.mxu0 0.0
  %237 = vmatprep.subr.mxu0 0.0
  %238 = vmatpush1.xpose.msra.mxu0 0.0
  %239 = vmatprep.subr.mxu0 0.0
  %240 = vmatpush1.xpose.msra.mxu0 0.0
  %241 = vmatprep.subr.mxu0 0.0
  %242 = vmatpush1.xpose.msra.mxu0 0.0
  %243 = vmatprep.subr.mxu0 0.0
  %244 = vmatpush1.xpose.msra.mxu0 0.0
  %245 = vmatprep.subr.mxu0 0.0
  %246 = vmatpush1.xpose.msra.mxu0 0.0
  %247 = vmatprep.subr.mxu0 0.0
  %248 = vmatpush1.xpose.msra.mxu0 0.0
  %249 = vmatprep.subr.mxu0 0.0
  %250 = vmatpush1.xpose.msra.mxu0 0.0
  %251 = vmatprep.subr.mxu0 0.0
  %252 = vmatpush1.xpose.msra.mxu0 0.0
  %253 = vmatprep.mubr.f32.mxu0 0.0
  %254 = vmatmul.mubr.f32.gmra.mrb[0].mxu0 %v184
  %v255 = vpop.f32.mrb[0].mxu0
  %v256 = vadd.f32 0.0, %v255
  %v257 = vpop.f32.mrb[0].mxu0
  %258 = vdwg.mxu0
  %v260 = vsel %vm30, %v17, 0
  %v263 = vsel %vm30, %v25, 0
  %265 = vmatprep.subr.mxu0 0.0
  %266 = vmatpush1.xpose.msra.mxu0 %v263
  %267 = vmatprep.subr.mxu0 0.0
  %268 = vmatpush1.xpose.msra.mxu0 0.0
  %269 = vmatprep.subr.mxu0 0.0
  %270 = vmatpush1.xpose.msra.mxu0 0.0
  %271 = vmatprep.subr.mxu0 0.0
  %272 = vmatpush1.xpose.msra.mxu0 0.0
  %273 = vmatprep.subr.mxu0 0.0
  %274 = vmatpush1.xpose.msra.mxu0 0.0
  %275 = vmatprep.subr.mxu0 0.0
  %276 = vmatpush1.xpose.msra.mxu0 0.0
  %277 = vmatprep.subr.mxu0 0.0
  %278 = vmatpush1.xpose.msra.mxu0 0.0
  %279 = vmatprep.subr.mxu0 0.0
  %280 = vmatpush1.xpose.msra.mxu0 0.0
  %281 = vmatprep.subr.mxu0 0.0
  %282 = vmatpush1.xpose.msra.mxu0 0.0
  %283 = vmatprep.subr.mxu0 0.0
  %284 = vmatpush1.xpose.msra.mxu0 0.0
  %285 = vmatprep.subr.mxu0 0.0
  %286 = vmatpush1.xpose.msra.mxu0 0.0
  %287 = vmatprep.subr.mxu0 0.0
  %288 = vmatpush1.xpose.msra.mxu0 0.0
  %289 = vmatprep.subr.mxu0 0.0
  %290 = vmatpush1.xpose.msra.mxu0 0.0
  %291 = vmatprep.subr.mxu0 0.0
  %292 = vmatpush1.xpose.msra.mxu0 0.0
  %293 = vmatprep.subr.mxu0 0.0
  %294 = vmatpush1.xpose.msra.mxu0 0.0
  %295 = vmatprep.subr.mxu0 0.0
  %296 = vmatpush1.xpose.msra.mxu0 0.0
  %297 = vmatprep.subr.mxu0 0.0
  %298 = vmatpush1.xpose.msra.mxu0 0.0
  %299 = vmatprep.subr.mxu0 0.0
  %300 = vmatpush1.xpose.msra.mxu0 0.0
  %301 = vmatprep.subr.mxu0 0.0
  %302 = vmatpush1.xpose.msra.mxu0 0.0
  %303 = vmatprep.subr.mxu0 0.0
  %304 = vmatpush1.xpose.msra.mxu0 0.0
  %305 = vmatprep.subr.mxu0 0.0
  %306 = vmatpush1.xpose.msra.mxu0 0.0
  %307 = vmatprep.subr.mxu0 0.0
  %308 = vmatpush1.xpose.msra.mxu0 0.0
  %309 = vmatprep.subr.mxu0 0.0
  %310 = vmatpush1.xpose.msra.mxu0 0.0
  %311 = vmatprep.subr.mxu0 0.0
  %312 = vmatpush1.xpose.msra.mxu0 0.0
  %313 = vmatprep.subr.mxu0 0.0
  %314 = vmatpush1.xpose.msra.mxu0 0.0
  %315 = vmatprep.subr.mxu0 0.0
  %316 = vmatpush1.xpose.msra.mxu0 0.0
  %317 = vmatprep.subr.mxu0 0.0
  %318 = vmatpush1.xpose.msra.mxu0 0.0
  %319 = vmatprep.subr.mxu0 0.0
  %320 = vmatpush1.xpose.msra.mxu0 0.0
  %321 = vmatprep.subr.mxu0 0.0
  %322 = vmatpush1.xpose.msra.mxu0 0.0
  %323 = vmatprep.subr.mxu0 0.0
  %324 = vmatpush1.xpose.msra.mxu0 0.0
  %325 = vmatprep.subr.mxu0 0.0
  %326 = vmatpush1.xpose.msra.mxu0 0.0
  %327 = vmatprep.subr.mxu0 0.0
  %328 = vmatpush1.xpose.msra.mxu0 0.0
  %329 = vmatprep.mubr.f32.mxu0 0.0
  %330 = vmatmul.mubr.f32.gmra.mrb[0].mxu0 %v260
  %v331 = vpop.f32.mrb[0].mxu0
  %v332 = vadd.f32 0.0, %v331
  %v333 = vpop.f32.mrb[0].mxu0
  %334 = vdwg.mxu0
  %v336 = vsel %vm30, %v18, 0
  %v339 = vsel %vm30, %v26, 0
  %341 = vmatprep.subr.mxu0 0.0
  %342 = vmatpush1.xpose.msra.mxu0 %v339
  %343 = vmatprep.subr.mxu0 0.0
  %344 = vmatpush1.xpose.msra.mxu0 0.0
  %345 = vmatprep.subr.mxu0 0.0
  %346 = vmatpush1.xpose.msra.mxu0 0.0
  %347 = vmatprep.subr.mxu0 0.0
  %348 = vmatpush1.xpose.msra.mxu0 0.0
  %349 = vmatprep.subr.mxu0 0.0
  %350 = vmatpush1.xpose.msra.mxu0 0.0
  %351 = vmatprep.subr.mxu0 0.0
  %352 = vmatpush1.xpose.msra.mxu0 0.0
  %353 = vmatprep.subr.mxu0 0.0
  %354 = vmatpush1.xpose.msra.mxu0 0.0
  %355 = vmatprep.subr.mxu0 0.0
  %356 = vmatpush1.xpose.msra.mxu0 0.0
  %357 = vmatprep.subr.mxu0 0.0
  %358 = vmatpush1.xpose.msra.mxu0 0.0
  %359 = vmatprep.subr.mxu0 0.0
  %360 = vmatpush1.xpose.msra.mxu0 0.0
  %361 = vmatprep.subr.mxu0 0.0
  %362 = vmatpush1.xpose.msra.mxu0 0.0
  %363 = vmatprep.subr.mxu0 0.0
  %364 = vmatpush1.xpose.msra.mxu0 0.0
  %365 = vmatprep.subr.mxu0 0.0
  %366 = vmatpush1.xpose.msra.mxu0 0.0
  %367 = vmatprep.subr.mxu0 0.0
  %368 = vmatpush1.xpose.msra.mxu0 0.0
  %369 = vmatprep.subr.mxu0 0.0
  %370 = vmatpush1.xpose.msra.mxu0 0.0
  %371 = vmatprep.subr.mxu0 0.0
  %372 = vmatpush1.xpose.msra.mxu0 0.0
  %373 = vmatprep.subr.mxu0 0.0
  %374 = vmatpush1.xpose.msra.mxu0 0.0
  %375 = vmatprep.subr.mxu0 0.0
  %376 = vmatpush1.xpose.msra.mxu0 0.0
  %377 = vmatprep.subr.mxu0 0.0
  %378 = vmatpush1.xpose.msra.mxu0 0.0
  %379 = vmatprep.subr.mxu0 0.0
  %380 = vmatpush1.xpose.msra.mxu0 0.0
  %381 = vmatprep.subr.mxu0 0.0
  %382 = vmatpush1.xpose.msra.mxu0 0.0
  %383 = vmatprep.subr.mxu0 0.0
  %384 = vmatpush1.xpose.msra.mxu0 0.0
  %385 = vmatprep.subr.mxu0 0.0
  %386 = vmatpush1.xpose.msra.mxu0 0.0
  %387 = vmatprep.subr.mxu0 0.0
  %388 = vmatpush1.xpose.msra.mxu0 0.0
  %389 = vmatprep.subr.mxu0 0.0
  %390 = vmatpush1.xpose.msra.mxu0 0.0
  %391 = vmatprep.subr.mxu0 0.0
  %392 = vmatpush1.xpose.msra.mxu0 0.0
  %393 = vmatprep.subr.mxu0 0.0
  %394 = vmatpush1.xpose.msra.mxu0 0.0
  %395 = vmatprep.subr.mxu0 0.0
  %396 = vmatpush1.xpose.msra.mxu0 0.0
  %397 = vmatprep.subr.mxu0 0.0
  %398 = vmatpush1.xpose.msra.mxu0 0.0
  %399 = vmatprep.subr.mxu0 0.0
  %400 = vmatpush1.xpose.msra.mxu0 0.0
  %401 = vmatprep.subr.mxu0 0.0
  %402 = vmatpush1.xpose.msra.mxu0 0.0
  %403 = vmatprep.subr.mxu0 0.0
  %404 = vmatpush1.xpose.msra.mxu0 0.0
  %405 = vmatprep.mubr.f32.mxu0 0.0
  %406 = vmatmul.mubr.f32.gmra.mrb[0].mxu0 %v336
  %v407 = vpop.f32.mrb[0].mxu0
  %v408 = vadd.f32 0.0, %v407
  %v409 = vpop.f32.mrb[0].mxu0
  %410 = vdwg.mxu0
  %v412 = vsel %vm30, %v19, 0
  %v415 = vsel %vm30, %v27, 0
  %417 = vmatprep.subr.mxu0 0.0
  %418 = vmatpush1.xpose.msra.mxu0 %v415
  %419 = vmatprep.subr.mxu0 0.0
  %420 = vmatpush1.xpose.msra.mxu0 0.0
  %421 = vmatprep.subr.mxu0 0.0
  %422 = vmatpush1.xpose.msra.mxu0 0.0
  %423 = vmatprep.subr.mxu0 0.0
  %424 = vmatpush1.xpose.msra.mxu0 0.0
  %425 = vmatprep.subr.mxu0 0.0
  %426 = vmatpush1.xpose.msra.mxu0 0.0
  %427 = vmatprep.subr.mxu0 0.0
  %428 = vmatpush1.xpose.msra.mxu0 0.0
  %429 = vmatprep.subr.mxu0 0.0
  %430 = vmatpush1.xpose.msra.mxu0 0.0
  %431 = vmatprep.subr.mxu0 0.0
  %432 = vmatpush1.xpose.msra.mxu0 0.0
  %433 = vmatprep.subr.mxu0 0.0
  %434 = vmatpush1.xpose.msra.mxu0 0.0
  %435 = vmatprep.subr.mxu0 0.0
  %436 = vmatpush1.xpose.msra.mxu0 0.0
  %437 = vmatprep.subr.mxu0 0.0
  %438 = vmatpush1.xpose.msra.mxu0 0.0
  %439 = vmatprep.subr.mxu0 0.0
  %440 = vmatpush1.xpose.msra.mxu0 0.0
  %441 = vmatprep.subr.mxu0 0.0
  %442 = vmatpush1.xpose.msra.mxu0 0.0
  %443 = vmatprep.subr.mxu0 0.0
  %444 = vmatpush1.xpose.msra.mxu0 0.0
  %445 = vmatprep.subr.mxu0 0.0
  %446 = vmatpush1.xpose.msra.mxu0 0.0
  %447 = vmatprep.subr.mxu0 0.0
  %448 = vmatpush1.xpose.msra.mxu0 0.0
  %449 = vmatprep.subr.mxu0 0.0
  %450 = vmatpush1.xpose.msra.mxu0 0.0
  %451 = vmatprep.subr.mxu0 0.0
  %452 = vmatpush1.xpose.msra.mxu0 0.0
  %453 = vmatprep.subr.mxu0 0.0
  %454 = vmatpush1.xpose.msra.mxu0 0.0
  %455 = vmatprep.subr.mxu0 0.0
  %456 = vmatpush1.xpose.msra.mxu0 0.0
  %457 = vmatprep.subr.mxu0 0.0
  %458 = vmatpush1.xpose.msra.mxu0 0.0
  %459 = vmatprep.subr.mxu0 0.0
  %460 = vmatpush1.xpose.msra.mxu0 0.0
  %461 = vmatprep.subr.mxu0 0.0
  %462 = vmatpush1.xpose.msra.mxu0 0.0
  %463 = vmatprep.subr.mxu0 0.0
  %464 = vmatpush1.xpose.msra.mxu0 0.0
  %465 = vmatprep.subr.mxu0 0.0
  %466 = vmatpush1.xpose.msra.mxu0 0.0
  %467 = vmatprep.subr.mxu0 0.0
  %468 = vmatpush1.xpose.msra.mxu0 0.0
  %469 = vmatprep.subr.mxu0 0.0
  %470 = vmatpush1.xpose.msra.mxu0 0.0
  %471 = vmatprep.subr.mxu0 0.0
  %472 = vmatpush1.xpose.msra.mxu0 0.0
  %473 = vmatprep.subr.mxu0 0.0
  %474 = vmatpush1.xpose.msra.mxu0 0.0
  %475 = vmatprep.subr.mxu0 0.0
  %476 = vmatpush1.xpose.msra.mxu0 0.0
  %477 = vmatprep.subr.mxu0 0.0
  %478 = vmatpush1.xpose.msra.mxu0 0.0
  %479 = vmatprep.subr.mxu0 0.0
  %480 = vmatpush1.xpose.msra.mxu0 0.0
  %481 = vmatprep.mubr.f32.mxu0 0.0
  %482 = vmatmul.mubr.f32.gmra.mrb[0].mxu0 %v412
  %v483 = vpop.f32.mrb[0].mxu0
  %v484 = vadd.f32 0.0, %v483
  %v485 = vpop.f32.mrb[0].mxu0
  %486 = vdwg.mxu0
  %v488 = vsel %vm30, %v20, 0
  %v491 = vsel %vm30, %v28, 0
  %493 = vmatprep.subr.mxu0 0.0
  %494 = vmatpush1.xpose.msra.mxu0 %v491
  %495 = vmatprep.subr.mxu0 0.0
  %496 = vmatpush1.xpose.msra.mxu0 0.0
  %497 = vmatprep.subr.mxu0 0.0
  %498 = vmatpush1.xpose.msra.mxu0 0.0
  %499 = vmatprep.subr.mxu0 0.0
  %500 = vmatpush1.xpose.msra.mxu0 0.0
  %501 = vmatprep.subr.mxu0 0.0
  %502 = vmatpush1.xpose.msra.mxu0 0.0
  %503 = vmatprep.subr.mxu0 0.0
  %504 = vmatpush1.xpose.msra.mxu0 0.0
  %505 = vmatprep.subr.mxu0 0.0
  %506 = vmatpush1.xpose.msra.mxu0 0.0
  %507 = vmatprep.subr.mxu0 0.0
  %508 = vmatpush1.xpose.msra.mxu0 0.0
  %509 = vmatprep.subr.mxu0 0.0
  %510 = vmatpush1.xpose.msra.mxu0 0.0
  %511 = vmatprep.subr.mxu0 0.0
  %512 = vmatpush1.xpose.msra.mxu0 0.0
  %513 = vmatprep.subr.mxu0 0.0
  %514 = vmatpush1.xpose.msra.mxu0 0.0
  %515 = vmatprep.subr.mxu0 0.0
  %516 = vmatpush1.xpose.msra.mxu0 0.0
  %517 = vmatprep.subr.mxu0 0.0
  %518 = vmatpush1.xpose.msra.mxu0 0.0
  %519 = vmatprep.subr.mxu0 0.0
  %520 = vmatpush1.xpose.msra.mxu0 0.0
  %521 = vmatprep.subr.mxu0 0.0
  %522 = vmatpush1.xpose.msra.mxu0 0.0
  %523 = vmatprep.subr.mxu0 0.0
  %524 = vmatpush1.xpose.msra.mxu0 0.0
  %525 = vmatprep.subr.mxu0 0.0
  %526 = vmatpush1.xpose.msra.mxu0 0.0
  %527 = vmatprep.subr.mxu0 0.0
  %528 = vmatpush1.xpose.msra.mxu0 0.0
  %529 = vmatprep.subr.mxu0 0.0
  %530 = vmatpush1.xpose.msra.mxu0 0.0
  %531 = vmatprep.subr.mxu0 0.0
  %532 = vmatpush1.xpose.msra.mxu0 0.0
  %533 = vmatprep.subr.mxu0 0.0
  %534 = vmatpush1.xpose.msra.mxu0 0.0
  %535 = vmatprep.subr.mxu0 0.0
  %536 = vmatpush1.xpose.msra.mxu0 0.0
  %537 = vmatprep.subr.mxu0 0.0
  %538 = vmatpush1.xpose.msra.mxu0 0.0
  %539 = vmatprep.subr.mxu0 0.0
  %540 = vmatpush1.xpose.msra.mxu0 0.0
  %541 = vmatprep.subr.mxu0 0.0
  %542 = vmatpush1.xpose.msra.mxu0 0.0
  %543 = vmatprep.subr.mxu0 0.0
  %544 = vmatpush1.xpose.msra.mxu0 0.0
  %545 = vmatprep.subr.mxu0 0.0
  %546 = vmatpush1.xpose.msra.mxu0 0.0
  %547 = vmatprep.subr.mxu0 0.0
  %548 = vmatpush1.xpose.msra.mxu0 0.0
  %549 = vmatprep.subr.mxu0 0.0
  %550 = vmatpush1.xpose.msra.mxu0 0.0
  %551 = vmatprep.subr.mxu0 0.0
  %552 = vmatpush1.xpose.msra.mxu0 0.0
  %553 = vmatprep.subr.mxu0 0.0
  %554 = vmatpush1.xpose.msra.mxu0 0.0
  %555 = vmatprep.subr.mxu0 0.0
  %556 = vmatpush1.xpose.msra.mxu0 0.0
  %557 = vmatprep.mubr.f32.mxu0 0.0
  %558 = vmatmul.mubr.f32.gmra.mrb[0].mxu0 %v488
  %v559 = vpop.f32.mrb[0].mxu0
  %v560 = vadd.f32 0.0, %v559
  %v561 = vpop.f32.mrb[0].mxu0
  %562 = vdwg.mxu0
  %v564 = vsel %vm30, %v21, 0
  %v567 = vsel %vm30, %v29, 0
  %569 = vmatprep.subr.mxu0 0.0
  %570 = vmatpush1.xpose.msra.mxu0 %v567
  %571 = vmatprep.subr.mxu0 0.0
  %572 = vmatpush1.xpose.msra.mxu0 0.0
  %573 = vmatprep.subr.mxu0 0.0
  %574 = vmatpush1.xpose.msra.mxu0 0.0
  %575 = vmatprep.subr.mxu0 0.0
  %576 = vmatpush1.xpose.msra.mxu0 0.0
  %577 = vmatprep.subr.mxu0 0.0
  %578 = vmatpush1.xpose.msra.mxu0 0.0
  %579 = vmatprep.subr.mxu0 0.0
  %580 = vmatpush1.xpose.msra.mxu0 0.0
  %581 = vmatprep.subr.mxu0 0.0
  %582 = vmatpush1.xpose.msra.mxu0 0.0
  %583 = vmatprep.subr.mxu0 0.0
  %584 = vmatpush1.xpose.msra.mxu0 0.0
  %585 = vmatprep.subr.mxu0 0.0
  %586 = vmatpush1.xpose.msra.mxu0 0.0
  %587 = vmatprep.subr.mxu0 0.0
  %588 = vmatpush1.xpose.msra.mxu0 0.0
  %589 = vmatprep.subr.mxu0 0.0
  %590 = vmatpush1.xpose.msra.mxu0 0.0
  %591 = vmatprep.subr.mxu0 0.0
  %592 = vmatpush1.xpose.msra.mxu0 0.0
  %593 = vmatprep.subr.mxu0 0.0
  %594 = vmatpush1.xpose.msra.mxu0 0.0
  %595 = vmatprep.subr.mxu0 0.0
  %596 = vmatpush1.xpose.msra.mxu0 0.0
  %597 = vmatprep.subr.mxu0 0.0
  %598 = vmatpush1.xpose.msra.mxu0 0.0
  %599 = vmatprep.subr.mxu0 0.0
  %600 = vmatpush1.xpose.msra.mxu0 0.0
  %601 = vmatprep.subr.mxu0 0.0
  %602 = vmatpush1.xpose.msra.mxu0 0.0
  %603 = vmatprep.subr.mxu0 0.0
  %604 = vmatpush1.xpose.msra.mxu0 0.0
  %605 = vmatprep.subr.mxu0 0.0
  %606 = vmatpush1.xpose.msra.mxu0 0.0
  %607 = vmatprep.subr.mxu0 0.0
  %608 = vmatpush1.xpose.msra.mxu0 0.0
  %609 = vmatprep.subr.mxu0 0.0
  %610 = vmatpush1.xpose.msra.mxu0 0.0
  %611 = vmatprep.subr.mxu0 0.0
  %612 = vmatpush1.xpose.msra.mxu0 0.0
  %613 = vmatprep.subr.mxu0 0.0
  %614 = vmatpush1.xpose.msra.mxu0 0.0
  %615 = vmatprep.subr.mxu0 0.0
  %616 = vmatpush1.xpose.msra.mxu0 0.0
  %617 = vmatprep.subr.mxu0 0.0
  %618 = vmatpush1.xpose.msra.mxu0 0.0
  %619 = vmatprep.subr.mxu0 0.0
  %620 = vmatpush1.xpose.msra.mxu0 0.0
  %621 = vmatprep.subr.mxu0 0.0
  %622 = vmatpush1.xpose.msra.mxu0 0.0
  %623 = vmatprep.subr.mxu0 0.0
  %624 = vmatpush1.xpose.msra.mxu0 0.0
  %625 = vmatprep.subr.mxu0 0.0
  %626 = vmatpush1.xpose.msra.mxu0 0.0
  %627 = vmatprep.subr.mxu0 0.0
  %628 = vmatpush1.xpose.msra.mxu0 0.0
  %629 = vmatprep.subr.mxu0 0.0
  %630 = vmatpush1.xpose.msra.mxu0 0.0
  %631 = vmatprep.subr.mxu0 0.0
  %632 = vmatpush1.xpose.msra.mxu0 0.0
  %633 = vmatprep.mubr.f32.mxu0 0.0
  %634 = vmatmul.mubr.f32.gmra.mrb[0].mxu0 %v564
  %v635 = vpop.f32.mrb[0].mxu0
  %v636 = vadd.f32 0.0, %v635
  %v637 = vpop.f32.mrb[0].mxu0
  %638 = vdwg.mxu0
  %vm639 = vcmask 48128
  %v640 = vsel %vm639, %v104, -inf
  %641 = vmax.xlane.f32.xlu0 %v640
  %v642 = vpop.xlane.xlu0 %641
  %v643 = vsel %vm639, %v180, -inf
  %644 = vmax.xlane.f32.xlu0 %v643
  %v645 = vpop.xlane.xlu0 %644
  %v646 = vsel %vm639, %v256, -inf
  %647 = vmax.xlane.f32.xlu0 %v646
  %v648 = vpop.xlane.xlu0 %647
  %v649 = vsel %vm639, %v332, -inf
  %650 = vmax.xlane.f32.xlu0 %v649
  %v651 = vpop.xlane.xlu0 %650
  %v652 = vsel %vm639, %v408, -inf
  %653 = vmax.xlane.f32.xlu0 %v652
  %v654 = vpop.xlane.xlu0 %653
  %v655 = vsel %vm639, %v484, -inf
  %656 = vmax.xlane.f32.xlu0 %v655
  %v657 = vpop.xlane.xlu0 %656
  %v658 = vsel %vm639, %v560, -inf
  %659 = vmax.xlane.f32.xlu0 %v658
  %v660 = vpop.xlane.xlu0 %659
  %v661 = vsel %vm639, %v636, -inf
  %662 = vmax.xlane.f32.xlu0 %v661
  %v663 = vpop.xlane.xlu0 %662
  %v664 = vsub.f32 %v104, %v642
  %v665 = vsub.f32 %v180, %v645
  %v666 = vsub.f32 %v256, %v648
  %v667 = vsub.f32 %v332, %v651
  %v668 = vsub.f32 %v408, %v654
  %v669 = vsub.f32 %v484, %v657
  %v670 = vsub.f32 %v560, %v660
  %v671 = vsub.f32 %v636, %v663
  %v672 = vmul.f32 %v664, 1.442695
  %v673 = vpow.pop %v672
  %v674 = vmul.f32 %v665, 1.442695
  %v675 = vpow.pop %v674
  %v676 = vmul.f32 %v666, 1.442695
  %v677 = vpow.pop %v676
  %v678 = vmul.f32 %v667, 1.442695
  %v679 = vpow.pop %v678
  %v680 = vmul.f32 %v668, 1.442695
  %v681 = vpow.pop %v680
  %v682 = vmul.f32 %v669, 1.442695
  %v683 = vpow.pop %v682
  %v684 = vmul.f32 %v670, 1.442695
  %v685 = vpow.pop %v684
  %v686 = vmul.f32 %v671, 1.442695
  %v687 = vpow.pop %v686
  %v688 = vsel %vm639, %v673, 0.0
  %689 = vadd.xlane.f32.xlu0 %v688
  %v690 = vpop.xlane.xlu0 %689
  %v691 = vsel %vm639, %v675, 0.0
  %692 = vadd.xlane.f32.xlu0 %v691
  %v693 = vpop.xlane.xlu0 %692
  %v694 = vsel %vm639, %v677, 0.0
  %695 = vadd.xlane.f32.xlu0 %v694
  %v696 = vpop.xlane.xlu0 %695
  %v697 = vsel %vm639, %v679, 0.0
  %698 = vadd.xlane.f32.xlu0 %v697
  %v699 = vpop.xlane.xlu0 %698
  %v700 = vsel %vm639, %v681, 0.0
  %701 = vadd.xlane.f32.xlu0 %v700
  %v702 = vpop.xlane.xlu0 %701
  %v703 = vsel %vm639, %v683, 0.0
  %704 = vadd.xlane.f32.xlu0 %v703
  %v705 = vpop.xlane.xlu0 %704
  %v706 = vsel %vm639, %v685, 0.0
  %707 = vadd.xlane.f32.xlu0 %v706
  %v708 = vpop.xlane.xlu0 %707
  %v709 = vsel %vm639, %v687, 0.0
  %710 = vadd.xlane.f32.xlu0 %v709
  %v711 = vpop.xlane.xlu0 %710
  %v712 = vrcp.pop %v690
  %v713 = vmul.f32 %v673, %v712
  %v714 = vrcp.pop %v693
  %v715 = vmul.f32 %v675, %v714
  %v716 = vrcp.pop %v696
  %v717 = vmul.f32 %v677, %v716
  %v718 = vrcp.pop %v699
  %v719 = vmul.f32 %v679, %v718
  %v720 = vrcp.pop %v702
  %v721 = vmul.f32 %v681, %v720
  %v722 = vrcp.pop %v705
  %v723 = vmul.f32 %v683, %v722
  %v724 = vrcp.pop %v708
  %v725 = vmul.f32 %v685, %v724
  %v726 = vrcp.pop %v711
  %v727 = vmul.f32 %v687, %v726
  %v728 = vld [vmem:[%s2] sm:$0x3f]
  %v729 = vld [vmem:[%s2 + $0x8] sm:$0x3f]
  %v730 = vld [vmem:[%s2 + $0x10] sm:$0x3f]
  %v731 = vld [vmem:[%s2 + $0x18] sm:$0x3f]
  %v732 = vld [vmem:[%s2 + $0x20] sm:$0x3f]
  %v733 = vld [vmem:[%s2 + $0x28] sm:$0x3f]
  %v734 = vld [vmem:[%s2 + $0x30] sm:$0x3f]
  %v735 = vld [vmem:[%s2 + $0x38] sm:$0x3f]
  %v737 = vsel %vm639, %v713, 0
  %vm739 = vcmask 1045504
  %v741 = vsel %vm739, %v728, 0
  %743 = vmatprep.subr.mxu0 0.0
  %744 = vmatpush1.msra.mxu0 %v741
  %745 = vmatprep.subr.mxu0 0.0
  %746 = vmatpush1.msra.mxu0 0.0
  %747 = vmatprep.subr.mxu0 0.0
  %748 = vmatpush1.msra.mxu0 0.0
  %749 = vmatprep.subr.mxu0 0.0
  %750 = vmatpush1.msra.mxu0 0.0
  %751 = vmatprep.subr.mxu0 0.0
  %752 = vmatpush1.msra.mxu0 0.0
  %753 = vmatprep.subr.mxu0 0.0
  %754 = vmatpush1.msra.mxu0 0.0
  %755 = vmatprep.subr.mxu0 0.0
  %756 = vmatpush1.msra.mxu0 0.0
  %757 = vmatprep.subr.mxu0 0.0
  %758 = vmatpush1.msra.mxu0 0.0
  %759 = vmatprep.subr.mxu0 0.0
  %760 = vmatpush1.msra.mxu0 0.0
  %761 = vmatprep.subr.mxu0 0.0
  %762 = vmatpush1.msra.mxu0 0.0
  %763 = vmatprep.subr.mxu0 0.0
  %764 = vmatpush1.msra.mxu0 0.0
  %765 = vmatprep.subr.mxu0 0.0
  %766 = vmatpush1.msra.mxu0 0.0
  %767 = vmatprep.subr.mxu0 0.0
  %768 = vmatpush1.msra.mxu0 0.0
  %769 = vmatprep.subr.mxu0 0.0
  %770 = vmatpush1.msra.mxu0 0.0
  %771 = vmatprep.subr.mxu0 0.0
  %772 = vmatpush1.msra.mxu0 0.0
  %773 = vmatprep.subr.mxu0 0.0
  %774 = vmatpush1.msra.mxu0 0.0
  %775 = vmatprep.subr.mxu0 0.0
  %776 = vmatpush1.msra.mxu0 0.0
  %777 = vmatprep.subr.mxu0 0.0
  %778 = vmatpush1.msra.mxu0 0.0
  %779 = vmatprep.subr.mxu0 0.0
  %780 = vmatpush1.msra.mxu0 0.0
  %781 = vmatprep.subr.mxu0 0.0
  %782 = vmatpush1.msra.mxu0 0.0
  %783 = vmatprep.subr.mxu0 0.0
  %784 = vmatpush1.msra.mxu0 0.0
  %785 = vmatprep.subr.mxu0 0.0
  %786 = vmatpush1.msra.mxu0 0.0
  %787 = vmatprep.subr.mxu0 0.0
  %788 = vmatpush1.msra.mxu0 0.0
  %789 = vmatprep.subr.mxu0 0.0
  %790 = vmatpush1.msra.mxu0 0.0
  %791 = vmatprep.subr.mxu0 0.0
  %792 = vmatpush1.msra.mxu0 0.0
  %793 = vmatprep.subr.mxu0 0.0
  %794 = vmatpush1.msra.mxu0 0.0
  %795 = vmatprep.subr.mxu0 0.0
  %796 = vmatpush1.msra.mxu0 0.0
  %797 = vmatprep.subr.mxu0 0.0
  %798 = vmatpush1.msra.mxu0 0.0
  %799 = vmatprep.subr.mxu0 0.0
  %800 = vmatpush1.msra.mxu0 0.0
  %801 = vmatprep.subr.mxu0 0.0
  %802 = vmatpush1.msra.mxu0 0.0
  %803 = vmatprep.subr.mxu0 0.0
  %804 = vmatpush1.msra.mxu0 0.0
  %805 = vmatprep.subr.mxu0 0.0
  %806 = vmatpush1.msra.mxu0 0.0
  %807 = vmatprep.mubr.f32.mxu0 0.0
  %808 = vmatmul.mubr.f32.gmra.mrb[0].mxu0 %v737
  %v809 = vpop.f32.mrb[0].mxu0
  %v810 = vadd.f32 0.0, %v809
  %v811 = vpop.f32.mrb[0].mxu0
  %812 = vdwg.mxu0
  %v814 = vsel %vm639, %v715, 0
  %v817 = vsel %vm739, %v729, 0
  %819 = vmatprep.subr.mxu0 0.0
  %820 = vmatpush1.msra.mxu0 %v817
  %821 = vmatprep.subr.mxu0 0.0
  %822 = vmatpush1.msra.mxu0 0.0
  %823 = vmatprep.subr.mxu0 0.0
  %824 = vmatpush1.msra.mxu0 0.0
  %825 = vmatprep.subr.mxu0 0.0
  %826 = vmatpush1.msra.mxu0 0.0
  %827 = vmatprep.subr.mxu0 0.0
  %828 = vmatpush1.msra.mxu0 0.0
  %829 = vmatprep.subr.mxu0 0.0
  %830 = vmatpush1.msra.mxu0 0.0
  %831 = vmatprep.subr.mxu0 0.0
  %832 = vmatpush1.msra.mxu0 0.0
  %833 = vmatprep.subr.mxu0 0.0
  %834 = vmatpush1.msra.mxu0 0.0
  %835 = vmatprep.subr.mxu0 0.0
  %836 = vmatpush1.msra.mxu0 0.0
  %837 = vmatprep.subr.mxu0 0.0
  %838 = vmatpush1.msra.mxu0 0.0
  %839 = vmatprep.subr.mxu0 0.0
  %840 = vmatpush1.msra.mxu0 0.0
  %841 = vmatprep.subr.mxu0 0.0
  %842 = vmatpush1.msra.mxu0 0.0
  %843 = vmatprep.subr.mxu0 0.0
  %844 = vmatpush1.msra.mxu0 0.0
  %845 = vmatprep.subr.mxu0 0.0
  %846 = vmatpush1.msra.mxu0 0.0
  %847 = vmatprep.subr.mxu0 0.0
  %848 = vmatpush1.msra.mxu0 0.0
  %849 = vmatprep.subr.mxu0 0.0
  %850 = vmatpush1.msra.mxu0 0.0
  %851 = vmatprep.subr.mxu0 0.0
  %852 = vmatpush1.msra.mxu0 0.0
  %853 = vmatprep.subr.mxu0 0.0
  %854 = vmatpush1.msra.mxu0 0.0
  %855 = vmatprep.subr.mxu0 0.0
  %856 = vmatpush1.msra.mxu0 0.0
  %857 = vmatprep.subr.mxu0 0.0
  %858 = vmatpush1.msra.mxu0 0.0
  %859 = vmatprep.subr.mxu0 0.0
  %860 = vmatpush1.msra.mxu0 0.0
  %861 = vmatprep.subr.mxu0 0.0
  %862 = vmatpush1.msra.mxu0 0.0
  %863 = vmatprep.subr.mxu0 0.0
  %864 = vmatpush1.msra.mxu0 0.0
  %865 = vmatprep.subr.mxu0 0.0
  %866 = vmatpush1.msra.mxu0 0.0
  %867 = vmatprep.subr.mxu0 0.0
  %868 = vmatpush1.msra.mxu0 0.0
  %869 = vmatprep.subr.mxu0 0.0
  %870 = vmatpush1.msra.mxu0 0.0
  %871 = vmatprep.subr.mxu0 0.0
  %872 = vmatpush1.msra.mxu0 0.0
  %873 = vmatprep.subr.mxu0 0.0
  %874 = vmatpush1.msra.mxu0 0.0
  %875 = vmatprep.subr.mxu0 0.0
  %876 = vmatpush1.msra.mxu0 0.0
  %877 = vmatprep.subr.mxu0 0.0
  %878 = vmatpush1.msra.mxu0 0.0
  %879 = vmatprep.subr.mxu0 0.0
  %880 = vmatpush1.msra.mxu0 0.0
  %881 = vmatprep.subr.mxu0 0.0
  %882 = vmatpush1.msra.mxu0 0.0
  %883 = vmatprep.mubr.f32.mxu0 0.0
  %884 = vmatmul.mubr.f32.gmra.mrb[0].mxu0 %v814
  %v885 = vpop.f32.mrb[0].mxu0
  %v886 = vadd.f32 0.0, %v885
  %v887 = vpop.f32.mrb[0].mxu0
  %888 = vdwg.mxu0
  %v890 = vsel %vm639, %v717, 0
  %v893 = vsel %vm739, %v730, 0
  %895 = vmatprep.subr.mxu0 0.0
  %896 = vmatpush1.msra.mxu0 %v893
  %897 = vmatprep.subr.mxu0 0.0
  %898 = vmatpush1.msra.mxu0 0.0
  %899 = vmatprep.subr.mxu0 0.0
  %900 = vmatpush1.msra.mxu0 0.0
  %901 = vmatprep.subr.mxu0 0.0
  %902 = vmatpush1.msra.mxu0 0.0
  %903 = vmatprep.subr.mxu0 0.0
  %904 = vmatpush1.msra.mxu0 0.0
  %905 = vmatprep.subr.mxu0 0.0
  %906 = vmatpush1.msra.mxu0 0.0
  %907 = vmatprep.subr.mxu0 0.0
  %908 = vmatpush1.msra.mxu0 0.0
  %909 = vmatprep.subr.mxu0 0.0
  %910 = vmatpush1.msra.mxu0 0.0
  %911 = vmatprep.subr.mxu0 0.0
  %912 = vmatpush1.msra.mxu0 0.0
  %913 = vmatprep.subr.mxu0 0.0
  %914 = vmatpush1.msra.mxu0 0.0
  %915 = vmatprep.subr.mxu0 0.0
  %916 = vmatpush1.msra.mxu0 0.0
  %917 = vmatprep.subr.mxu0 0.0
  %918 = vmatpush1.msra.mxu0 0.0
  %919 = vmatprep.subr.mxu0 0.0
  %920 = vmatpush1.msra.mxu0 0.0
  %921 = vmatprep.subr.mxu0 0.0
  %922 = vmatpush1.msra.mxu0 0.0
  %923 = vmatprep.subr.mxu0 0.0
  %924 = vmatpush1.msra.mxu0 0.0
  %925 = vmatprep.subr.mxu0 0.0
  %926 = vmatpush1.msra.mxu0 0.0
  %927 = vmatprep.subr.mxu0 0.0
  %928 = vmatpush1.msra.mxu0 0.0
  %929 = vmatprep.subr.mxu0 0.0
  %930 = vmatpush1.msra.mxu0 0.0
  %931 = vmatprep.subr.mxu0 0.0
  %932 = vmatpush1.msra.mxu0 0.0
  %933 = vmatprep.subr.mxu0 0.0
  %934 = vmatpush1.msra.mxu0 0.0
  %935 = vmatprep.subr.mxu0 0.0
  %936 = vmatpush1.msra.mxu0 0.0
  %937 = vmatprep.subr.mxu0 0.0
  %938 = vmatpush1.msra.mxu0 0.0
  %939 = vmatprep.subr.mxu0 0.0
  %940 = vmatpush1.msra.mxu0 0.0
  %941 = vmatprep.subr.mxu0 0.0
  %942 = vmatpush1.msra.mxu0 0.0
  %943 = vmatprep.subr.mxu0 0.0
  %944 = vmatpush1.msra.mxu0 0.0
  %945 = vmatprep.subr.mxu0 0.0
  %946 = vmatpush1.msra.mxu0 0.0
  %947 = vmatprep.subr.mxu0 0.0
  %948 = vmatpush1.msra.mxu0 0.0
  %949 = vmatprep.subr.mxu0 0.0
  %950 = vmatpush1.msra.mxu0 0.0
  %951 = vmatprep.subr.mxu0 0.0
  %952 = vmatpush1.msra.mxu0 0.0
  %953 = vmatprep.subr.mxu0 0.0
  %954 = vmatpush1.msra.mxu0 0.0
  %955 = vmatprep.subr.mxu0 0.0
  %956 = vmatpush1.msra.mxu0 0.0
  %957 = vmatprep.subr.mxu0 0.0
  %958 = vmatpush1.msra.mxu0 0.0
  %959 = vmatprep.mubr.f32.mxu0 0.0
  %960 = vmatmul.mubr.f32.gmra.mrb[0].mxu0 %v890
  %v961 = vpop.f32.mrb[0].mxu0
  %v962 = vadd.f32 0.0, %v961
  %v963 = vpop.f32.mrb[0].mxu0
  %964 = vdwg.mxu0
  %v966 = vsel %vm639, %v719, 0
  %v969 = vsel %vm739, %v731, 0
  %971 = vmatprep.subr.mxu0 0.0
  %972 = vmatpush1.msra.mxu0 %v969
  %973 = vmatprep.subr.mxu0 0.0
  %974 = vmatpush1.msra.mxu0 0.0
  %975 = vmatprep.subr.mxu0 0.0
  %976 = vmatpush1.msra.mxu0 0.0
  %977 = vmatprep.subr.mxu0 0.0
  %978 = vmatpush1.msra.mxu0 0.0
  %979 = vmatprep.subr.mxu0 0.0
  %980 = vmatpush1.msra.mxu0 0.0
  %981 = vmatprep.subr.mxu0 0.0
  %982 = vmatpush1.msra.mxu0 0.0
  %983 = vmatprep.subr.mxu0 0.0
  %984 = vmatpush1.msra.mxu0 0.0
  %985 = vmatprep.subr.mxu0 0.0
  %986 = vmatpush1.msra.mxu0 0.0
  %987 = vmatprep.subr.mxu0 0.0
  %988 = vmatpush1.msra.mxu0 0.0
  %989 = vmatprep.subr.mxu0 0.0
  %990 = vmatpush1.msra.mxu0 0.0
  %991 = vmatprep.subr.mxu0 0.0
  %992 = vmatpush1.msra.mxu0 0.0
  %993 = vmatprep.subr.mxu0 0.0
  %994 = vmatpush1.msra.mxu0 0.0
  %995 = vmatprep.subr.mxu0 0.0
  %996 = vmatpush1.msra.mxu0 0.0
  %997 = vmatprep.subr.mxu0 0.0
  %998 = vmatpush1.msra.mxu0 0.0
  %999 = vmatprep.subr.mxu0 0.0
  %1000 = vmatpush1.msra.mxu0 0.0
  %1001 = vmatprep.subr.mxu0 0.0
  %1002 = vmatpush1.msra.mxu0 0.0
  %1003 = vmatprep.subr.mxu0 0.0
  %1004 = vmatpush1.msra.mxu0 0.0
  %1005 = vmatprep.subr.mxu0 0.0
  %1006 = vmatpush1.msra.mxu0 0.0
  %1007 = vmatprep.subr.mxu0 0.0
  %1008 = vmatpush1.msra.mxu0 0.0
  %1009 = vmatprep.subr.mxu0 0.0
  %1010 = vmatpush1.msra.mxu0 0.0
  %1011 = vmatprep.subr.mxu0 0.0
  %1012 = vmatpush1.msra.mxu0 0.0
  %1013 = vmatprep.subr.mxu0 0.0
  %1014 = vmatpush1.msra.mxu0 0.0
  %1015 = vmatprep.subr.mxu0 0.0
  %1016 = vmatpush1.msra.mxu0 0.0
  %1017 = vmatprep.subr.mxu0 0.0
  %1018 = vmatpush1.msra.mxu0 0.0
  %1019 = vmatprep.subr.mxu0 0.0
  %1020 = vmatpush1.msra.mxu0 0.0
  %1021 = vmatprep.subr.mxu0 0.0
  %1022 = vmatpush1.msra.mxu0 0.0
  %1023 = vmatprep.subr.mxu0 0.0
  %1024 = vmatpush1.msra.mxu0 0.0
  %1025 = vmatprep.subr.mxu0 0.0
  %1026 = vmatpush1.msra.mxu0 0.0
  %1027 = vmatprep.subr.mxu0 0.0
  %1028 = vmatpush1.msra.mxu0 0.0
  %1029 = vmatprep.subr.mxu0 0.0
  %1030 = vmatpush1.msra.mxu0 0.0
  %1031 = vmatprep.subr.mxu0 0.0
  %1032 = vmatpush1.msra.mxu0 0.0
  %1033 = vmatprep.subr.mxu0 0.0
  %1034 = vmatpush1.msra.mxu0 0.0
  %1035 = vmatprep.mubr.f32.mxu0 0.0
  %1036 = vmatmul.mubr.f32.gmra.mrb[0].mxu0 %v966
  %v1037 = vpop.f32.mrb[0].mxu0
  %v1038 = vadd.f32 0.0, %v1037
  %v1039 = vpop.f32.mrb[0].mxu0
  %1040 = vdwg.mxu0
  %v1042 = vsel %vm639, %v721, 0
  %v1045 = vsel %vm739, %v732, 0
  %1047 = vmatprep.subr.mxu0 0.0
  %1048 = vmatpush1.msra.mxu0 %v1045
  %1049 = vmatprep.subr.mxu0 0.0
  %1050 = vmatpush1.msra.mxu0 0.0
  %1051 = vmatprep.subr.mxu0 0.0
  %1052 = vmatpush1.msra.mxu0 0.0
  %1053 = vmatprep.subr.mxu0 0.0
  %1054 = vmatpush1.msra.mxu0 0.0
  %1055 = vmatprep.subr.mxu0 0.0
  %1056 = vmatpush1.msra.mxu0 0.0
  %1057 = vmatprep.subr.mxu0 0.0
  %1058 = vmatpush1.msra.mxu0 0.0
  %1059 = vmatprep.subr.mxu0 0.0
  %1060 = vmatpush1.msra.mxu0 0.0
  %1061 = vmatprep.subr.mxu0 0.0
  %1062 = vmatpush1.msra.mxu0 0.0
  %1063 = vmatprep.subr.mxu0 0.0
  %1064 = vmatpush1.msra.mxu0 0.0
  %1065 = vmatprep.subr.mxu0 0.0
  %1066 = vmatpush1.msra.mxu0 0.0
  %1067 = vmatprep.subr.mxu0 0.0
  %1068 = vmatpush1.msra.mxu0 0.0
  %1069 = vmatprep.subr.mxu0 0.0
  %1070 = vmatpush1.msra.mxu0 0.0
  %1071 = vmatprep.subr.mxu0 0.0
  %1072 = vmatpush1.msra.mxu0 0.0
  %1073 = vmatprep.subr.mxu0 0.0
  %1074 = vmatpush1.msra.mxu0 0.0
  %1075 = vmatprep.subr.mxu0 0.0
  %1076 = vmatpush1.msra.mxu0 0.0
  %1077 = vmatprep.subr.mxu0 0.0
  %1078 = vmatpush1.msra.mxu0 0.0
  %1079 = vmatprep.subr.mxu0 0.0
  %1080 = vmatpush1.msra.mxu0 0.0
  %1081 = vmatprep.subr.mxu0 0.0
  %1082 = vmatpush1.msra.mxu0 0.0
  %1083 = vmatprep.subr.mxu0 0.0
  %1084 = vmatpush1.msra.mxu0 0.0
  %1085 = vmatprep.subr.mxu0 0.0
  %1086 = vmatpush1.msra.mxu0 0.0
  %1087 = vmatprep.subr.mxu0 0.0
  %1088 = vmatpush1.msra.mxu0 0.0
  %1089 = vmatprep.subr.mxu0 0.0
  %1090 = vmatpush1.msra.mxu0 0.0
  %1091 = vmatprep.subr.mxu0 0.0
  %1092 = vmatpush1.msra.mxu0 0.0
  %1093 = vmatprep.subr.mxu0 0.0
  %1094 = vmatpush1.msra.mxu0 0.0
  %1095 = vmatprep.subr.mxu0 0.0
  %1096 = vmatpush1.msra.mxu0 0.0
  %1097 = vmatprep.subr.mxu0 0.0
  %1098 = vmatpush1.msra.mxu0 0.0
  %1099 = vmatprep.subr.mxu0 0.0
  %1100 = vmatpush1.msra.mxu0 0.0
  %1101 = vmatprep.subr.mxu0 0.0
  %1102 = vmatpush1.msra.mxu0 0.0
  %1103 = vmatprep.subr.mxu0 0.0
  %1104 = vmatpush1.msra.mxu0 0.0
  %1105 = vmatprep.subr.mxu0 0.0
  %1106 = vmatpush1.msra.mxu0 0.0
  %1107 = vmatprep.subr.mxu0 0.0
  %1108 = vmatpush1.msra.mxu0 0.0
  %1109 = vmatprep.subr.mxu0 0.0
  %1110 = vmatpush1.msra.mxu0 0.0
  %1111 = vmatprep.mubr.f32.mxu0 0.0
  %1112 = vmatmul.mubr.f32.gmra.mrb[0].mxu0 %v1042
  %v1113 = vpop.f32.mrb[0].mxu0
  %v1114 = vadd.f32 0.0, %v1113
  %v1115 = vpop.f32.mrb[0].mxu0
  %1116 = vdwg.mxu0
  %v1118 = vsel %vm639, %v723, 0
  %v1121 = vsel %vm739, %v733, 0
  %1123 = vmatprep.subr.mxu0 0.0
  %1124 = vmatpush1.msra.mxu0 %v1121
  %1125 = vmatprep.subr.mxu0 0.0
  %1126 = vmatpush1.msra.mxu0 0.0
  %1127 = vmatprep.subr.mxu0 0.0
  %1128 = vmatpush1.msra.mxu0 0.0
  %1129 = vmatprep.subr.mxu0 0.0
  %1130 = vmatpush1.msra.mxu0 0.0
  %1131 = vmatprep.subr.mxu0 0.0
  %1132 = vmatpush1.msra.mxu0 0.0
  %1133 = vmatprep.subr.mxu0 0.0
  %1134 = vmatpush1.msra.mxu0 0.0
  %1135 = vmatprep.subr.mxu0 0.0
  %1136 = vmatpush1.msra.mxu0 0.0
  %1137 = vmatprep.subr.mxu0 0.0
  %1138 = vmatpush1.msra.mxu0 0.0
  %1139 = vmatprep.subr.mxu0 0.0
  %1140 = vmatpush1.msra.mxu0 0.0
  %1141 = vmatprep.subr.mxu0 0.0
  %1142 = vmatpush1.msra.mxu0 0.0
  %1143 = vmatprep.subr.mxu0 0.0
  %1144 = vmatpush1.msra.mxu0 0.0
  %1145 = vmatprep.subr.mxu0 0.0
  %1146 = vmatpush1.msra.mxu0 0.0
  %1147 = vmatprep.subr.mxu0 0.0
  %1148 = vmatpush1.msra.mxu0 0.0
  %1149 = vmatprep.subr.mxu0 0.0
  %1150 = vmatpush1.msra.mxu0 0.0
  %1151 = vmatprep.subr.mxu0 0.0
  %1152 = vmatpush1.msra.mxu0 0.0
  %1153 = vmatprep.subr.mxu0 0.0
  %1154 = vmatpush1.msra.mxu0 0.0
  %1155 = vmatprep.subr.mxu0 0.0
  %1156 = vmatpush1.msra.mxu0 0.0
  %1157 = vmatprep.subr.mxu0 0.0
  %1158 = vmatpush1.msra.mxu0 0.0
  %1159 = vmatprep.subr.mxu0 0.0
  %1160 = vmatpush1.msra.mxu0 0.0
  %1161 = vmatprep.subr.mxu0 0.0
  %1162 = vmatpush1.msra.mxu0 0.0
  %1163 = vmatprep.subr.mxu0 0.0
  %1164 = vmatpush1.msra.mxu0 0.0
  %1165 = vmatprep.subr.mxu0 0.0
  %1166 = vmatpush1.msra.mxu0 0.0
  %1167 = vmatprep.subr.mxu0 0.0
  %1168 = vmatpush1.msra.mxu0 0.0
  %1169 = vmatprep.subr.mxu0 0.0
  %1170 = vmatpush1.msra.mxu0 0.0
  %1171 = vmatprep.subr.mxu0 0.0
  %1172 = vmatpush1.msra.mxu0 0.0
  %1173 = vmatprep.subr.mxu0 0.0
  %1174 = vmatpush1.msra.mxu0 0.0
  %1175 = vmatprep.subr.mxu0 0.0
  %1176 = vmatpush1.msra.mxu0 0.0
  %1177 = vmatprep.subr.mxu0 0.0
  %1178 = vmatpush1.msra.mxu0 0.0
  %1179 = vmatprep.subr.mxu0 0.0
  %1180 = vmatpush1.msra.mxu0 0.0
  %1181 = vmatprep.subr.mxu0 0.0
  %1182 = vmatpush1.msra.mxu0 0.0
  %1183 = vmatprep.subr.mxu0 0.0
  %1184 = vmatpush1.msra.mxu0 0.0
  %1185 = vmatprep.subr.mxu0 0.0
  %1186 = vmatpush1.msra.mxu0 0.0
  %1187 = vmatprep.mubr.f32.mxu0 0.0
  %1188 = vmatmul.mubr.f32.gmra.mrb[0].mxu0 %v1118
  %v1189 = vpop.f32.mrb[0].mxu0
  %v1190 = vadd.f32 0.0, %v1189
  %v1191 = vpop.f32.mrb[0].mxu0
  %1192 = vdwg.mxu0
  %v1194 = vsel %vm639, %v725, 0
  %v1197 = vsel %vm739, %v734, 0
  %1199 = vmatprep.subr.mxu0 0.0
  %1200 = vmatpush1.msra.mxu0 %v1197
  %1201 = vmatprep.subr.mxu0 0.0
  %1202 = vmatpush1.msra.mxu0 0.0
  %1203 = vmatprep.subr.mxu0 0.0
  %1204 = vmatpush1.msra.mxu0 0.0
  %1205 = vmatprep.subr.mxu0 0.0
  %1206 = vmatpush1.msra.mxu0 0.0
  %1207 = vmatprep.subr.mxu0 0.0
  %1208 = vmatpush1.msra.mxu0 0.0
  %1209 = vmatprep.subr.mxu0 0.0
  %1210 = vmatpush1.msra.mxu0 0.0
  %1211 = vmatprep.subr.mxu0 0.0
  %1212 = vmatpush1.msra.mxu0 0.0
  %1213 = vmatprep.subr.mxu0 0.0
  %1214 = vmatpush1.msra.mxu0 0.0
  %1215 = vmatprep.subr.mxu0 0.0
  %1216 = vmatpush1.msra.mxu0 0.0
  %1217 = vmatprep.subr.mxu0 0.0
  %1218 = vmatpush1.msra.mxu0 0.0
  %1219 = vmatprep.subr.mxu0 0.0
  %1220 = vmatpush1.msra.mxu0 0.0
  %1221 = vmatprep.subr.mxu0 0.0
  %1222 = vmatpush1.msra.mxu0 0.0
  %1223 = vmatprep.subr.mxu0 0.0
  %1224 = vmatpush1.msra.mxu0 0.0
  %1225 = vmatprep.subr.mxu0 0.0
  %1226 = vmatpush1.msra.mxu0 0.0
  %1227 = vmatprep.subr.mxu0 0.0
  %1228 = vmatpush1.msra.mxu0 0.0
  %1229 = vmatprep.subr.mxu0 0.0
  %1230 = vmatpush1.msra.mxu0 0.0
  %1231 = vmatprep.subr.mxu0 0.0
  %1232 = vmatpush1.msra.mxu0 0.0
  %1233 = vmatprep.subr.mxu0 0.0
  %1234 = vmatpush1.msra.mxu0 0.0
  %1235 = vmatprep.subr.mxu0 0.0
  %1236 = vmatpush1.msra.mxu0 0.0
  %1237 = vmatprep.subr.mxu0 0.0
  %1238 = vmatpush1.msra.mxu0 0.0
  %1239 = vmatprep.subr.mxu0 0.0
  %1240 = vmatpush1.msra.mxu0 0.0
  %1241 = vmatprep.subr.mxu0 0.0
  %1242 = vmatpush1.msra.mxu0 0.0
  %1243 = vmatprep.subr.mxu0 0.0
  %1244 = vmatpush1.msra.mxu0 0.0
  %1245 = vmatprep.subr.mxu0 0.0
  %1246 = vmatpush1.msra.mxu0 0.0
  %1247 = vmatprep.subr.mxu0 0.0
  %1248 = vmatpush1.msra.mxu0 0.0
  %1249 = vmatprep.subr.mxu0 0.0
  %1250 = vmatpush1.msra.mxu0 0.0
  %1251 = vmatprep.subr.mxu0 0.0
  %1252 = vmatpush1.msra.mxu0 0.0
  %1253 = vmatprep.subr.mxu0 0.0
  %1254 = vmatpush1.msra.mxu0 0.0
  %1255 = vmatprep.subr.mxu0 0.0
  %1256 = vmatpush1.msra.mxu0 0.0
  %1257 = vmatprep.subr.mxu0 0.0
  %1258 = vmatpush1.msra.mxu0 0.0
  %1259 = vmatprep.subr.mxu0 0.0
  %1260 = vmatpush1.msra.mxu0 0.0
  %1261 = vmatprep.subr.mxu0 0.0
  %1262 = vmatpush1.msra.mxu0 0.0
  %1263 = vmatprep.mubr.f32.mxu0 0.0
  %1264 = vmatmul.mubr.f32.gmra.mrb[0].mxu0 %v1194
  %v1265 = vpop.f32.mrb[0].mxu0
  %v1266 = vadd.f32 0.0, %v1265
  %v1267 = vpop.f32.mrb[0].mxu0
  %1268 = vdwg.mxu0
  %v1270 = vsel %vm639, %v727, 0
  %v1273 = vsel %vm739, %v735, 0
  %1275 = vmatprep.subr.mxu0 0.0
  %1276 = vmatpush1.msra.mxu0 %v1273
  %1277 = vmatprep.subr.mxu0 0.0
  %1278 = vmatpush1.msra.mxu0 0.0
  %1279 = vmatprep.subr.mxu0 0.0
  %1280 = vmatpush1.msra.mxu0 0.0
  %1281 = vmatprep.subr.mxu0 0.0
  %1282 = vmatpush1.msra.mxu0 0.0
  %1283 = vmatprep.subr.mxu0 0.0
  %1284 = vmatpush1.msra.mxu0 0.0
  %1285 = vmatprep.subr.mxu0 0.0
  %1286 = vmatpush1.msra.mxu0 0.0
  %1287 = vmatprep.subr.mxu0 0.0
  %1288 = vmatpush1.msra.mxu0 0.0
  %1289 = vmatprep.subr.mxu0 0.0
  %1290 = vmatpush1.msra.mxu0 0.0
  %1291 = vmatprep.subr.mxu0 0.0
  %1292 = vmatpush1.msra.mxu0 0.0
  %1293 = vmatprep.subr.mxu0 0.0
  %1294 = vmatpush1.msra.mxu0 0.0
  %1295 = vmatprep.subr.mxu0 0.0
  %1296 = vmatpush1.msra.mxu0 0.0
  %1297 = vmatprep.subr.mxu0 0.0
  %1298 = vmatpush1.msra.mxu0 0.0
  %1299 = vmatprep.subr.mxu0 0.0
  %1300 = vmatpush1.msra.mxu0 0.0
  %1301 = vmatprep.subr.mxu0 0.0
  %1302 = vmatpush1.msra.mxu0 0.0
  %1303 = vmatprep.subr.mxu0 0.0
  %1304 = vmatpush1.msra.mxu0 0.0
  %1305 = vmatprep.subr.mxu0 0.0
  %1306 = vmatpush1.msra.mxu0 0.0
  %1307 = vmatprep.subr.mxu0 0.0
  %1308 = vmatpush1.msra.mxu0 0.0
  %1309 = vmatprep.subr.mxu0 0.0
  %1310 = vmatpush1.msra.mxu0 0.0
  %1311 = vmatprep.subr.mxu0 0.0
  %1312 = vmatpush1.msra.mxu0 0.0
  %1313 = vmatprep.subr.mxu0 0.0
  %1314 = vmatpush1.msra.mxu0 0.0
  %1315 = vmatprep.subr.mxu0 0.0
  %1316 = vmatpush1.msra.mxu0 0.0
  %1317 = vmatprep.subr.mxu0 0.0
  %1318 = vmatpush1.msra.mxu0 0.0
  %1319 = vmatprep.subr.mxu0 0.0
  %1320 = vmatpush1.msra.mxu0 0.0
  %1321 = vmatprep.subr.mxu0 0.0
  %1322 = vmatpush1.msra.mxu0 0.0
  %1323 = vmatprep.subr.mxu0 0.0
  %1324 = vmatpush1.msra.mxu0 0.0
  %1325 = vmatprep.subr.mxu0 0.0
  %1326 = vmatpush1.msra.mxu0 0.0
  %1327 = vmatprep.subr.mxu0 0.0
  %1328 = vmatpush1.msra.mxu0 0.0
  %1329 = vmatprep.subr.mxu0 0.0
  %1330 = vmatpush1.msra.mxu0 0.0
  %1331 = vmatprep.subr.mxu0 0.0
  %1332 = vmatpush1.msra.mxu0 0.0
  %1333 = vmatprep.subr.mxu0 0.0
  %1334 = vmatpush1.msra.mxu0 0.0
  %1335 = vmatprep.subr.mxu0 0.0
  %1336 = vmatpush1.msra.mxu0 0.0
  %1337 = vmatprep.subr.mxu0 0.0
  %1338 = vmatpush1.msra.mxu0 0.0
  %1339 = vmatprep.mubr.f32.mxu0 0.0
  %1340 = vmatmul.mubr.f32.gmra.mrb[0].mxu0 %v1270
  %v1341 = vpop.f32.mrb[0].mxu0
  %v1342 = vadd.f32 0.0, %v1341
  %v1343 = vpop.f32.mrb[0].mxu0
  %1344 = vdwg.mxu0
  %vm1345 = vcmask 162816
  %1346 = vst.msk [vmem:[%s3] sm:$0xff] %vm1345, %v810
  %1347 = vst.msk [vmem:[%s3 + $0x8] sm:$0xff] %vm1345, %v886
  %1348 = vst.msk [vmem:[%s3 + $0x10] sm:$0xff] %vm1345, %v962
  %1349 = vst.msk [vmem:[%s3 + $0x18] sm:$0xff] %vm1345, %v1038
  %1350 = vst.msk [vmem:[%s3 + $0x20] sm:$0xff] %vm1345, %v1114
  %1351 = vst.msk [vmem:[%s3 + $0x28] sm:$0xff] %vm1345, %v1190
  %1352 = vst.msk [vmem:[%s3 + $0x30] sm:$0xff] %vm1345, %v1266
  %1353 = vst.msk [vmem:[%s3 + $0x38] sm:$0xff] %vm1345, %v1342
  // Predicated region
  $region14: #{decoder_layer_forward.13} parent=0 // pred_check
    _
  $region15: #{decoder_layer_forward.13} parent=0 // pred_check_branch
    %1355 = sbr.rel (0) target = $region17
  $region16: #{decoder_layer_forward.13} parent=0 // pred_region
    _
  $region17: #{decoder_layer_forward.13} parent=0 // pred_fallthru
    _
  // Predicated region
  $region18: #{decoder_layer_forward.13} parent=0 // pred_check
    _
  $region19: #{decoder_layer_forward.13} parent=0 // pred_check_branch
    %1357 = sbr.rel (0) target = $region21
  $region20: #{decoder_layer_forward.13} parent=0 // pred_region
    _
  $region21: #{decoder_layer_forward.13} parent=0 // pred_fallthru
    _

</llo_original>
